<compile_context>
chip_gen: v7x
topology: tpu7x:2x2x1
jax: 0.10.0
libtpu: 0.0.40
codegen_flags: <defaults>
</compile_context>

<pallas_src>
import functools

import jax
import jax.numpy as jnp
from jax import lax
from jax.experimental import pallas as pl
from jax.experimental.pallas import tpu as pltpu

_BN_EPS = 1e-5
_R0 = 8  # interior row offset / inter-element gap (multiple of 8 -> aligned stores)


# ----------------------------------------------------------------------------
# Fused ContextModule kernel (batch_tile elements per grid step)
# ----------------------------------------------------------------------------
def _context_kernel(x_ref, wdw_ref, mh_ref, b1h_ref, s2h_ref, b2h_ref,
                    mo_ref, b1o_ref, s2o_ref, b2o_ref,
                    out_ref, buf_a, buf_b, *, H, W, CP, B_TILE):
    L = W * CP              # packed interior lane width (128 for W=16, C=8)
    PW = L + 2 * CP         # + one-pixel W halo each side (144)
    STRIDE = H + _R0        # sublane stride between stacked batch elements
    f32 = jnp.float32

    def zero_halos(buf):
        # Only the halo/gap row blocks (never overwritten by fill) need to be
        # zero; interior rows are fully rewritten by every fill().  Done once
        # per grid step.
        for b in range(B_TILE + 1):
            r = b * STRIDE
            buf[r:r + _R0, :] = jnp.zeros((_R0, PW), f32)

    def fill(buf, val):
        # val: (B_TILE*H, PW), zero halo columns; aligned full-width stores.
        for b in range(B_TILE):
            base = _R0 + b * STRIDE
            buf[base:base + H, :] = val[b * H:(b + 1) * H, :]

    def depthwise(buf, block_ids):
        # 9-tap depthwise conv for every block in `block_ids` (branches that
        # share an input also share the shifted windows).  The lane (j) shift
        # is hoisted: one lane-shifted slab per j, then sublane windows.
        taps = [[wdw_ref[blk, t] for t in range(9)] for blk in block_ids]
        accs = [[jnp.zeros((H, L), f32) for _ in range(B_TILE)]
                for _ in block_ids]
        for j in range(3):
            slab = buf[:, j * CP:j * CP + L]                 # (rows, 128)
            for b in range(B_TILE):
                base = _R0 + b * STRIDE
                for i in range(3):
                    win = slab[base - 1 + i:base - 1 + i + H, :]
                    for k in range(len(block_ids)):
                        accs[k][b] = accs[k][b] + win * taps[k][3 * i + j]
        if B_TILE == 1:
            return [a[0] for a in accs]
        return [jnp.concatenate(a, axis=0) for a in accs]    # (B_TILE*H, L)

    def pw_bn(acc, m, b1, s2, b2):
        # pointwise conv + depthwise bias + BN1 folded into m / b1; then
        # ReLU, BN2, ReLU.
        z = jnp.dot(acc, m, preferred_element_type=f32)
        y = jnp.maximum(z + b1, 0.0)
        return jnp.maximum(y * s2 + b2, 0.0)

    zero_halos(buf_a)
    zero_halos(buf_b)

    # stem (dw block 0, halo-padded pointwise 0): C -> C/2 channels per group.
    for b in range(B_TILE):
        base = _R0 + b * STRIDE
        buf_a[base:base + H, :] = x_ref[b]
    (acc0,) = depthwise(buf_a, [0])
    stem = pw_bn(acc0, mh_ref[0], b1h_ref[0], s2h_ref[0], b2h_ref[0])  # (M, PW)

    # branch1 (dw block 1) and branch2_1 (dw block 2) share the stem output.
    fill(buf_b, stem)
    acc1, acc2 = depthwise(buf_b, [1, 2])
    y1 = pw_bn(acc1, mo_ref[0], b1o_ref[0], s2o_ref[0], b2o_ref[0])    # (M, L)
    x2 = pw_bn(acc2, mh_ref[1], b1h_ref[1], s2h_ref[1], b2h_ref[1])    # (M, PW)

    # branch2_2 (dw block 3): pointwise targets lanes w*CP + {C/2..C-1}.
    fill(buf_a, x2)
    (acc3,) = depthwise(buf_a, [3])
    y2 = pw_bn(acc3, mo_ref[1], b1o_ref[1], s2o_ref[1], b2o_ref[1])    # (M, L)

    # Channel concat == lane-disjoint sum; 128-lane dense store, no slice.
    y = y1 + y2
    for b in range(B_TILE):
        out_ref[b] = y[b * H:(b + 1) * H, :]


# ----------------------------------------------------------------------------
# Host-side weight packing (folds biases / BN1 into the packed lane layout)
# ----------------------------------------------------------------------------
def _pack_block_params(p, c_in, c_out, o_off, c_pack, W, halo_out):
    f32 = jnp.float32
    wdw = p["wdw"]                      # (9, c_in)
    bdw = p["bdw"][0]                   # (c_in,)
    wpw = p["wpw"]                      # (c_in, c_out)
    bpw = p["bpw"][0]                   # (c_out,)
    s1, b1 = p["s1"][0], p["b1"][0]
    s2, b2 = p["s2"][0], p["b2"][0]

    # Depthwise taps tiled along W into the packed lane layout (9, W*c_pack).
    w9 = jnp.zeros((9, c_pack), f32).at[:, :c_in].set(wdw)
    wdw_p = jnp.tile(w9, (1, W))

    # Pointwise conv (+ BN1 scale) as a block-diagonal lane-mixing matrix.
    # Output lanes placed at channel offset `o_off` (branch2_2 writes the
    # upper half directly -> free concat).  Blocks whose output feeds fill()
    # (halo_out=True) get zero halo columns appended so the interior store
    # re-establishes the zero W-halo.
    m8 = jnp.zeros((c_pack, c_pack), f32).at[:c_in, o_off:o_off + c_out].set(
        wpw * s1[None, :])
    m = jnp.kron(jnp.eye(W, dtype=f32), m8)                    # (W*cp, W*cp)
    if halo_out:
        m = jnp.pad(m, ((0, 0), (c_pack, c_pack)))

    def lanes(vec):
        v = jnp.zeros((c_pack,), f32).at[o_off:o_off + c_out].set(vec)
        v = jnp.tile(v, (W,))
        if halo_out:
            v = jnp.pad(v, (c_pack, c_pack))
        return v[None, :]

    # depthwise bias + pointwise bias + BN1 shift folded into one bias vector.
    b1_fold = (bdw @ wpw + bpw) * s1 + b1
    return dict(wdw=wdw_p, M=m, b1=lanes(b1_fold), s2=lanes(s2), b2=lanes(b2))


def _pack_context_params(params, c_full, W):
    half = c_full // 2
    stem = _pack_block_params(params["stem"], c_full, half, 0, c_full, W, True)
    br1 = _pack_block_params(params["branch1"], half, half, 0, c_full, W, False)
    br21 = _pack_block_params(params["branch2_1"], half, half, 0, c_full, W, True)
    br22 = _pack_block_params(params["branch2_2"], half, half, half, c_full, W,
                              False)
    return dict(
        wdw=jnp.stack([stem["wdw"], br1["wdw"], br21["wdw"], br22["wdw"]]),
        mh=jnp.stack([stem["M"], br21["M"]]),        # halo-padded (feed fill)
        b1h=jnp.stack([stem["b1"], br21["b1"]]),
        s2h=jnp.stack([stem["s2"], br21["s2"]]),
        b2h=jnp.stack([stem["b2"], br21["b2"]]),
        mo=jnp.stack([br1["M"], br22["M"]]),         # 128-wide (final outputs)
        b1o=jnp.stack([br1["b1"], br22["b1"]]),
        s2o=jnp.stack([br1["s2"], br22["s2"]]),
        b2o=jnp.stack([br1["b2"], br22["b2"]]),
    )


# ----------------------------------------------------------------------------
# ContextModule forward (NCHW in, NCHW out — matches PyTorch)
# ----------------------------------------------------------------------------
def context_module_forward(x_nchw, params, *, batch_tile=None):
    N, C, H, W = x_nchw.shape
    assert C % 2 == 0, "in_channel must be even"
    CP = C                      # lane-group stride (= full channel count)
    L = W * CP                  # packed interior lane width
    PW = L + 2 * CP
    assert L == 128, "packed layout assumes W * C == 128 (lane-dense)"
    assert H % 8 == 0, "H must be a multiple of 8 (sublane-aligned stores)"

    if batch_tile is None:
        # batch_tile > 1 fills the MXU M dimension (M = batch_tile*H rows per
        # matmul); keeping >= 2 grid steps keeps both v7x TensorCores busy.
        batch_tile = 2 if (N % 2 == 0 and N >= 4) else 1
    assert N % batch_tile == 0

    packed = _pack_context_params(params, c_full=C, W=W)

    # NCHW -> lane-packed (N, H, W*C) rows + one-pixel W halo (zero lanes).
    x_p = jnp.transpose(x_nchw, (0, 2, 3, 1)).astype(jnp.float32).reshape(N, H, L)
    x_p = jnp.pad(x_p, ((0, 0), (0, 0), (CP, CP)))

    rows = _R0 + batch_tile * (H + _R0)     # stacked elements + halo/gap rows
    const = lambda n: (0, 0, 0)

    out_p = pl.pallas_call(
        functools.partial(_context_kernel, H=H, W=W, CP=CP, B_TILE=batch_tile),
        out_shape=jax.ShapeDtypeStruct((N, H, L), jnp.float32),
        grid=(N // batch_tile,),
        in_specs=[
            pl.BlockSpec((batch_tile, H, PW), lambda n: (n, 0, 0)),
            pl.BlockSpec((4, 9, L), const),       # depthwise taps (all blocks)
            pl.BlockSpec((2, L, PW), const),      # pointwise M (stem, branch2_1)
            pl.BlockSpec((2, 1, PW), const),
            pl.BlockSpec((2, 1, PW), const),
            pl.BlockSpec((2, 1, PW), const),
            pl.BlockSpec((2, L, L), const),       # pointwise M (branch1, branch2_2)
            pl.BlockSpec((2, 1, L), const),
            pl.BlockSpec((2, 1, L), const),
            pl.BlockSpec((2, 1, L), const),
        ],
        out_specs=pl.BlockSpec((batch_tile, H, L), lambda n: (n, 0, 0)),
        scratch_shapes=[
            pltpu.VMEM((rows, PW), jnp.float32),
            pltpu.VMEM((rows, PW), jnp.float32),
        ],
        compiler_params=pltpu.CompilerParams(
            dimension_semantics=("parallel",)),
    )(x_p, packed["wdw"], packed["mh"], packed["b1h"], packed["s2h"],
      packed["b2h"], packed["mo"], packed["b1o"], packed["s2o"], packed["b2o"])

    out = out_p.reshape(N, H, W, C)
    return jnp.transpose(out, (0, 3, 1, 2))       # packed NHWC -> NCHW


# ----------------------------------------------------------------------------
# Parameter construction (deterministic, synthetic)
# ----------------------------------------------------------------------------
def _fold_bn(gamma, beta, mean, var):
    scale = gamma / jnp.sqrt(var + _BN_EPS)
    bias = beta - mean * scale
    return scale, bias


def init_block_params(key, c_in, c_out):
    """Params for one Conv3x3BNReLU block (depthwise + pointwise + 2x BN)."""
    ks = jax.random.split(key, 12)
    wdw = 0.3 * jax.random.normal(ks[0], (9, c_in), jnp.float32)
    bdw = 0.1 * jax.random.normal(ks[1], (1, c_in), jnp.float32)
    wpw = 0.3 * jax.random.normal(ks[2], (c_in, c_out), jnp.float32)
    bpw = 0.1 * jax.random.normal(ks[3], (1, c_out), jnp.float32)
    g1 = 1.0 + 0.1 * jax.random.normal(ks[4], (1, c_out), jnp.float32)
    be1 = 0.1 * jax.random.normal(ks[5], (1, c_out), jnp.float32)
    m1 = 0.1 * jax.random.normal(ks[6], (1, c_out), jnp.float32)
    v1 = 1.0 + 0.1 * jnp.abs(jax.random.normal(ks[7], (1, c_out), jnp.float32))
    g2 = 1.0 + 0.1 * jax.random.normal(ks[8], (1, c_out), jnp.float32)
    be2 = 0.1 * jax.random.normal(ks[9], (1, c_out), jnp.float32)
    m2 = 0.1 * jax.random.normal(ks[10], (1, c_out), jnp.float32)
    v2 = 1.0 + 0.1 * jnp.abs(jax.random.normal(ks[11], (1, c_out), jnp.float32))
    s1, b1 = _fold_bn(g1, be1, m1, v1)
    s2, b2 = _fold_bn(g2, be2, m2, v2)
    return dict(wdw=wdw, bdw=bdw, wpw=wpw, bpw=bpw, s1=s1, b1=b1, s2=s2, b2=b2)


def init_context_module_params(key, in_channel):
    half = in_channel // 2
    k0, k1, k2, k3 = jax.random.split(key, 4)
    return dict(
        stem=init_block_params(k0, in_channel, half),
        branch1=init_block_params(k1, half, half),
        branch2_1=init_block_params(k2, half, half),
        branch2_2=init_block_params(k3, half, half),
    )


# ----------------------------------------------------------------------------
# Pure-JAX reference (correctness check only)
# ----------------------------------------------------------------------------
def _ref_block(x_nhwc, p):
    c_in = x_nhwc.shape[-1]
    wdw = p["wdw"].reshape(3, 3, 1, c_in)  # HWIO, in_per_group=1
    dw = lax.conv_general_dilated(
        x_nhwc, wdw, window_strides=(1, 1), padding=((1, 1), (1, 1)),
        dimension_numbers=("NHWC", "HWIO", "NHWC"), feature_group_count=c_in)
    dw = dw + p["bdw"][0]
    y = jnp.einsum("nhwc,co->nhwo", dw, p["wpw"]) + p["bpw"][0]
    y = jnp.maximum(y * p["s1"][0] + p["b1"][0], 0.0)
    y = jnp.maximum(y * p["s2"][0] + p["b2"][0], 0.0)
    return y


def _ref_forward(x_nchw, params):
    x = jnp.transpose(x_nchw, (0, 2, 3, 1)).astype(jnp.float32)
    x = _ref_block(x, params["stem"])
    x1 = _ref_block(x, params["branch1"])
    x2 = _ref_block(x, params["branch2_1"])
    x2 = _ref_block(x2, params["branch2_2"])
    out = jnp.concatenate([x1, x2], axis=-1)
    return jnp.transpose(out, (0, 3, 1, 2))


if __name__ == "__main__":
    key = jax.random.PRNGKey(0)
    k_x, k_p = jax.random.split(key)

    # in_channel = 8 -> half = 4; W*C = 128 (lane-dense). batch = 4 so the
    # default batch_tile = 2 is exercised (grid=(2,), M = 32 per matmul).
    N, C, H, W = 4, 8, 16, 16
    x = jax.random.normal(k_x, (N, C, H, W), jnp.float32)
    params = init_context_module_params(k_p, C)

    out = jax.block_until_ready(context_module_forward(x, params))
    assert out.shape == (N, C, H, W), out.shape   # cat of two half-channel branches

    ref = jax.block_until_ready(_ref_forward(x, params))
    assert jnp.allclose(out, ref, atol=2e-4, rtol=2e-4), float(
        jnp.max(jnp.abs(out - ref)))

    print("KERNEL_OK")
</pallas_src>

<mosaic_0001>
module attributes {stable_mosaic.version = 11 : i64} {
  func.func @_context_kernel(%arg0: i32, %arg1: memref<2x16x144xf32, #tpu.memory_space<vmem>>, %arg2: memref<4x9x128xf32, #tpu.memory_space<vmem>>, %arg3: memref<2x128x144xf32, #tpu.memory_space<vmem>>, %arg4: memref<2x1x144xf32, #tpu.memory_space<vmem>>, %arg5: memref<2x1x144xf32, #tpu.memory_space<vmem>>, %arg6: memref<2x1x144xf32, #tpu.memory_space<vmem>>, %arg7: memref<2x128x128xf32, #tpu.memory_space<vmem>>, %arg8: memref<2x1x128xf32, #tpu.memory_space<vmem>>, %arg9: memref<2x1x128xf32, #tpu.memory_space<vmem>>, %arg10: memref<2x1x128xf32, #tpu.memory_space<vmem>>, %arg11: memref<2x16x128xf32, #tpu.memory_space<vmem>>, %arg12: memref<56x144xf32, #tpu.memory_space<vmem>>, %arg13: memref<56x144xf32, #tpu.memory_space<vmem>>) attributes {dimension_semantics = [#tpu.dimension_semantics<parallel>], iteration_bounds = array<i64: 2>, scalar_prefetch = 0 : i64, scratch_operands = 2 : i64, tpu.core_type = #tpu.core_type<tc>, window_params = [{transform_indices = @transform_0, window_bounds = array<i64: 2, 16, 144>}, {pipeline_mode = #tpu.pipeline_mode<synchronous>, transform_indices = @transform_1, window_bounds = array<i64: 4, 9, 128>}, {pipeline_mode = #tpu.pipeline_mode<synchronous>, transform_indices = @transform_2, window_bounds = array<i64: 2, 128, 144>}, {pipeline_mode = #tpu.pipeline_mode<synchronous>, transform_indices = @transform_3, window_bounds = array<i64: 2, 1, 144>}, {pipeline_mode = #tpu.pipeline_mode<synchronous>, transform_indices = @transform_4, window_bounds = array<i64: 2, 1, 144>}, {pipeline_mode = #tpu.pipeline_mode<synchronous>, transform_indices = @transform_5, window_bounds = array<i64: 2, 1, 144>}, {pipeline_mode = #tpu.pipeline_mode<synchronous>, transform_indices = @transform_6, window_bounds = array<i64: 2, 128, 128>}, {pipeline_mode = #tpu.pipeline_mode<synchronous>, transform_indices = @transform_7, window_bounds = array<i64: 2, 1, 128>}, {pipeline_mode = #tpu.pipeline_mode<synchronous>, transform_indices = @transform_8, window_bounds = array<i64: 2, 1, 128>}, {pipeline_mode = #tpu.pipeline_mode<synchronous>, transform_indices = @transform_9, window_bounds = array<i64: 2, 1, 128>}, {transform_indices = @transform_10, window_bounds = array<i64: 2, 16, 128>}]} {
    %cst = arith.constant 0.000000e+00 : f32
    %0 = vector.broadcast %cst : f32 to vector<8x144xf32>
    %c0 = arith.constant 0 : index
    %c0_0 = arith.constant 0 : index
    %1 = vector.load %arg12[%c0, %c0_0] : memref<56x144xf32, #tpu.memory_space<vmem>>, vector<8x144xf32>
    tpu.vector_store %arg12[%c0, %c0_0], %0 {strides = array<i32>} : memref<56x144xf32, #tpu.memory_space<vmem>>, vector<8x144xf32>,
    %cst_1 = arith.constant 0.000000e+00 : f32
    %2 = vector.broadcast %cst_1 : f32 to vector<8x144xf32>
    %c24 = arith.constant 24 : index
    %c0_2 = arith.constant 0 : index
    %3 = vector.load %arg12[%c24, %c0_2] : memref<56x144xf32, #tpu.memory_space<vmem>>, vector<8x144xf32>
    tpu.vector_store %arg12[%c24, %c0_2], %2 {strides = array<i32>} : memref<56x144xf32, #tpu.memory_space<vmem>>, vector<8x144xf32>,
    %cst_3 = arith.constant 0.000000e+00 : f32
    %4 = vector.broadcast %cst_3 : f32 to vector<8x144xf32>
    %c48 = arith.constant 48 : index
    %c0_4 = arith.constant 0 : index
    %5 = vector.load %arg12[%c48, %c0_4] : memref<56x144xf32, #tpu.memory_space<vmem>>, vector<8x144xf32>
    tpu.vector_store %arg12[%c48, %c0_4], %4 {strides = array<i32>} : memref<56x144xf32, #tpu.memory_space<vmem>>, vector<8x144xf32>,
    %cst_5 = arith.constant 0.000000e+00 : f32
    %6 = vector.broadcast %cst_5 : f32 to vector<8x144xf32>
    %c0_6 = arith.constant 0 : index
    %c0_7 = arith.constant 0 : index
    %7 = vector.load %arg13[%c0_6, %c0_7] : memref<56x144xf32, #tpu.memory_space<vmem>>, vector<8x144xf32>
    tpu.vector_store %arg13[%c0_6, %c0_7], %6 {strides = array<i32>} : memref<56x144xf32, #tpu.memory_space<vmem>>, vector<8x144xf32>,
    %cst_8 = arith.constant 0.000000e+00 : f32
    %8 = vector.broadcast %cst_8 : f32 to vector<8x144xf32>
    %c24_9 = arith.constant 24 : index
    %c0_10 = arith.constant 0 : index
    %9 = vector.load %arg13[%c24_9, %c0_10] : memref<56x144xf32, #tpu.memory_space<vmem>>, vector<8x144xf32>
    tpu.vector_store %arg13[%c24_9, %c0_10], %8 {strides = array<i32>} : memref<56x144xf32, #tpu.memory_space<vmem>>, vector<8x144xf32>,
    %cst_11 = arith.constant 0.000000e+00 : f32
    %10 = vector.broadcast %cst_11 : f32 to vector<8x144xf32>
    %c48_12 = arith.constant 48 : index
    %c0_13 = arith.constant 0 : index
    %11 = vector.load %arg13[%c48_12, %c0_13] : memref<56x144xf32, #tpu.memory_space<vmem>>, vector<8x144xf32>
    tpu.vector_store %arg13[%c48_12, %c0_13], %10 {strides = array<i32>} : memref<56x144xf32, #tpu.memory_space<vmem>>, vector<8x144xf32>,
    %c0_14 = arith.constant 0 : index
    %c0_15 = arith.constant 0 : index
    %c0_16 = arith.constant 0 : index
    %12 = vector.load %arg1[%c0_14, %c0_15, %c0_16] : memref<2x16x144xf32, #tpu.memory_space<vmem>>, vector<1x16x144xf32>
    %13 = vector.shape_cast %12 : vector<1x16x144xf32> to vector<16x144xf32>
    %c8 = arith.constant 8 : index
    %c0_17 = arith.constant 0 : index
    %14 = vector.load %arg12[%c8, %c0_17] : memref<56x144xf32, #tpu.memory_space<vmem>>, vector<16x144xf32>
    tpu.vector_store %arg12[%c8, %c0_17], %13 {strides = array<i32>} : memref<56x144xf32, #tpu.memory_space<vmem>>, vector<16x144xf32>,
    %c1 = arith.constant 1 : index
    %c0_18 = arith.constant 0 : index
    %c0_19 = arith.constant 0 : index
    %15 = vector.load %arg1[%c1, %c0_18, %c0_19] : memref<2x16x144xf32, #tpu.memory_space<vmem>>, vector<1x16x144xf32>
    %16 = vector.shape_cast %15 : vector<1x16x144xf32> to vector<16x144xf32>
    %c32 = arith.constant 32 : index
    %c0_20 = arith.constant 0 : index
    %17 = vector.load %arg12[%c32, %c0_20] : memref<56x144xf32, #tpu.memory_space<vmem>>, vector<16x144xf32>
    tpu.vector_store %arg12[%c32, %c0_20], %16 {strides = array<i32>} : memref<56x144xf32, #tpu.memory_space<vmem>>, vector<16x144xf32>,
    %c0_21 = arith.constant 0 : index
    %c0_22 = arith.constant 0 : index
    %c0_23 = arith.constant 0 : index
    %18 = vector.load %arg2[%c0_21, %c0_22, %c0_23] : memref<4x9x128xf32, #tpu.memory_space<vmem>>, vector<1x1x128xf32>
    %19 = vector.shape_cast %18 : vector<1x1x128xf32> to vector<128xf32>
    %c0_24 = arith.constant 0 : index
    %c1_25 = arith.constant 1 : index
    %c0_26 = arith.constant 0 : index
    %20 = vector.load %arg2[%c0_24, %c1_25, %c0_26] : memref<4x9x128xf32, #tpu.memory_space<vmem>>, vector<1x1x128xf32>
    %21 = vector.shape_cast %20 : vector<1x1x128xf32> to vector<128xf32>
    %c0_27 = arith.constant 0 : index
    %c2 = arith.constant 2 : index
    %c0_28 = arith.constant 0 : index
    %22 = vector.load %arg2[%c0_27, %c2, %c0_28] : memref<4x9x128xf32, #tpu.memory_space<vmem>>, vector<1x1x128xf32>
    %23 = vector.shape_cast %22 : vector<1x1x128xf32> to vector<128xf32>
    %c0_29 = arith.constant 0 : index
    %c3 = arith.constant 3 : index
    %c0_30 = arith.constant 0 : index
    %24 = vector.load %arg2[%c0_29, %c3, %c0_30] : memref<4x9x128xf32, #tpu.memory_space<vmem>>, vector<1x1x128xf32>
    %25 = vector.shape_cast %24 : vector<1x1x128xf32> to vector<128xf32>
    %c0_31 = arith.constant 0 : index
    %c4 = arith.constant 4 : index
    %c0_32 = arith.constant 0 : index
    %26 = vector.load %arg2[%c0_31, %c4, %c0_32] : memref<4x9x128xf32, #tpu.memory_space<vmem>>, vector<1x1x128xf32>
    %27 = vector.shape_cast %26 : vector<1x1x128xf32> to vector<128xf32>
    %c0_33 = arith.constant 0 : index
    %c5 = arith.constant 5 : index
    %c0_34 = arith.constant 0 : index
    %28 = vector.load %arg2[%c0_33, %c5, %c0_34] : memref<4x9x128xf32, #tpu.memory_space<vmem>>, vector<1x1x128xf32>
    %29 = vector.shape_cast %28 : vector<1x1x128xf32> to vector<128xf32>
    %c0_35 = arith.constant 0 : index
    %c6 = arith.constant 6 : index
    %c0_36 = arith.constant 0 : index
    %30 = vector.load %arg2[%c0_35, %c6, %c0_36] : memref<4x9x128xf32, #tpu.memory_space<vmem>>, vector<1x1x128xf32>
    %31 = vector.shape_cast %30 : vector<1x1x128xf32> to vector<128xf32>
    %c0_37 = arith.constant 0 : index
    %c7 = arith.constant 7 : index
    %c0_38 = arith.constant 0 : index
    %32 = vector.load %arg2[%c0_37, %c7, %c0_38] : memref<4x9x128xf32, #tpu.memory_space<vmem>>, vector<1x1x128xf32>
    %33 = vector.shape_cast %32 : vector<1x1x128xf32> to vector<128xf32>
    %c0_39 = arith.constant 0 : index
    %c8_40 = arith.constant 8 : index
    %c0_41 = arith.constant 0 : index
    %34 = vector.load %arg2[%c0_39, %c8_40, %c0_41] : memref<4x9x128xf32, #tpu.memory_space<vmem>>, vector<1x1x128xf32>
    %35 = vector.shape_cast %34 : vector<1x1x128xf32> to vector<128xf32>
    %cst_42 = arith.constant 0.000000e+00 : f32
    %36 = vector.broadcast %cst_42 : f32 to vector<16x128xf32>
    %cst_43 = arith.constant 0.000000e+00 : f32
    %37 = vector.broadcast %cst_43 : f32 to vector<16x128xf32>
    %c0_44 = arith.constant 0 : index
    %c0_45 = arith.constant 0 : index
    %38 = vector.load %arg12[%c0_44, %c0_45] : memref<56x144xf32, #tpu.memory_space<vmem>>, vector<56x128xf32>
    %39 = vector.extract_strided_slice %38 {offsets = [7, 0], sizes = [16, 128], strides = [1, 1]} : vector<56x128xf32> to vector<16x128xf32>
    %40 = vector.shape_cast %19 : vector<128xf32> to vector<1x128xf32>
    %41 = vector.broadcast %40 : vector<1x128xf32> to vector<16x128xf32>
    %42 = arith.mulf %39, %41 : vector<16x128xf32>
    %43 = arith.addf %36, %42 : vector<16x128xf32>
    %44 = vector.extract_strided_slice %38 {offsets = [8, 0], sizes = [16, 128], strides = [1, 1]} : vector<56x128xf32> to vector<16x128xf32>
    %45 = vector.shape_cast %25 : vector<128xf32> to vector<1x128xf32>
    %46 = vector.broadcast %45 : vector<1x128xf32> to vector<16x128xf32>
    %47 = arith.mulf %44, %46 : vector<16x128xf32>
    %48 = arith.addf %43, %47 : vector<16x128xf32>
    %49 = vector.extract_strided_slice %38 {offsets = [9, 0], sizes = [16, 128], strides = [1, 1]} : vector<56x128xf32> to vector<16x128xf32>
    %50 = vector.shape_cast %31 : vector<128xf32> to vector<1x128xf32>
    %51 = vector.broadcast %50 : vector<1x128xf32> to vector<16x128xf32>
    %52 = arith.mulf %49, %51 : vector<16x128xf32>
    %53 = arith.addf %48, %52 : vector<16x128xf32>
    %54 = vector.extract_strided_slice %38 {offsets = [31, 0], sizes = [16, 128], strides = [1, 1]} : vector<56x128xf32> to vector<16x128xf32>
    %55 = vector.shape_cast %19 : vector<128xf32> to vector<1x128xf32>
    %56 = vector.broadcast %55 : vector<1x128xf32> to vector<16x128xf32>
    %57 = arith.mulf %54, %56 : vector<16x128xf32>
    %58 = arith.addf %37, %57 : vector<16x128xf32>
    %59 = vector.extract_strided_slice %38 {offsets = [32, 0], sizes = [16, 128], strides = [1, 1]} : vector<56x128xf32> to vector<16x128xf32>
    %60 = vector.shape_cast %25 : vector<128xf32> to vector<1x128xf32>
    %61 = vector.broadcast %60 : vector<1x128xf32> to vector<16x128xf32>
    %62 = arith.mulf %59, %61 : vector<16x128xf32>
    %63 = arith.addf %58, %62 : vector<16x128xf32>
    %64 = vector.extract_strided_slice %38 {offsets = [33, 0], sizes = [16, 128], strides = [1, 1]} : vector<56x128xf32> to vector<16x128xf32>
    %65 = vector.shape_cast %31 : vector<128xf32> to vector<1x128xf32>
    %66 = vector.broadcast %65 : vector<1x128xf32> to vector<16x128xf32>
    %67 = arith.mulf %64, %66 : vector<16x128xf32>
    %68 = arith.addf %63, %67 : vector<16x128xf32>
    %c0_46 = arith.constant 0 : index
    %c8_47 = arith.constant 8 : index
    %69 = vector.load %arg12[%c0_46, %c8_47] : memref<56x144xf32, #tpu.memory_space<vmem>>, vector<56x128xf32>
    %70 = vector.extract_strided_slice %69 {offsets = [7, 0], sizes = [16, 128], strides = [1, 1]} : vector<56x128xf32> to vector<16x128xf32>
    %71 = vector.shape_cast %21 : vector<128xf32> to vector<1x128xf32>
    %72 = vector.broadcast %71 : vector<1x128xf32> to vector<16x128xf32>
    %73 = arith.mulf %70, %72 : vector<16x128xf32>
    %74 = arith.addf %53, %73 : vector<16x128xf32>
    %75 = vector.extract_strided_slice %69 {offsets = [8, 0], sizes = [16, 128], strides = [1, 1]} : vector<56x128xf32> to vector<16x128xf32>
    %76 = vector.shape_cast %27 : vector<128xf32> to vector<1x128xf32>
    %77 = vector.broadcast %76 : vector<1x128xf32> to vector<16x128xf32>
    %78 = arith.mulf %75, %77 : vector<16x128xf32>
    %79 = arith.addf %74, %78 : vector<16x128xf32>
    %80 = vector.extract_strided_slice %69 {offsets = [9, 0], sizes = [16, 128], strides = [1, 1]} : vector<56x128xf32> to vector<16x128xf32>
    %81 = vector.shape_cast %33 : vector<128xf32> to vector<1x128xf32>
    %82 = vector.broadcast %81 : vector<1x128xf32> to vector<16x128xf32>
    %83 = arith.mulf %80, %82 : vector<16x128xf32>
    %84 = arith.addf %79, %83 : vector<16x128xf32>
    %85 = vector.extract_strided_slice %69 {offsets = [31, 0], sizes = [16, 128], strides = [1, 1]} : vector<56x128xf32> to vector<16x128xf32>
    %86 = vector.shape_cast %21 : vector<128xf32> to vector<1x128xf32>
    %87 = vector.broadcast %86 : vector<1x128xf32> to vector<16x128xf32>
    %88 = arith.mulf %85, %87 : vector<16x128xf32>
    %89 = arith.addf %68, %88 : vector<16x128xf32>
    %90 = vector.extract_strided_slice %69 {offsets = [32, 0], sizes = [16, 128], strides = [1, 1]} : vector<56x128xf32> to vector<16x128xf32>
    %91 = vector.shape_cast %27 : vector<128xf32> to vector<1x128xf32>
    %92 = vector.broadcast %91 : vector<1x128xf32> to vector<16x128xf32>
    %93 = arith.mulf %90, %92 : vector<16x128xf32>
    %94 = arith.addf %89, %93 : vector<16x128xf32>
    %95 = vector.extract_strided_slice %69 {offsets = [33, 0], sizes = [16, 128], strides = [1, 1]} : vector<56x128xf32> to vector<16x128xf32>
    %96 = vector.shape_cast %33 : vector<128xf32> to vector<1x128xf32>
    %97 = vector.broadcast %96 : vector<1x128xf32> to vector<16x128xf32>
    %98 = arith.mulf %95, %97 : vector<16x128xf32>
    %99 = arith.addf %94, %98 : vector<16x128xf32>
    %c0_48 = arith.constant 0 : index
    %c16 = arith.constant 16 : index
    %100 = vector.load %arg12[%c0_48, %c16] : memref<56x144xf32, #tpu.memory_space<vmem>>, vector<56x128xf32>
    %101 = vector.extract_strided_slice %100 {offsets = [7, 0], sizes = [16, 128], strides = [1, 1]} : vector<56x128xf32> to vector<16x128xf32>
    %102 = vector.shape_cast %23 : vector<128xf32> to vector<1x128xf32>
    %103 = vector.broadcast %102 : vector<1x128xf32> to vector<16x128xf32>
    %104 = arith.mulf %101, %103 : vector<16x128xf32>
    %105 = arith.addf %84, %104 : vector<16x128xf32>
    %106 = vector.extract_strided_slice %100 {offsets = [8, 0], sizes = [16, 128], strides = [1, 1]} : vector<56x128xf32> to vector<16x128xf32>
    %107 = vector.shape_cast %29 : vector<128xf32> to vector<1x128xf32>
    %108 = vector.broadcast %107 : vector<1x128xf32> to vector<16x128xf32>
    %109 = arith.mulf %106, %108 : vector<16x128xf32>
    %110 = arith.addf %105, %109 : vector<16x128xf32>
    %111 = vector.extract_strided_slice %100 {offsets = [9, 0], sizes = [16, 128], strides = [1, 1]} : vector<56x128xf32> to vector<16x128xf32>
    %112 = vector.shape_cast %35 : vector<128xf32> to vector<1x128xf32>
    %113 = vector.broadcast %112 : vector<1x128xf32> to vector<16x128xf32>
    %114 = arith.mulf %111, %113 : vector<16x128xf32>
    %115 = arith.addf %110, %114 : vector<16x128xf32>
    %116 = vector.extract_strided_slice %100 {offsets = [31, 0], sizes = [16, 128], strides = [1, 1]} : vector<56x128xf32> to vector<16x128xf32>
    %117 = vector.shape_cast %23 : vector<128xf32> to vector<1x128xf32>
    %118 = vector.broadcast %117 : vector<1x128xf32> to vector<16x128xf32>
    %119 = arith.mulf %116, %118 : vector<16x128xf32>
    %120 = arith.addf %99, %119 : vector<16x128xf32>
    %121 = vector.extract_strided_slice %100 {offsets = [32, 0], sizes = [16, 128], strides = [1, 1]} : vector<56x128xf32> to vector<16x128xf32>
    %122 = vector.shape_cast %29 : vector<128xf32> to vector<1x128xf32>
    %123 = vector.broadcast %122 : vector<1x128xf32> to vector<16x128xf32>
    %124 = arith.mulf %121, %123 : vector<16x128xf32>
    %125 = arith.addf %120, %124 : vector<16x128xf32>
    %126 = vector.extract_strided_slice %100 {offsets = [33, 0], sizes = [16, 128], strides = [1, 1]} : vector<56x128xf32> to vector<16x128xf32>
    %127 = vector.shape_cast %35 : vector<128xf32> to vector<1x128xf32>
    %128 = vector.broadcast %127 : vector<1x128xf32> to vector<16x128xf32>
    %129 = arith.mulf %126, %128 : vector<16x128xf32>
    %130 = arith.addf %125, %129 : vector<16x128xf32>
    %131 = tpu.concatenate %115, %130 in 0 : vector<16x128xf32>, vector<16x128xf32> -> vector<32x128xf32>
    %c0_49 = arith.constant 0 : index
    %c0_50 = arith.constant 0 : index
    %c0_51 = arith.constant 0 : index
    %132 = vector.load %arg3[%c0_49, %c0_50, %c0_51] : memref<2x128x144xf32, #tpu.memory_space<vmem>>, vector<1x128x144xf32>
    %133 = vector.shape_cast %132 : vector<1x128x144xf32> to vector<128x144xf32>
    %c0_52 = arith.constant 0 : index
    %c0_53 = arith.constant 0 : index
    %c0_54 = arith.constant 0 : index
    %134 = vector.load %arg4[%c0_52, %c0_53, %c0_54] : memref<2x1x144xf32, #tpu.memory_space<vmem>>, vector<1x1x144xf32>
    %135 = vector.shape_cast %134 : vector<1x1x144xf32> to vector<1x144xf32>
    %c0_55 = arith.constant 0 : index
    %c0_56 = arith.constant 0 : index
    %c0_57 = arith.constant 0 : index
    %136 = vector.load %arg5[%c0_55, %c0_56, %c0_57] : memref<2x1x144xf32, #tpu.memory_space<vmem>>, vector<1x1x144xf32>
    %137 = vector.shape_cast %136 : vector<1x1x144xf32> to vector<1x144xf32>
    %c0_58 = arith.constant 0 : index
    %c0_59 = arith.constant 0 : index
    %c0_60 = arith.constant 0 : index
    %138 = vector.load %arg6[%c0_58, %c0_59, %c0_60] : memref<2x1x144xf32, #tpu.memory_space<vmem>>, vector<1x1x144xf32>
    %139 = vector.shape_cast %138 : vector<1x1x144xf32> to vector<1x144xf32>
    %cst_61 = arith.constant dense<0.000000e+00> : vector<32x144xf32>
    %140 = tpu.matmul %131, %133, %cst_61 {dimension_numbers = #tpu.dot_dimension_numbers<[1], [0], [0], [1], [0, 0, 1, 1], [], []>} : vector<32x128xf32>, vector<128x144xf32>, vector<32x144xf32> -> vector<32x144xf32>
    %141 = vector.broadcast %135 : vector<1x144xf32> to vector<32x144xf32>
    %142 = arith.addf %140, %141 : vector<32x144xf32>
    %cst_62 = arith.constant 0.000000e+00 : f32
    %143 = vector.broadcast %cst_62 : f32 to vector<32x144xf32>
    %144 = arith.maximumf %142, %143 : vector<32x144xf32>
    %145 = vector.broadcast %137 : vector<1x144xf32> to vector<32x144xf32>
    %146 = arith.mulf %144, %145 : vector<32x144xf32>
    %147 = vector.broadcast %139 : vector<1x144xf32> to vector<32x144xf32>
    %148 = arith.addf %146, %147 : vector<32x144xf32>
    %cst_63 = arith.constant 0.000000e+00 : f32
    %149 = vector.broadcast %cst_63 : f32 to vector<32x144xf32>
    %150 = arith.maximumf %148, %149 : vector<32x144xf32>
    %151 = vector.extract_strided_slice %150 {offsets = [0, 0], sizes = [16, 144], strides = [1, 1]} : vector<32x144xf32> to vector<16x144xf32>
    %c8_64 = arith.constant 8 : index
    %c0_65 = arith.constant 0 : index
    %152 = vector.load %arg13[%c8_64, %c0_65] : memref<56x144xf32, #tpu.memory_space<vmem>>, vector<16x144xf32>
    tpu.vector_store %arg13[%c8_64, %c0_65], %151 {strides = array<i32>} : memref<56x144xf32, #tpu.memory_space<vmem>>, vector<16x144xf32>,
    %153 = vector.extract_strided_slice %150 {offsets = [16, 0], sizes = [16, 144], strides = [1, 1]} : vector<32x144xf32> to vector<16x144xf32>
    %c32_66 = arith.constant 32 : index
    %c0_67 = arith.constant 0 : index
    %154 = vector.load %arg13[%c32_66, %c0_67] : memref<56x144xf32, #tpu.memory_space<vmem>>, vector<16x144xf32>
    tpu.vector_store %arg13[%c32_66, %c0_67], %153 {strides = array<i32>} : memref<56x144xf32, #tpu.memory_space<vmem>>, vector<16x144xf32>,
    %c1_68 = arith.constant 1 : index
    %c0_69 = arith.constant 0 : index
    %c0_70 = arith.constant 0 : index
    %155 = vector.load %arg2[%c1_68, %c0_69, %c0_70] : memref<4x9x128xf32, #tpu.memory_space<vmem>>, vector<1x1x128xf32>
    %156 = vector.shape_cast %155 : vector<1x1x128xf32> to vector<128xf32>
    %c1_71 = arith.constant 1 : index
    %c1_72 = arith.constant 1 : index
    %c0_73 = arith.constant 0 : index
    %157 = vector.load %arg2[%c1_71, %c1_72, %c0_73] : memref<4x9x128xf32, #tpu.memory_space<vmem>>, vector<1x1x128xf32>
    %158 = vector.shape_cast %157 : vector<1x1x128xf32> to vector<128xf32>
    %c1_74 = arith.constant 1 : index
    %c2_75 = arith.constant 2 : index
    %c0_76 = arith.constant 0 : index
    %159 = vector.load %arg2[%c1_74, %c2_75, %c0_76] : memref<4x9x128xf32, #tpu.memory_space<vmem>>, vector<1x1x128xf32>
    %160 = vector.shape_cast %159 : vector<1x1x128xf32> to vector<128xf32>
    %c1_77 = arith.constant 1 : index
    %c3_78 = arith.constant 3 : index
    %c0_79 = arith.constant 0 : index
    %161 = vector.load %arg2[%c1_77, %c3_78, %c0_79] : memref<4x9x128xf32, #tpu.memory_space<vmem>>, vector<1x1x128xf32>
    %162 = vector.shape_cast %161 : vector<1x1x128xf32> to vector<128xf32>
    %c1_80 = arith.constant 1 : index
    %c4_81 = arith.constant 4 : index
    %c0_82 = arith.constant 0 : index
    %163 = vector.load %arg2[%c1_80, %c4_81, %c0_82] : memref<4x9x128xf32, #tpu.memory_space<vmem>>, vector<1x1x128xf32>
    %164 = vector.shape_cast %163 : vector<1x1x128xf32> to vector<128xf32>
    %c1_83 = arith.constant 1 : index
    %c5_84 = arith.constant 5 : index
    %c0_85 = arith.constant 0 : index
    %165 = vector.load %arg2[%c1_83, %c5_84, %c0_85] : memref<4x9x128xf32, #tpu.memory_space<vmem>>, vector<1x1x128xf32>
    %166 = vector.shape_cast %165 : vector<1x1x128xf32> to vector<128xf32>
    %c1_86 = arith.constant 1 : index
    %c6_87 = arith.constant 6 : index
    %c0_88 = arith.constant 0 : index
    %167 = vector.load %arg2[%c1_86, %c6_87, %c0_88] : memref<4x9x128xf32, #tpu.memory_space<vmem>>, vector<1x1x128xf32>
    %168 = vector.shape_cast %167 : vector<1x1x128xf32> to vector<128xf32>
    %c1_89 = arith.constant 1 : index
    %c7_90 = arith.constant 7 : index
    %c0_91 = arith.constant 0 : index
    %169 = vector.load %arg2[%c1_89, %c7_90, %c0_91] : memref<4x9x128xf32, #tpu.memory_space<vmem>>, vector<1x1x128xf32>
    %170 = vector.shape_cast %169 : vector<1x1x128xf32> to vector<128xf32>
    %c1_92 = arith.constant 1 : index
    %c8_93 = arith.constant 8 : index
    %c0_94 = arith.constant 0 : index
    %171 = vector.load %arg2[%c1_92, %c8_93, %c0_94] : memref<4x9x128xf32, #tpu.memory_space<vmem>>, vector<1x1x128xf32>
    %172 = vector.shape_cast %171 : vector<1x1x128xf32> to vector<128xf32>
    %c2_95 = arith.constant 2 : index
    %c0_96 = arith.constant 0 : index
    %c0_97 = arith.constant 0 : index
    %173 = vector.load %arg2[%c2_95, %c0_96, %c0_97] : memref<4x9x128xf32, #tpu.memory_space<vmem>>, vector<1x1x128xf32>
    %174 = vector.shape_cast %173 : vector<1x1x128xf32> to vector<128xf32>
    %c2_98 = arith.constant 2 : index
    %c1_99 = arith.constant 1 : index
    %c0_100 = arith.constant 0 : index
    %175 = vector.load %arg2[%c2_98, %c1_99, %c0_100] : memref<4x9x128xf32, #tpu.memory_space<vmem>>, vector<1x1x128xf32>
    %176 = vector.shape_cast %175 : vector<1x1x128xf32> to vector<128xf32>
    %c2_101 = arith.constant 2 : index
    %c2_102 = arith.constant 2 : index
    %c0_103 = arith.constant 0 : index
    %177 = vector.load %arg2[%c2_101, %c2_102, %c0_103] : memref<4x9x128xf32, #tpu.memory_space<vmem>>, vector<1x1x128xf32>
    %178 = vector.shape_cast %177 : vector<1x1x128xf32> to vector<128xf32>
    %c2_104 = arith.constant 2 : index
    %c3_105 = arith.constant 3 : index
    %c0_106 = arith.constant 0 : index
    %179 = vector.load %arg2[%c2_104, %c3_105, %c0_106] : memref<4x9x128xf32, #tpu.memory_space<vmem>>, vector<1x1x128xf32>
    %180 = vector.shape_cast %179 : vector<1x1x128xf32> to vector<128xf32>
    %c2_107 = arith.constant 2 : index
    %c4_108 = arith.constant 4 : index
    %c0_109 = arith.constant 0 : index
    %181 = vector.load %arg2[%c2_107, %c4_108, %c0_109] : memref<4x9x128xf32, #tpu.memory_space<vmem>>, vector<1x1x128xf32>
    %182 = vector.shape_cast %181 : vector<1x1x128xf32> to vector<128xf32>
    %c2_110 = arith.constant 2 : index
    %c5_111 = arith.constant 5 : index
    %c0_112 = arith.constant 0 : index
    %183 = vector.load %arg2[%c2_110, %c5_111, %c0_112] : memref<4x9x128xf32, #tpu.memory_space<vmem>>, vector<1x1x128xf32>
    %184 = vector.shape_cast %183 : vector<1x1x128xf32> to vector<128xf32>
    %c2_113 = arith.constant 2 : index
    %c6_114 = arith.constant 6 : index
    %c0_115 = arith.constant 0 : index
    %185 = vector.load %arg2[%c2_113, %c6_114, %c0_115] : memref<4x9x128xf32, #tpu.memory_space<vmem>>, vector<1x1x128xf32>
    %186 = vector.shape_cast %185 : vector<1x1x128xf32> to vector<128xf32>
    %c2_116 = arith.constant 2 : index
    %c7_117 = arith.constant 7 : index
    %c0_118 = arith.constant 0 : index
    %187 = vector.load %arg2[%c2_116, %c7_117, %c0_118] : memref<4x9x128xf32, #tpu.memory_space<vmem>>, vector<1x1x128xf32>
    %188 = vector.shape_cast %187 : vector<1x1x128xf32> to vector<128xf32>
    %c2_119 = arith.constant 2 : index
    %c8_120 = arith.constant 8 : index
    %c0_121 = arith.constant 0 : index
    %189 = vector.load %arg2[%c2_119, %c8_120, %c0_121] : memref<4x9x128xf32, #tpu.memory_space<vmem>>, vector<1x1x128xf32>
    %190 = vector.shape_cast %189 : vector<1x1x128xf32> to vector<128xf32>
    %cst_122 = arith.constant 0.000000e+00 : f32
    %191 = vector.broadcast %cst_122 : f32 to vector<16x128xf32>
    %cst_123 = arith.constant 0.000000e+00 : f32
    %192 = vector.broadcast %cst_123 : f32 to vector<16x128xf32>
    %cst_124 = arith.constant 0.000000e+00 : f32
    %193 = vector.broadcast %cst_124 : f32 to vector<16x128xf32>
    %cst_125 = arith.constant 0.000000e+00 : f32
    %194 = vector.broadcast %cst_125 : f32 to vector<16x128xf32>
    %c0_126 = arith.constant 0 : index
    %c0_127 = arith.constant 0 : index
    %195 = vector.load %arg13[%c0_126, %c0_127] : memref<56x144xf32, #tpu.memory_space<vmem>>, vector<56x128xf32>
    %196 = vector.extract_strided_slice %195 {offsets = [7, 0], sizes = [16, 128], strides = [1, 1]} : vector<56x128xf32> to vector<16x128xf32>
    %197 = vector.shape_cast %156 : vector<128xf32> to vector<1x128xf32>
    %198 = vector.broadcast %197 : vector<1x128xf32> to vector<16x128xf32>
    %199 = arith.mulf %196, %198 : vector<16x128xf32>
    %200 = arith.addf %191, %199 : vector<16x128xf32>
    %201 = vector.shape_cast %174 : vector<128xf32> to vector<1x128xf32>
    %202 = vector.broadcast %201 : vector<1x128xf32> to vector<16x128xf32>
    %203 = arith.mulf %196, %202 : vector<16x128xf32>
    %204 = arith.addf %193, %203 : vector<16x128xf32>
    %205 = vector.extract_strided_slice %195 {offsets = [8, 0], sizes = [16, 128], strides = [1, 1]} : vector<56x128xf32> to vector<16x128xf32>
    %206 = vector.shape_cast %162 : vector<128xf32> to vector<1x128xf32>
    %207 = vector.broadcast %206 : vector<1x128xf32> to vector<16x128xf32>
    %208 = arith.mulf %205, %207 : vector<16x128xf32>
    %209 = arith.addf %200, %208 : vector<16x128xf32>
    %210 = vector.shape_cast %180 : vector<128xf32> to vector<1x128xf32>
    %211 = vector.broadcast %210 : vector<1x128xf32> to vector<16x128xf32>
    %212 = arith.mulf %205, %211 : vector<16x128xf32>
    %213 = arith.addf %204, %212 : vector<16x128xf32>
    %214 = vector.extract_strided_slice %195 {offsets = [9, 0], sizes = [16, 128], strides = [1, 1]} : vector<56x128xf32> to vector<16x128xf32>
    %215 = vector.shape_cast %168 : vector<128xf32> to vector<1x128xf32>
    %216 = vector.broadcast %215 : vector<1x128xf32> to vector<16x128xf32>
    %217 = arith.mulf %214, %216 : vector<16x128xf32>
    %218 = arith.addf %209, %217 : vector<16x128xf32>
    %219 = vector.shape_cast %186 : vector<128xf32> to vector<1x128xf32>
    %220 = vector.broadcast %219 : vector<1x128xf32> to vector<16x128xf32>
    %221 = arith.mulf %214, %220 : vector<16x128xf32>
    %222 = arith.addf %213, %221 : vector<16x128xf32>
    %223 = vector.extract_strided_slice %195 {offsets = [31, 0], sizes = [16, 128], strides = [1, 1]} : vector<56x128xf32> to vector<16x128xf32>
    %224 = vector.shape_cast %156 : vector<128xf32> to vector<1x128xf32>
    %225 = vector.broadcast %224 : vector<1x128xf32> to vector<16x128xf32>
    %226 = arith.mulf %223, %225 : vector<16x128xf32>
    %227 = arith.addf %192, %226 : vector<16x128xf32>
    %228 = vector.shape_cast %174 : vector<128xf32> to vector<1x128xf32>
    %229 = vector.broadcast %228 : vector<1x128xf32> to vector<16x128xf32>
    %230 = arith.mulf %223, %229 : vector<16x128xf32>
    %231 = arith.addf %194, %230 : vector<16x128xf32>
    %232 = vector.extract_strided_slice %195 {offsets = [32, 0], sizes = [16, 128], strides = [1, 1]} : vector<56x128xf32> to vector<16x128xf32>
    %233 = vector.shape_cast %162 : vector<128xf32> to vector<1x128xf32>
    %234 = vector.broadcast %233 : vector<1x128xf32> to vector<16x128xf32>
    %235 = arith.mulf %232, %234 : vector<16x128xf32>
    %236 = arith.addf %227, %235 : vector<16x128xf32>
    %237 = vector.shape_cast %180 : vector<128xf32> to vector<1x128xf32>
    %238 = vector.broadcast %237 : vector<1x128xf32> to vector<16x128xf32>
    %239 = arith.mulf %232, %238 : vector<16x128xf32>
    %240 = arith.addf %231, %239 : vector<16x128xf32>
    %241 = vector.extract_strided_slice %195 {offsets = [33, 0], sizes = [16, 128], strides = [1, 1]} : vector<56x128xf32> to vector<16x128xf32>
    %242 = vector.shape_cast %168 : vector<128xf32> to vector<1x128xf32>
    %243 = vector.broadcast %242 : vector<1x128xf32> to vector<16x128xf32>
    %244 = arith.mulf %241, %243 : vector<16x128xf32>
    %245 = arith.addf %236, %244 : vector<16x128xf32>
    %246 = vector.shape_cast %186 : vector<128xf32> to vector<1x128xf32>
    %247 = vector.broadcast %246 : vector<1x128xf32> to vector<16x128xf32>
    %248 = arith.mulf %241, %247 : vector<16x128xf32>
    %249 = arith.addf %240, %248 : vector<16x128xf32>
    %c0_128 = arith.constant 0 : index
    %c8_129 = arith.constant 8 : index
    %250 = vector.load %arg13[%c0_128, %c8_129] : memref<56x144xf32, #tpu.memory_space<vmem>>, vector<56x128xf32>
    %251 = vector.extract_strided_slice %250 {offsets = [7, 0], sizes = [16, 128], strides = [1, 1]} : vector<56x128xf32> to vector<16x128xf32>
    %252 = vector.shape_cast %158 : vector<128xf32> to vector<1x128xf32>
    %253 = vector.broadcast %252 : vector<1x128xf32> to vector<16x128xf32>
    %254 = arith.mulf %251, %253 : vector<16x128xf32>
    %255 = arith.addf %218, %254 : vector<16x128xf32>
    %256 = vector.shape_cast %176 : vector<128xf32> to vector<1x128xf32>
    %257 = vector.broadcast %256 : vector<1x128xf32> to vector<16x128xf32>
    %258 = arith.mulf %251, %257 : vector<16x128xf32>
    %259 = arith.addf %222, %258 : vector<16x128xf32>
    %260 = vector.extract_strided_slice %250 {offsets = [8, 0], sizes = [16, 128], strides = [1, 1]} : vector<56x128xf32> to vector<16x128xf32>
    %261 = vector.shape_cast %164 : vector<128xf32> to vector<1x128xf32>
    %262 = vector.broadcast %261 : vector<1x128xf32> to vector<16x128xf32>
    %263 = arith.mulf %260, %262 : vector<16x128xf32>
    %264 = arith.addf %255, %263 : vector<16x128xf32>
    %265 = vector.shape_cast %182 : vector<128xf32> to vector<1x128xf32>
    %266 = vector.broadcast %265 : vector<1x128xf32> to vector<16x128xf32>
    %267 = arith.mulf %260, %266 : vector<16x128xf32>
    %268 = arith.addf %259, %267 : vector<16x128xf32>
    %269 = vector.extract_strided_slice %250 {offsets = [9, 0], sizes = [16, 128], strides = [1, 1]} : vector<56x128xf32> to vector<16x128xf32>
    %270 = vector.shape_cast %170 : vector<128xf32> to vector<1x128xf32>
    %271 = vector.broadcast %270 : vector<1x128xf32> to vector<16x128xf32>
    %272 = arith.mulf %269, %271 : vector<16x128xf32>
    %273 = arith.addf %264, %272 : vector<16x128xf32>
    %274 = vector.shape_cast %188 : vector<128xf32> to vector<1x128xf32>
    %275 = vector.broadcast %274 : vector<1x128xf32> to vector<16x128xf32>
    %276 = arith.mulf %269, %275 : vector<16x128xf32>
    %277 = arith.addf %268, %276 : vector<16x128xf32>
    %278 = vector.extract_strided_slice %250 {offsets = [31, 0], sizes = [16, 128], strides = [1, 1]} : vector<56x128xf32> to vector<16x128xf32>
    %279 = vector.shape_cast %158 : vector<128xf32> to vector<1x128xf32>
    %280 = vector.broadcast %279 : vector<1x128xf32> to vector<16x128xf32>
    %281 = arith.mulf %278, %280 : vector<16x128xf32>
    %282 = arith.addf %245, %281 : vector<16x128xf32>
    %283 = vector.shape_cast %176 : vector<128xf32> to vector<1x128xf32>
    %284 = vector.broadcast %283 : vector<1x128xf32> to vector<16x128xf32>
    %285 = arith.mulf %278, %284 : vector<16x128xf32>
    %286 = arith.addf %249, %285 : vector<16x128xf32>
    %287 = vector.extract_strided_slice %250 {offsets = [32, 0], sizes = [16, 128], strides = [1, 1]} : vector<56x128xf32> to vector<16x128xf32>
    %288 = vector.shape_cast %164 : vector<128xf32> to vector<1x128xf32>
    %289 = vector.broadcast %288 : vector<1x128xf32> to vector<16x128xf32>
    %290 = arith.mulf %287, %289 : vector<16x128xf32>
    %291 = arith.addf %282, %290 : vector<16x128xf32>
    %292 = vector.shape_cast %182 : vector<128xf32> to vector<1x128xf32>
    %293 = vector.broadcast %292 : vector<1x128xf32> to vector<16x128xf32>
    %294 = arith.mulf %287, %293 : vector<16x128xf32>
    %295 = arith.addf %286, %294 : vector<16x128xf32>
    %296 = vector.extract_strided_slice %250 {offsets = [33, 0], sizes = [16, 128], strides = [1, 1]} : vector<56x128xf32> to vector<16x128xf32>
    %297 = vector.shape_cast %170 : vector<128xf32> to vector<1x128xf32>
    %298 = vector.broadcast %297 : vector<1x128xf32> to vector<16x128xf32>
    %299 = arith.mulf %296, %298 : vector<16x128xf32>
    %300 = arith.addf %291, %299 : vector<16x128xf32>
    %301 = vector.shape_cast %188 : vector<128xf32> to vector<1x128xf32>
    %302 = vector.broadcast %301 : vector<1x128xf32> to vector<16x128xf32>
    %303 = arith.mulf %296, %302 : vector<16x128xf32>
    %304 = arith.addf %295, %303 : vector<16x128xf32>
    %c0_130 = arith.constant 0 : index
    %c16_131 = arith.constant 16 : index
    %305 = vector.load %arg13[%c0_130, %c16_131] : memref<56x144xf32, #tpu.memory_space<vmem>>, vector<56x128xf32>
    %306 = vector.extract_strided_slice %305 {offsets = [7, 0], sizes = [16, 128], strides = [1, 1]} : vector<56x128xf32> to vector<16x128xf32>
    %307 = vector.shape_cast %160 : vector<128xf32> to vector<1x128xf32>
    %308 = vector.broadcast %307 : vector<1x128xf32> to vector<16x128xf32>
    %309 = arith.mulf %306, %308 : vector<16x128xf32>
    %310 = arith.addf %273, %309 : vector<16x128xf32>
    %311 = vector.shape_cast %178 : vector<128xf32> to vector<1x128xf32>
    %312 = vector.broadcast %311 : vector<1x128xf32> to vector<16x128xf32>
    %313 = arith.mulf %306, %312 : vector<16x128xf32>
    %314 = arith.addf %277, %313 : vector<16x128xf32>
    %315 = vector.extract_strided_slice %305 {offsets = [8, 0], sizes = [16, 128], strides = [1, 1]} : vector<56x128xf32> to vector<16x128xf32>
    %316 = vector.shape_cast %166 : vector<128xf32> to vector<1x128xf32>
    %317 = vector.broadcast %316 : vector<1x128xf32> to vector<16x128xf32>
    %318 = arith.mulf %315, %317 : vector<16x128xf32>
    %319 = arith.addf %310, %318 : vector<16x128xf32>
    %320 = vector.shape_cast %184 : vector<128xf32> to vector<1x128xf32>
    %321 = vector.broadcast %320 : vector<1x128xf32> to vector<16x128xf32>
    %322 = arith.mulf %315, %321 : vector<16x128xf32>
    %323 = arith.addf %314, %322 : vector<16x128xf32>
    %324 = vector.extract_strided_slice %305 {offsets = [9, 0], sizes = [16, 128], strides = [1, 1]} : vector<56x128xf32> to vector<16x128xf32>
    %325 = vector.shape_cast %172 : vector<128xf32> to vector<1x128xf32>
    %326 = vector.broadcast %325 : vector<1x128xf32> to vector<16x128xf32>
    %327 = arith.mulf %324, %326 : vector<16x128xf32>
    %328 = arith.addf %319, %327 : vector<16x128xf32>
    %329 = vector.shape_cast %190 : vector<128xf32> to vector<1x128xf32>
    %330 = vector.broadcast %329 : vector<1x128xf32> to vector<16x128xf32>
    %331 = arith.mulf %324, %330 : vector<16x128xf32>
    %332 = arith.addf %323, %331 : vector<16x128xf32>
    %333 = vector.extract_strided_slice %305 {offsets = [31, 0], sizes = [16, 128], strides = [1, 1]} : vector<56x128xf32> to vector<16x128xf32>
    %334 = vector.shape_cast %160 : vector<128xf32> to vector<1x128xf32>
    %335 = vector.broadcast %334 : vector<1x128xf32> to vector<16x128xf32>
    %336 = arith.mulf %333, %335 : vector<16x128xf32>
    %337 = arith.addf %300, %336 : vector<16x128xf32>
    %338 = vector.shape_cast %178 : vector<128xf32> to vector<1x128xf32>
    %339 = vector.broadcast %338 : vector<1x128xf32> to vector<16x128xf32>
    %340 = arith.mulf %333, %339 : vector<16x128xf32>
    %341 = arith.addf %304, %340 : vector<16x128xf32>
    %342 = vector.extract_strided_slice %305 {offsets = [32, 0], sizes = [16, 128], strides = [1, 1]} : vector<56x128xf32> to vector<16x128xf32>
    %343 = vector.shape_cast %166 : vector<128xf32> to vector<1x128xf32>
    %344 = vector.broadcast %343 : vector<1x128xf32> to vector<16x128xf32>
    %345 = arith.mulf %342, %344 : vector<16x128xf32>
    %346 = arith.addf %337, %345 : vector<16x128xf32>
    %347 = vector.shape_cast %184 : vector<128xf32> to vector<1x128xf32>
    %348 = vector.broadcast %347 : vector<1x128xf32> to vector<16x128xf32>
    %349 = arith.mulf %342, %348 : vector<16x128xf32>
    %350 = arith.addf %341, %349 : vector<16x128xf32>
    %351 = vector.extract_strided_slice %305 {offsets = [33, 0], sizes = [16, 128], strides = [1, 1]} : vector<56x128xf32> to vector<16x128xf32>
    %352 = vector.shape_cast %172 : vector<128xf32> to vector<1x128xf32>
    %353 = vector.broadcast %352 : vector<1x128xf32> to vector<16x128xf32>
    %354 = arith.mulf %351, %353 : vector<16x128xf32>
    %355 = arith.addf %346, %354 : vector<16x128xf32>
    %356 = vector.shape_cast %190 : vector<128xf32> to vector<1x128xf32>
    %357 = vector.broadcast %356 : vector<1x128xf32> to vector<16x128xf32>
    %358 = arith.mulf %351, %357 : vector<16x128xf32>
    %359 = arith.addf %350, %358 : vector<16x128xf32>
    %360 = tpu.concatenate %328, %355 in 0 : vector<16x128xf32>, vector<16x128xf32> -> vector<32x128xf32>
    %361 = tpu.concatenate %332, %359 in 0 : vector<16x128xf32>, vector<16x128xf32> -> vector<32x128xf32>
    %c0_132 = arith.constant 0 : index
    %c0_133 = arith.constant 0 : index
    %c0_134 = arith.constant 0 : index
    %362 = vector.load %arg7[%c0_132, %c0_133, %c0_134] : memref<2x128x128xf32, #tpu.memory_space<vmem>>, vector<1x128x128xf32>
    %363 = vector.shape_cast %362 : vector<1x128x128xf32> to vector<128x128xf32>
    %c0_135 = arith.constant 0 : index
    %c0_136 = arith.constant 0 : index
    %c0_137 = arith.constant 0 : index
    %364 = vector.load %arg8[%c0_135, %c0_136, %c0_137] : memref<2x1x128xf32, #tpu.memory_space<vmem>>, vector<1x1x128xf32>
    %365 = vector.shape_cast %364 : vector<1x1x128xf32> to vector<1x128xf32>
    %c0_138 = arith.constant 0 : index
    %c0_139 = arith.constant 0 : index
    %c0_140 = arith.constant 0 : index
    %366 = vector.load %arg9[%c0_138, %c0_139, %c0_140] : memref<2x1x128xf32, #tpu.memory_space<vmem>>, vector<1x1x128xf32>
    %367 = vector.shape_cast %366 : vector<1x1x128xf32> to vector<1x128xf32>
    %c0_141 = arith.constant 0 : index
    %c0_142 = arith.constant 0 : index
    %c0_143 = arith.constant 0 : index
    %368 = vector.load %arg10[%c0_141, %c0_142, %c0_143] : memref<2x1x128xf32, #tpu.memory_space<vmem>>, vector<1x1x128xf32>
    %369 = vector.shape_cast %368 : vector<1x1x128xf32> to vector<1x128xf32>
    %cst_144 = arith.constant dense<0.000000e+00> : vector<32x128xf32>
    %370 = tpu.matmul %360, %363, %cst_144 {dimension_numbers = #tpu.dot_dimension_numbers<[1], [0], [0], [1], [0, 0, 1, 1], [], []>} : vector<32x128xf32>, vector<128x128xf32>, vector<32x128xf32> -> vector<32x128xf32>
    %371 = vector.broadcast %365 : vector<1x128xf32> to vector<32x128xf32>
    %372 = arith.addf %370, %371 : vector<32x128xf32>
    %cst_145 = arith.constant 0.000000e+00 : f32
    %373 = vector.broadcast %cst_145 : f32 to vector<32x128xf32>
    %374 = arith.maximumf %372, %373 : vector<32x128xf32>
    %375 = vector.broadcast %367 : vector<1x128xf32> to vector<32x128xf32>
    %376 = arith.mulf %374, %375 : vector<32x128xf32>
    %377 = vector.broadcast %369 : vector<1x128xf32> to vector<32x128xf32>
    %378 = arith.addf %376, %377 : vector<32x128xf32>
    %cst_146 = arith.constant 0.000000e+00 : f32
    %379 = vector.broadcast %cst_146 : f32 to vector<32x128xf32>
    %380 = arith.maximumf %378, %379 : vector<32x128xf32>
    %c1_147 = arith.constant 1 : index
    %c0_148 = arith.constant 0 : index
    %c0_149 = arith.constant 0 : index
    %381 = vector.load %arg3[%c1_147, %c0_148, %c0_149] : memref<2x128x144xf32, #tpu.memory_space<vmem>>, vector<1x128x144xf32>
    %382 = vector.shape_cast %381 : vector<1x128x144xf32> to vector<128x144xf32>
    %c1_150 = arith.constant 1 : index
    %c0_151 = arith.constant 0 : index
    %c0_152 = arith.constant 0 : index
    %383 = vector.load %arg4[%c1_150, %c0_151, %c0_152] : memref<2x1x144xf32, #tpu.memory_space<vmem>>, vector<1x1x144xf32>
    %384 = vector.shape_cast %383 : vector<1x1x144xf32> to vector<1x144xf32>
    %c1_153 = arith.constant 1 : index
    %c0_154 = arith.constant 0 : index
    %c0_155 = arith.constant 0 : index
    %385 = vector.load %arg5[%c1_153, %c0_154, %c0_155] : memref<2x1x144xf32, #tpu.memory_space<vmem>>, vector<1x1x144xf32>
    %386 = vector.shape_cast %385 : vector<1x1x144xf32> to vector<1x144xf32>
    %c1_156 = arith.constant 1 : index
    %c0_157 = arith.constant 0 : index
    %c0_158 = arith.constant 0 : index
    %387 = vector.load %arg6[%c1_156, %c0_157, %c0_158] : memref<2x1x144xf32, #tpu.memory_space<vmem>>, vector<1x1x144xf32>
    %388 = vector.shape_cast %387 : vector<1x1x144xf32> to vector<1x144xf32>
    %cst_159 = arith.constant dense<0.000000e+00> : vector<32x144xf32>
    %389 = tpu.matmul %361, %382, %cst_159 {dimension_numbers = #tpu.dot_dimension_numbers<[1], [0], [0], [1], [0, 0, 1, 1], [], []>} : vector<32x128xf32>, vector<128x144xf32>, vector<32x144xf32> -> vector<32x144xf32>
    %390 = vector.broadcast %384 : vector<1x144xf32> to vector<32x144xf32>
    %391 = arith.addf %389, %390 : vector<32x144xf32>
    %cst_160 = arith.constant 0.000000e+00 : f32
    %392 = vector.broadcast %cst_160 : f32 to vector<32x144xf32>
    %393 = arith.maximumf %391, %392 : vector<32x144xf32>
    %394 = vector.broadcast %386 : vector<1x144xf32> to vector<32x144xf32>
    %395 = arith.mulf %393, %394 : vector<32x144xf32>
    %396 = vector.broadcast %388 : vector<1x144xf32> to vector<32x144xf32>
    %397 = arith.addf %395, %396 : vector<32x144xf32>
    %cst_161 = arith.constant 0.000000e+00 : f32
    %398 = vector.broadcast %cst_161 : f32 to vector<32x144xf32>
    %399 = arith.maximumf %397, %398 : vector<32x144xf32>
    %400 = vector.extract_strided_slice %399 {offsets = [0, 0], sizes = [16, 144], strides = [1, 1]} : vector<32x144xf32> to vector<16x144xf32>
    %c8_162 = arith.constant 8 : index
    %c0_163 = arith.constant 0 : index
    %401 = vector.load %arg12[%c8_162, %c0_163] : memref<56x144xf32, #tpu.memory_space<vmem>>, vector<16x144xf32>
    tpu.vector_store %arg12[%c8_162, %c0_163], %400 {strides = array<i32>} : memref<56x144xf32, #tpu.memory_space<vmem>>, vector<16x144xf32>,
    %402 = vector.extract_strided_slice %399 {offsets = [16, 0], sizes = [16, 144], strides = [1, 1]} : vector<32x144xf32> to vector<16x144xf32>
    %c32_164 = arith.constant 32 : index
    %c0_165 = arith.constant 0 : index
    %403 = vector.load %arg12[%c32_164, %c0_165] : memref<56x144xf32, #tpu.memory_space<vmem>>, vector<16x144xf32>
    tpu.vector_store %arg12[%c32_164, %c0_165], %402 {strides = array<i32>} : memref<56x144xf32, #tpu.memory_space<vmem>>, vector<16x144xf32>,
    %c3_166 = arith.constant 3 : index
    %c0_167 = arith.constant 0 : index
    %c0_168 = arith.constant 0 : index
    %404 = vector.load %arg2[%c3_166, %c0_167, %c0_168] : memref<4x9x128xf32, #tpu.memory_space<vmem>>, vector<1x1x128xf32>
    %405 = vector.shape_cast %404 : vector<1x1x128xf32> to vector<128xf32>
    %c3_169 = arith.constant 3 : index
    %c1_170 = arith.constant 1 : index
    %c0_171 = arith.constant 0 : index
    %406 = vector.load %arg2[%c3_169, %c1_170, %c0_171] : memref<4x9x128xf32, #tpu.memory_space<vmem>>, vector<1x1x128xf32>
    %407 = vector.shape_cast %406 : vector<1x1x128xf32> to vector<128xf32>
    %c3_172 = arith.constant 3 : index
    %c2_173 = arith.constant 2 : index
    %c0_174 = arith.constant 0 : index
    %408 = vector.load %arg2[%c3_172, %c2_173, %c0_174] : memref<4x9x128xf32, #tpu.memory_space<vmem>>, vector<1x1x128xf32>
    %409 = vector.shape_cast %408 : vector<1x1x128xf32> to vector<128xf32>
    %c3_175 = arith.constant 3 : index
    %c3_176 = arith.constant 3 : index
    %c0_177 = arith.constant 0 : index
    %410 = vector.load %arg2[%c3_175, %c3_176, %c0_177] : memref<4x9x128xf32, #tpu.memory_space<vmem>>, vector<1x1x128xf32>
    %411 = vector.shape_cast %410 : vector<1x1x128xf32> to vector<128xf32>
    %c3_178 = arith.constant 3 : index
    %c4_179 = arith.constant 4 : index
    %c0_180 = arith.constant 0 : index
    %412 = vector.load %arg2[%c3_178, %c4_179, %c0_180] : memref<4x9x128xf32, #tpu.memory_space<vmem>>, vector<1x1x128xf32>
    %413 = vector.shape_cast %412 : vector<1x1x128xf32> to vector<128xf32>
    %c3_181 = arith.constant 3 : index
    %c5_182 = arith.constant 5 : index
    %c0_183 = arith.constant 0 : index
    %414 = vector.load %arg2[%c3_181, %c5_182, %c0_183] : memref<4x9x128xf32, #tpu.memory_space<vmem>>, vector<1x1x128xf32>
    %415 = vector.shape_cast %414 : vector<1x1x128xf32> to vector<128xf32>
    %c3_184 = arith.constant 3 : index
    %c6_185 = arith.constant 6 : index
    %c0_186 = arith.constant 0 : index
    %416 = vector.load %arg2[%c3_184, %c6_185, %c0_186] : memref<4x9x128xf32, #tpu.memory_space<vmem>>, vector<1x1x128xf32>
    %417 = vector.shape_cast %416 : vector<1x1x128xf32> to vector<128xf32>
    %c3_187 = arith.constant 3 : index
    %c7_188 = arith.constant 7 : index
    %c0_189 = arith.constant 0 : index
    %418 = vector.load %arg2[%c3_187, %c7_188, %c0_189] : memref<4x9x128xf32, #tpu.memory_space<vmem>>, vector<1x1x128xf32>
    %419 = vector.shape_cast %418 : vector<1x1x128xf32> to vector<128xf32>
    %c3_190 = arith.constant 3 : index
    %c8_191 = arith.constant 8 : index
    %c0_192 = arith.constant 0 : index
    %420 = vector.load %arg2[%c3_190, %c8_191, %c0_192] : memref<4x9x128xf32, #tpu.memory_space<vmem>>, vector<1x1x128xf32>
    %421 = vector.shape_cast %420 : vector<1x1x128xf32> to vector<128xf32>
    %cst_193 = arith.constant 0.000000e+00 : f32
    %422 = vector.broadcast %cst_193 : f32 to vector<16x128xf32>
    %cst_194 = arith.constant 0.000000e+00 : f32
    %423 = vector.broadcast %cst_194 : f32 to vector<16x128xf32>
    %c0_195 = arith.constant 0 : index
    %c0_196 = arith.constant 0 : index
    %424 = vector.load %arg12[%c0_195, %c0_196] : memref<56x144xf32, #tpu.memory_space<vmem>>, vector<56x128xf32>
    %425 = vector.extract_strided_slice %424 {offsets = [7, 0], sizes = [16, 128], strides = [1, 1]} : vector<56x128xf32> to vector<16x128xf32>
    %426 = vector.shape_cast %405 : vector<128xf32> to vector<1x128xf32>
    %427 = vector.broadcast %426 : vector<1x128xf32> to vector<16x128xf32>
    %428 = arith.mulf %425, %427 : vector<16x128xf32>
    %429 = arith.addf %422, %428 : vector<16x128xf32>
    %430 = vector.extract_strided_slice %424 {offsets = [8, 0], sizes = [16, 128], strides = [1, 1]} : vector<56x128xf32> to vector<16x128xf32>
    %431 = vector.shape_cast %411 : vector<128xf32> to vector<1x128xf32>
    %432 = vector.broadcast %431 : vector<1x128xf32> to vector<16x128xf32>
    %433 = arith.mulf %430, %432 : vector<16x128xf32>
    %434 = arith.addf %429, %433 : vector<16x128xf32>
    %435 = vector.extract_strided_slice %424 {offsets = [9, 0], sizes = [16, 128], strides = [1, 1]} : vector<56x128xf32> to vector<16x128xf32>
    %436 = vector.shape_cast %417 : vector<128xf32> to vector<1x128xf32>
    %437 = vector.broadcast %436 : vector<1x128xf32> to vector<16x128xf32>
    %438 = arith.mulf %435, %437 : vector<16x128xf32>
    %439 = arith.addf %434, %438 : vector<16x128xf32>
    %440 = vector.extract_strided_slice %424 {offsets = [31, 0], sizes = [16, 128], strides = [1, 1]} : vector<56x128xf32> to vector<16x128xf32>
    %441 = vector.shape_cast %405 : vector<128xf32> to vector<1x128xf32>
    %442 = vector.broadcast %441 : vector<1x128xf32> to vector<16x128xf32>
    %443 = arith.mulf %440, %442 : vector<16x128xf32>
    %444 = arith.addf %423, %443 : vector<16x128xf32>
    %445 = vector.extract_strided_slice %424 {offsets = [32, 0], sizes = [16, 128], strides = [1, 1]} : vector<56x128xf32> to vector<16x128xf32>
    %446 = vector.shape_cast %411 : vector<128xf32> to vector<1x128xf32>
    %447 = vector.broadcast %446 : vector<1x128xf32> to vector<16x128xf32>
    %448 = arith.mulf %445, %447 : vector<16x128xf32>
    %449 = arith.addf %444, %448 : vector<16x128xf32>
    %450 = vector.extract_strided_slice %424 {offsets = [33, 0], sizes = [16, 128], strides = [1, 1]} : vector<56x128xf32> to vector<16x128xf32>
    %451 = vector.shape_cast %417 : vector<128xf32> to vector<1x128xf32>
    %452 = vector.broadcast %451 : vector<1x128xf32> to vector<16x128xf32>
    %453 = arith.mulf %450, %452 : vector<16x128xf32>
    %454 = arith.addf %449, %453 : vector<16x128xf32>
    %c0_197 = arith.constant 0 : index
    %c8_198 = arith.constant 8 : index
    %455 = vector.load %arg12[%c0_197, %c8_198] : memref<56x144xf32, #tpu.memory_space<vmem>>, vector<56x128xf32>
    %456 = vector.extract_strided_slice %455 {offsets = [7, 0], sizes = [16, 128], strides = [1, 1]} : vector<56x128xf32> to vector<16x128xf32>
    %457 = vector.shape_cast %407 : vector<128xf32> to vector<1x128xf32>
    %458 = vector.broadcast %457 : vector<1x128xf32> to vector<16x128xf32>
    %459 = arith.mulf %456, %458 : vector<16x128xf32>
    %460 = arith.addf %439, %459 : vector<16x128xf32>
    %461 = vector.extract_strided_slice %455 {offsets = [8, 0], sizes = [16, 128], strides = [1, 1]} : vector<56x128xf32> to vector<16x128xf32>
    %462 = vector.shape_cast %413 : vector<128xf32> to vector<1x128xf32>
    %463 = vector.broadcast %462 : vector<1x128xf32> to vector<16x128xf32>
    %464 = arith.mulf %461, %463 : vector<16x128xf32>
    %465 = arith.addf %460, %464 : vector<16x128xf32>
    %466 = vector.extract_strided_slice %455 {offsets = [9, 0], sizes = [16, 128], strides = [1, 1]} : vector<56x128xf32> to vector<16x128xf32>
    %467 = vector.shape_cast %419 : vector<128xf32> to vector<1x128xf32>
    %468 = vector.broadcast %467 : vector<1x128xf32> to vector<16x128xf32>
    %469 = arith.mulf %466, %468 : vector<16x128xf32>
    %470 = arith.addf %465, %469 : vector<16x128xf32>
    %471 = vector.extract_strided_slice %455 {offsets = [31, 0], sizes = [16, 128], strides = [1, 1]} : vector<56x128xf32> to vector<16x128xf32>
    %472 = vector.shape_cast %407 : vector<128xf32> to vector<1x128xf32>
    %473 = vector.broadcast %472 : vector<1x128xf32> to vector<16x128xf32>
    %474 = arith.mulf %471, %473 : vector<16x128xf32>
    %475 = arith.addf %454, %474 : vector<16x128xf32>
    %476 = vector.extract_strided_slice %455 {offsets = [32, 0], sizes = [16, 128], strides = [1, 1]} : vector<56x128xf32> to vector<16x128xf32>
    %477 = vector.shape_cast %413 : vector<128xf32> to vector<1x128xf32>
    %478 = vector.broadcast %477 : vector<1x128xf32> to vector<16x128xf32>
    %479 = arith.mulf %476, %478 : vector<16x128xf32>
    %480 = arith.addf %475, %479 : vector<16x128xf32>
    %481 = vector.extract_strided_slice %455 {offsets = [33, 0], sizes = [16, 128], strides = [1, 1]} : vector<56x128xf32> to vector<16x128xf32>
    %482 = vector.shape_cast %419 : vector<128xf32> to vector<1x128xf32>
    %483 = vector.broadcast %482 : vector<1x128xf32> to vector<16x128xf32>
    %484 = arith.mulf %481, %483 : vector<16x128xf32>
    %485 = arith.addf %480, %484 : vector<16x128xf32>
    %c0_199 = arith.constant 0 : index
    %c16_200 = arith.constant 16 : index
    %486 = vector.load %arg12[%c0_199, %c16_200] : memref<56x144xf32, #tpu.memory_space<vmem>>, vector<56x128xf32>
    %487 = vector.extract_strided_slice %486 {offsets = [7, 0], sizes = [16, 128], strides = [1, 1]} : vector<56x128xf32> to vector<16x128xf32>
    %488 = vector.shape_cast %409 : vector<128xf32> to vector<1x128xf32>
    %489 = vector.broadcast %488 : vector<1x128xf32> to vector<16x128xf32>
    %490 = arith.mulf %487, %489 : vector<16x128xf32>
    %491 = arith.addf %470, %490 : vector<16x128xf32>
    %492 = vector.extract_strided_slice %486 {offsets = [8, 0], sizes = [16, 128], strides = [1, 1]} : vector<56x128xf32> to vector<16x128xf32>
    %493 = vector.shape_cast %415 : vector<128xf32> to vector<1x128xf32>
    %494 = vector.broadcast %493 : vector<1x128xf32> to vector<16x128xf32>
    %495 = arith.mulf %492, %494 : vector<16x128xf32>
    %496 = arith.addf %491, %495 : vector<16x128xf32>
    %497 = vector.extract_strided_slice %486 {offsets = [9, 0], sizes = [16, 128], strides = [1, 1]} : vector<56x128xf32> to vector<16x128xf32>
    %498 = vector.shape_cast %421 : vector<128xf32> to vector<1x128xf32>
    %499 = vector.broadcast %498 : vector<1x128xf32> to vector<16x128xf32>
    %500 = arith.mulf %497, %499 : vector<16x128xf32>
    %501 = arith.addf %496, %500 : vector<16x128xf32>
    %502 = vector.extract_strided_slice %486 {offsets = [31, 0], sizes = [16, 128], strides = [1, 1]} : vector<56x128xf32> to vector<16x128xf32>
    %503 = vector.shape_cast %409 : vector<128xf32> to vector<1x128xf32>
    %504 = vector.broadcast %503 : vector<1x128xf32> to vector<16x128xf32>
    %505 = arith.mulf %502, %504 : vector<16x128xf32>
    %506 = arith.addf %485, %505 : vector<16x128xf32>
    %507 = vector.extract_strided_slice %486 {offsets = [32, 0], sizes = [16, 128], strides = [1, 1]} : vector<56x128xf32> to vector<16x128xf32>
    %508 = vector.shape_cast %415 : vector<128xf32> to vector<1x128xf32>
    %509 = vector.broadcast %508 : vector<1x128xf32> to vector<16x128xf32>
    %510 = arith.mulf %507, %509 : vector<16x128xf32>
    %511 = arith.addf %506, %510 : vector<16x128xf32>
    %512 = vector.extract_strided_slice %486 {offsets = [33, 0], sizes = [16, 128], strides = [1, 1]} : vector<56x128xf32> to vector<16x128xf32>
    %513 = vector.shape_cast %421 : vector<128xf32> to vector<1x128xf32>
    %514 = vector.broadcast %513 : vector<1x128xf32> to vector<16x128xf32>
    %515 = arith.mulf %512, %514 : vector<16x128xf32>
    %516 = arith.addf %511, %515 : vector<16x128xf32>
    %517 = tpu.concatenate %501, %516 in 0 : vector<16x128xf32>, vector<16x128xf32> -> vector<32x128xf32>
    %c1_201 = arith.constant 1 : index
    %c0_202 = arith.constant 0 : index
    %c0_203 = arith.constant 0 : index
    %518 = vector.load %arg7[%c1_201, %c0_202, %c0_203] : memref<2x128x128xf32, #tpu.memory_space<vmem>>, vector<1x128x128xf32>
    %519 = vector.shape_cast %518 : vector<1x128x128xf32> to vector<128x128xf32>
    %c1_204 = arith.constant 1 : index
    %c0_205 = arith.constant 0 : index
    %c0_206 = arith.constant 0 : index
    %520 = vector.load %arg8[%c1_204, %c0_205, %c0_206] : memref<2x1x128xf32, #tpu.memory_space<vmem>>, vector<1x1x128xf32>
    %521 = vector.shape_cast %520 : vector<1x1x128xf32> to vector<1x128xf32>
    %c1_207 = arith.constant 1 : index
    %c0_208 = arith.constant 0 : index
    %c0_209 = arith.constant 0 : index
    %522 = vector.load %arg9[%c1_207, %c0_208, %c0_209] : memref<2x1x128xf32, #tpu.memory_space<vmem>>, vector<1x1x128xf32>
    %523 = vector.shape_cast %522 : vector<1x1x128xf32> to vector<1x128xf32>
    %c1_210 = arith.constant 1 : index
    %c0_211 = arith.constant 0 : index
    %c0_212 = arith.constant 0 : index
    %524 = vector.load %arg10[%c1_210, %c0_211, %c0_212] : memref<2x1x128xf32, #tpu.memory_space<vmem>>, vector<1x1x128xf32>
    %525 = vector.shape_cast %524 : vector<1x1x128xf32> to vector<1x128xf32>
    %cst_213 = arith.constant dense<0.000000e+00> : vector<32x128xf32>
    %526 = tpu.matmul %517, %519, %cst_213 {dimension_numbers = #tpu.dot_dimension_numbers<[1], [0], [0], [1], [0, 0, 1, 1], [], []>} : vector<32x128xf32>, vector<128x128xf32>, vector<32x128xf32> -> vector<32x128xf32>
    %527 = vector.broadcast %521 : vector<1x128xf32> to vector<32x128xf32>
    %528 = arith.addf %526, %527 : vector<32x128xf32>
    %cst_214 = arith.constant 0.000000e+00 : f32
    %529 = vector.broadcast %cst_214 : f32 to vector<32x128xf32>
    %530 = arith.maximumf %528, %529 : vector<32x128xf32>
    %531 = vector.broadcast %523 : vector<1x128xf32> to vector<32x128xf32>
    %532 = arith.mulf %530, %531 : vector<32x128xf32>
    %533 = vector.broadcast %525 : vector<1x128xf32> to vector<32x128xf32>
    %534 = arith.addf %532, %533 : vector<32x128xf32>
    %cst_215 = arith.constant 0.000000e+00 : f32
    %535 = vector.broadcast %cst_215 : f32 to vector<32x128xf32>
    %536 = arith.maximumf %534, %535 : vector<32x128xf32>
    %537 = arith.addf %380, %536 : vector<32x128xf32>
    %538 = vector.extract_strided_slice %537 {offsets = [0, 0], sizes = [16, 128], strides = [1, 1]} : vector<32x128xf32> to vector<16x128xf32>
    %c0_216 = arith.constant 0 : index
    %c0_217 = arith.constant 0 : index
    %c0_218 = arith.constant 0 : index
    %539 = vector.load %arg11[%c0_216, %c0_217, %c0_218] : memref<2x16x128xf32, #tpu.memory_space<vmem>>, vector<1x16x128xf32>
    %540 = vector.shape_cast %539 : vector<1x16x128xf32> to vector<16x128xf32>
    %541 = vector.shape_cast %538 : vector<16x128xf32> to vector<1x16x128xf32>
    tpu.vector_store %arg11[%c0_216, %c0_217, %c0_218], %541 {strides = array<i32>} : memref<2x16x128xf32, #tpu.memory_space<vmem>>, vector<1x16x128xf32>,
    %542 = vector.extract_strided_slice %537 {offsets = [16, 0], sizes = [16, 128], strides = [1, 1]} : vector<32x128xf32> to vector<16x128xf32>
    %c1_219 = arith.constant 1 : index
    %c0_220 = arith.constant 0 : index
    %c0_221 = arith.constant 0 : index
    %543 = vector.load %arg11[%c1_219, %c0_220, %c0_221] : memref<2x16x128xf32, #tpu.memory_space<vmem>>, vector<1x16x128xf32>
    %544 = vector.shape_cast %543 : vector<1x16x128xf32> to vector<16x128xf32>
    %545 = vector.shape_cast %542 : vector<16x128xf32> to vector<1x16x128xf32>
    tpu.vector_store %arg11[%c1_219, %c0_220, %c0_221], %545 {strides = array<i32>} : memref<2x16x128xf32, #tpu.memory_space<vmem>>, vector<1x16x128xf32>,
    return
  }
  func.func @transform_0(%arg0: i32) -> (i32, i32, i32) {
    %c0_i32 = arith.constant 0 : i32
    %c0_i32_0 = arith.constant 0 : i32
    %c0_i32_1 = arith.constant 0 : i32
    return %arg0, %c0_i32, %c0_i32_0 : i32, i32, i32
  }
  func.func @transform_1(%arg0: i32) -> (i32, i32, i32) {
    %c0_i32 = arith.constant 0 : i32
    %c0_i32_0 = arith.constant 0 : i32
    %c0_i32_1 = arith.constant 0 : i32
    %c0_i32_2 = arith.constant 0 : i32
    return %c0_i32, %c0_i32_0, %c0_i32_1 : i32, i32, i32
  }
  func.func @transform_2(%arg0: i32) -> (i32, i32, i32) {
    %c0_i32 = arith.constant 0 : i32
    %c0_i32_0 = arith.constant 0 : i32
    %c0_i32_1 = arith.constant 0 : i32
    %c0_i32_2 = arith.constant 0 : i32
    return %c0_i32, %c0_i32_0, %c0_i32_1 : i32, i32, i32
  }
  func.func @transform_3(%arg0: i32) -> (i32, i32, i32) {
    %c0_i32 = arith.constant 0 : i32
    %c0_i32_0 = arith.constant 0 : i32
    %c0_i32_1 = arith.constant 0 : i32
    %c0_i32_2 = arith.constant 0 : i32
    return %c0_i32, %c0_i32_0, %c0_i32_1 : i32, i32, i32
  }
  func.func @transform_4(%arg0: i32) -> (i32, i32, i32) {
    %c0_i32 = arith.constant 0 : i32
    %c0_i32_0 = arith.constant 0 : i32
    %c0_i32_1 = arith.constant 0 : i32
    %c0_i32_2 = arith.constant 0 : i32
    return %c0_i32, %c0_i32_0, %c0_i32_1 : i32, i32, i32
  }
  func.func @transform_5(%arg0: i32) -> (i32, i32, i32) {
    %c0_i32 = arith.constant 0 : i32
    %c0_i32_0 = arith.constant 0 : i32
    %c0_i32_1 = arith.constant 0 : i32
    %c0_i32_2 = arith.constant 0 : i32
    return %c0_i32, %c0_i32_0, %c0_i32_1 : i32, i32, i32
  }
  func.func @transform_6(%arg0: i32) -> (i32, i32, i32) {
    %c0_i32 = arith.constant 0 : i32
    %c0_i32_0 = arith.constant 0 : i32
    %c0_i32_1 = arith.constant 0 : i32
    %c0_i32_2 = arith.constant 0 : i32
    return %c0_i32, %c0_i32_0, %c0_i32_1 : i32, i32, i32
  }
  func.func @transform_7(%arg0: i32) -> (i32, i32, i32) {
    %c0_i32 = arith.constant 0 : i32
    %c0_i32_0 = arith.constant 0 : i32
    %c0_i32_1 = arith.constant 0 : i32
    %c0_i32_2 = arith.constant 0 : i32
    return %c0_i32, %c0_i32_0, %c0_i32_1 : i32, i32, i32
  }
  func.func @transform_8(%arg0: i32) -> (i32, i32, i32) {
    %c0_i32 = arith.constant 0 : i32
    %c0_i32_0 = arith.constant 0 : i32
    %c0_i32_1 = arith.constant 0 : i32
    %c0_i32_2 = arith.constant 0 : i32
    return %c0_i32, %c0_i32_0, %c0_i32_1 : i32, i32, i32
  }
  func.func @transform_9(%arg0: i32) -> (i32, i32, i32) {
    %c0_i32 = arith.constant 0 : i32
    %c0_i32_0 = arith.constant 0 : i32
    %c0_i32_1 = arith.constant 0 : i32
    %c0_i32_2 = arith.constant 0 : i32
    return %c0_i32, %c0_i32_0, %c0_i32_1 : i32, i32, i32
  }
  func.func @transform_10(%arg0: i32) -> (i32, i32, i32) {
    %c0_i32 = arith.constant 0 : i32
    %c0_i32_0 = arith.constant 0 : i32
    %c0_i32_1 = arith.constant 0 : i32
    return %arg0, %c0_i32, %c0_i32_0 : i32, i32, i32
  }
}

</mosaic_0001>

<llo_original>
// kernel: tpu_custom_call.1
$region0: #{tpu_custom_call.1}
  #allocation0 [shape = 'u32[]', space=smem, size = 0x4, offset = 0x4, fixed_abs, tag = 'smem constant byte address 0x4 - core index']
  #allocation1 [shape = 'u32[144,128]{1,0:T(1,128)}', space=vmem, size = 0x12000, scoped, tag = 'internal scratch']
  #allocation2 [shape = 'f32[56,144]{1,0:T(8,128)}', space=vmem, size = 0xe000, scoped, tag = 'scratch operand']
  #allocation3 [shape = 'f32[56,144]{1,0:T(8,128)}', space=vmem, size = 0xe000, scoped, tag = 'scratch operand']
  %s0 = inlined_call_operand.vmem [shape: f32[4,16,144], index: 0, kind: input, shape index: {}]
  %s1 = inlined_call_operand.vmem [shape: f32[4,9,128], index: 1, kind: input, shape index: {}]
  %s2 = inlined_call_operand.vmem [shape: f32[2,128,144], index: 2, kind: input, shape index: {}]
  %s3 = inlined_call_operand.vmem [shape: f32[2,1,144], index: 3, kind: input, shape index: {}]
  %s4 = inlined_call_operand.vmem [shape: f32[2,1,144], index: 4, kind: input, shape index: {}]
  %s5 = inlined_call_operand.vmem [shape: f32[2,1,144], index: 5, kind: input, shape index: {}]
  %s6 = inlined_call_operand.vmem [shape: f32[2,128,128], index: 6, kind: input, shape index: {}]
  %s7 = inlined_call_operand.vmem [shape: f32[2,1,128], index: 7, kind: input, shape index: {}]
  %s8 = inlined_call_operand.vmem [shape: f32[2,1,128], index: 8, kind: input, shape index: {}]
  %s9 = inlined_call_operand.vmem [shape: f32[2,1,128], index: 9, kind: input, shape index: {}]
  %s10 = inlined_call_operand.hbm [shape: f32[4,16,128], index: 10, kind: output, shape index: {}]
  %s11 = sld [smem:[#allocation0]]
  $region73: #{tpu_custom_call.1} parent=0
    _
  %s13 = ssub.s32 1, %s11
  %s14 = scalar_select 0, %s13, %s11
  $region1: #{tpu_custom_call.1} parent=0
    #allocation4 [shape = 'u8[32768]{0}', space=vmem, size = 0x8000, scoped, tag = 'output window, operand 0']
    #allocation5 [shape = 's32[2]{0}', space=sflag, size = 0x8, scoped, tag = 'scoped memory for tpu_custom_call.1']
    %15 = vsyncpa [#allocation5], 0
    %s16 = scalar_lea.sflag [#allocation5], 1
    %17 = vsyncpa %s16, 0
    loop: start=0, step=1, limit=4
    $region2: #{tpu_custom_call.1} parent=1 // loop_pre_header
      _
    $region3: #{tpu_custom_call.1} parent=1 // loop_header
      %s19 = sphi 0, %s23
      %p20 = scmp.ge.s32.totalorder %s19, 4
      %s29 = sphi 0, %s31
      %s32 = sphi 0, %s29
      %s33 = sphi 0, %s32
      %s49 = sphi 0, %s33
      %s53 = sphi 0, %s53
      %s55 = sphi 0, %s53
      %s56 = sphi 0, %s55
      %s70 = sphi 0, %s56
      %s74 = sphi 0, %s74
      %s76 = sphi 0, %s74
      %s77 = sphi 0, %s76
      %s91 = sphi 0, %s77
      %s95 = sphi 0, %s95
      %s97 = sphi 0, %s95
      %s98 = sphi 0, %s97
      %s112 = sphi 0, %s98
      %s116 = sphi 0, %s116
      %s118 = sphi 0, %s116
      %s119 = sphi 0, %s118
      %s133 = sphi 0, %s119
      %s137 = sphi 0, %s137
      %s139 = sphi 0, %s137
      %s140 = sphi 0, %s139
      %s154 = sphi 0, %s140
      %s158 = sphi 0, %s158
      %s160 = sphi 0, %s158
      %s161 = sphi 0, %s160
      %s175 = sphi 0, %s161
      %s179 = sphi 0, %s179
      %s181 = sphi 0, %s179
      %s182 = sphi 0, %s181
      %s196 = sphi 0, %s182
      %s200 = sphi 0, %s200
      %s202 = sphi 0, %s200
      %s203 = sphi 0, %s202
      %s217 = sphi 0, %s203
      %s221 = sphi 0, %s221
      %s223 = sphi 0, %s221
      %s224 = sphi 0, %s223
      %s238 = sphi 0, %s224
      %s244 = sphi 0, %s246
      %s247 = sphi 0, %s244
      %s248 = sphi 0, %s247
      %s264 = sphi 0, %s248
    $region4: #{tpu_custom_call.1} parent=1 // loop_header_branch
      %22 = sbr.rel (%p20) target = $region8
    $region5: #{tpu_custom_call.1} parent=1 // loop_body
      %s24 = ssub.s32 %s19, 1
      %s25 = ssub.s32 %s19, 2
      %s26 = sadd.s32 %s19, 1
      %s27 = ssub.s32 %s19, %s26
      %p28 = scmp.eq.s32.totalorder %s27, 0
      %s30 = sadd.s32 %s29, 1
      %s31 = scalar_select %p28, %s29, %s30
      %p34 = pneg %p28
      %p35 = scmp.eq.s32.totalorder %s19, 1
      %p36 = por %p34, %p35
      %p37 = scmp.ne.s32.totalorder %s29, %s32
      %p38 = scmp.eq.s32.totalorder %s19, 0
      %p39 = por %p37, %p38
      %p40 = scmp.ne.s32.totalorder %s29, %s32
      %p41 = scmp.eq.s32.totalorder %s24, 1
      %p42 = por %p40, %p41
      %p43 = scmp.ne.s32.totalorder %s32, %s33
      %p44 = scmp.eq.s32.totalorder %s24, 0
      %p45 = por %p43, %p44
      %p46 = scmp.ne.s32.totalorder %s32, %s33
      %p47 = scmp.eq.s32.totalorder %s25, 1
      %p48 = por %p46, %p47
      %p50 = scmp.ne.s32.totalorder %s33, %s49
      %p51 = scmp.eq.s32.totalorder %s25, 0
      %p52 = por %p50, %p51
      %s54 = sadd.s32 %s53, 1
      %p57 = scmp.eq.s32.totalorder %s19, 1
      %p58 = scmp.ne.s32.totalorder %s53, %s55
      %p59 = scmp.eq.s32.totalorder %s19, 0
      %p60 = por %p58, %p59
      %p61 = scmp.ne.s32.totalorder %s53, %s55
      %p62 = scmp.eq.s32.totalorder %s24, 1
      %p63 = por %p61, %p62
      %p64 = scmp.ne.s32.totalorder %s55, %s56
      %p65 = scmp.eq.s32.totalorder %s24, 0
      %p66 = por %p64, %p65
      %p67 = scmp.ne.s32.totalorder %s55, %s56
      %p68 = scmp.eq.s32.totalorder %s25, 1
      %p69 = por %p67, %p68
      %p71 = scmp.ne.s32.totalorder %s56, %s70
      %p72 = scmp.eq.s32.totalorder %s25, 0
      %p73 = por %p71, %p72
      %s75 = sadd.s32 %s74, 1
      %p78 = scmp.eq.s32.totalorder %s19, 1
      %p79 = scmp.ne.s32.totalorder %s74, %s76
      %p80 = scmp.eq.s32.totalorder %s19, 0
      %p81 = por %p79, %p80
      %p82 = scmp.ne.s32.totalorder %s74, %s76
      %p83 = scmp.eq.s32.totalorder %s24, 1
      %p84 = por %p82, %p83
      %p85 = scmp.ne.s32.totalorder %s76, %s77
      %p86 = scmp.eq.s32.totalorder %s24, 0
      %p87 = por %p85, %p86
      %p88 = scmp.ne.s32.totalorder %s76, %s77
      %p89 = scmp.eq.s32.totalorder %s25, 1
      %p90 = por %p88, %p89
      %p92 = scmp.ne.s32.totalorder %s77, %s91
      %p93 = scmp.eq.s32.totalorder %s25, 0
      %p94 = por %p92, %p93
      %s96 = sadd.s32 %s95, 1
      %p99 = scmp.eq.s32.totalorder %s19, 1
      %p100 = scmp.ne.s32.totalorder %s95, %s97
      %p101 = scmp.eq.s32.totalorder %s19, 0
      %p102 = por %p100, %p101
      %p103 = scmp.ne.s32.totalorder %s95, %s97
      %p104 = scmp.eq.s32.totalorder %s24, 1
      %p105 = por %p103, %p104
      %p106 = scmp.ne.s32.totalorder %s97, %s98
      %p107 = scmp.eq.s32.totalorder %s24, 0
      %p108 = por %p106, %p107
      %p109 = scmp.ne.s32.totalorder %s97, %s98
      %p110 = scmp.eq.s32.totalorder %s25, 1
      %p111 = por %p109, %p110
      %p113 = scmp.ne.s32.totalorder %s98, %s112
      %p114 = scmp.eq.s32.totalorder %s25, 0
      %p115 = por %p113, %p114
      %s117 = sadd.s32 %s116, 1
      %p120 = scmp.eq.s32.totalorder %s19, 1
      %p121 = scmp.ne.s32.totalorder %s116, %s118
      %p122 = scmp.eq.s32.totalorder %s19, 0
      %p123 = por %p121, %p122
      %p124 = scmp.ne.s32.totalorder %s116, %s118
      %p125 = scmp.eq.s32.totalorder %s24, 1
      %p126 = por %p124, %p125
      %p127 = scmp.ne.s32.totalorder %s118, %s119
      %p128 = scmp.eq.s32.totalorder %s24, 0
      %p129 = por %p127, %p128
      %p130 = scmp.ne.s32.totalorder %s118, %s119
      %p131 = scmp.eq.s32.totalorder %s25, 1
      %p132 = por %p130, %p131
      %p134 = scmp.ne.s32.totalorder %s119, %s133
      %p135 = scmp.eq.s32.totalorder %s25, 0
      %p136 = por %p134, %p135
      %s138 = sadd.s32 %s137, 1
      %p141 = scmp.eq.s32.totalorder %s19, 1
      %p142 = scmp.ne.s32.totalorder %s137, %s139
      %p143 = scmp.eq.s32.totalorder %s19, 0
      %p144 = por %p142, %p143
      %p145 = scmp.ne.s32.totalorder %s137, %s139
      %p146 = scmp.eq.s32.totalorder %s24, 1
      %p147 = por %p145, %p146
      %p148 = scmp.ne.s32.totalorder %s139, %s140
      %p149 = scmp.eq.s32.totalorder %s24, 0
      %p150 = por %p148, %p149
      %p151 = scmp.ne.s32.totalorder %s139, %s140
      %p152 = scmp.eq.s32.totalorder %s25, 1
      %p153 = por %p151, %p152
      %p155 = scmp.ne.s32.totalorder %s140, %s154
      %p156 = scmp.eq.s32.totalorder %s25, 0
      %p157 = por %p155, %p156
      %s159 = sadd.s32 %s158, 1
      %p162 = scmp.eq.s32.totalorder %s19, 1
      %p163 = scmp.ne.s32.totalorder %s158, %s160
      %p164 = scmp.eq.s32.totalorder %s19, 0
      %p165 = por %p163, %p164
      %p166 = scmp.ne.s32.totalorder %s158, %s160
      %p167 = scmp.eq.s32.totalorder %s24, 1
      %p168 = por %p166, %p167
      %p169 = scmp.ne.s32.totalorder %s160, %s161
      %p170 = scmp.eq.s32.totalorder %s24, 0
      %p171 = por %p169, %p170
      %p172 = scmp.ne.s32.totalorder %s160, %s161
      %p173 = scmp.eq.s32.totalorder %s25, 1
      %p174 = por %p172, %p173
      %p176 = scmp.ne.s32.totalorder %s161, %s175
      %p177 = scmp.eq.s32.totalorder %s25, 0
      %p178 = por %p176, %p177
      %s180 = sadd.s32 %s179, 1
      %p183 = scmp.eq.s32.totalorder %s19, 1
      %p184 = scmp.ne.s32.totalorder %s179, %s181
      %p185 = scmp.eq.s32.totalorder %s19, 0
      %p186 = por %p184, %p185
      %p187 = scmp.ne.s32.totalorder %s179, %s181
      %p188 = scmp.eq.s32.totalorder %s24, 1
      %p189 = por %p187, %p188
      %p190 = scmp.ne.s32.totalorder %s181, %s182
      %p191 = scmp.eq.s32.totalorder %s24, 0
      %p192 = por %p190, %p191
      %p193 = scmp.ne.s32.totalorder %s181, %s182
      %p194 = scmp.eq.s32.totalorder %s25, 1
      %p195 = por %p193, %p194
      %p197 = scmp.ne.s32.totalorder %s182, %s196
      %p198 = scmp.eq.s32.totalorder %s25, 0
      %p199 = por %p197, %p198
      %s201 = sadd.s32 %s200, 1
      %p204 = scmp.eq.s32.totalorder %s19, 1
      %p205 = scmp.ne.s32.totalorder %s200, %s202
      %p206 = scmp.eq.s32.totalorder %s19, 0
      %p207 = por %p205, %p206
      %p208 = scmp.ne.s32.totalorder %s200, %s202
      %p209 = scmp.eq.s32.totalorder %s24, 1
      %p210 = por %p208, %p209
      %p211 = scmp.ne.s32.totalorder %s202, %s203
      %p212 = scmp.eq.s32.totalorder %s24, 0
      %p213 = por %p211, %p212
      %p214 = scmp.ne.s32.totalorder %s202, %s203
      %p215 = scmp.eq.s32.totalorder %s25, 1
      %p216 = por %p214, %p215
      %p218 = scmp.ne.s32.totalorder %s203, %s217
      %p219 = scmp.eq.s32.totalorder %s25, 0
      %p220 = por %p218, %p219
      %s222 = sadd.s32 %s221, 1
      %p225 = scmp.eq.s32.totalorder %s19, 1
      %p226 = scmp.ne.s32.totalorder %s221, %s223
      %p227 = scmp.eq.s32.totalorder %s19, 0
      %p228 = por %p226, %p227
      %p229 = scmp.ne.s32.totalorder %s221, %s223
      %p230 = scmp.eq.s32.totalorder %s24, 1
      %p231 = por %p229, %p230
      %p232 = scmp.ne.s32.totalorder %s223, %s224
      %p233 = scmp.eq.s32.totalorder %s24, 0
      %p234 = por %p232, %p233
      %p235 = scmp.ne.s32.totalorder %s223, %s224
      %p236 = scmp.eq.s32.totalorder %s25, 1
      %p237 = por %p235, %p236
      %p239 = scmp.ne.s32.totalorder %s224, %s238
      %p240 = scmp.eq.s32.totalorder %s25, 0
      %p241 = por %p239, %p240
      %s242 = ssub.s32 %s19, %s26
      %p243 = scmp.eq.s32.totalorder %s242, 0
      %s245 = sadd.s32 %s244, 1
      %s246 = scalar_select %p243, %s244, %s245
      %p249 = pneg %p243
      %p250 = scmp.eq.s32.totalorder %s19, 1
      %p251 = por %p249, %p250
      %p252 = scmp.ne.s32.totalorder %s244, %s247
      %p253 = scmp.eq.s32.totalorder %s19, 0
      %p254 = por %p252, %p253
      %p255 = scmp.ne.s32.totalorder %s244, %s247
      %p256 = scmp.eq.s32.totalorder %s24, 1
      %p257 = por %p255, %p256
      %p258 = scmp.ne.s32.totalorder %s247, %s248
      %p259 = scmp.eq.s32.totalorder %s24, 0
      %p260 = por %p258, %p259
      %p261 = scmp.ne.s32.totalorder %s247, %s248
      %p262 = scmp.eq.s32.totalorder %s25, 1
      %p263 = por %p261, %p262
      %p265 = scmp.ne.s32.totalorder %s248, %s264
      %p266 = scmp.eq.s32.totalorder %s25, 0
      %p267 = por %p265, %p266
      %p268 = scmp.le.s32.totalorder 1, %s19
      %p269 = scmp.lt.s32.totalorder %s19, 3
      %p270 = pnand %p268, %p269
      %p271 = pneg %p270
      // Predicated region
      $region9: #{tpu_custom_call.1} parent=5 // pred_check
        _
      $region10: #{tpu_custom_call.1} parent=5 // pred_check_branch
        %273 = sbr.rel (%p270) target = $region12
      $region11: #{tpu_custom_call.1} parent=5 // pred_region
        %s274 = ssub.s32 %s19, 1
        // Predicated region
        $region13: #{tpu_custom_call.1} parent=11 // pred_check
          %p275 = pneg %p66
        $region14: #{tpu_custom_call.1} parent=11 // pred_check_branch
          %277 = sbr.rel (%p275) target = $region16
        $region15: #{tpu_custom_call.1} parent=11 // pred_region
          _
        $region16: #{tpu_custom_call.1} parent=11 // pred_fallthru
          _
        // Predicated region
        $region17: #{tpu_custom_call.1} parent=11 // pred_check
          %p278 = pneg %p87
        $region18: #{tpu_custom_call.1} parent=11 // pred_check_branch
          %280 = sbr.rel (%p278) target = $region20
        $region19: #{tpu_custom_call.1} parent=11 // pred_region
          _
        $region20: #{tpu_custom_call.1} parent=11 // pred_fallthru
          _
        // Predicated region
        $region21: #{tpu_custom_call.1} parent=11 // pred_check
          %p281 = pneg %p108
        $region22: #{tpu_custom_call.1} parent=11 // pred_check_branch
          %283 = sbr.rel (%p281) target = $region24
        $region23: #{tpu_custom_call.1} parent=11 // pred_region
          _
        $region24: #{tpu_custom_call.1} parent=11 // pred_fallthru
          _
        // Predicated region
        $region25: #{tpu_custom_call.1} parent=11 // pred_check
          %p284 = pneg %p129
        $region26: #{tpu_custom_call.1} parent=11 // pred_check_branch
          %286 = sbr.rel (%p284) target = $region28
        $region27: #{tpu_custom_call.1} parent=11 // pred_region
          _
        $region28: #{tpu_custom_call.1} parent=11 // pred_fallthru
          _
        // Predicated region
        $region29: #{tpu_custom_call.1} parent=11 // pred_check
          %p287 = pneg %p150
        $region30: #{tpu_custom_call.1} parent=11 // pred_check_branch
          %289 = sbr.rel (%p287) target = $region32
        $region31: #{tpu_custom_call.1} parent=11 // pred_region
          _
        $region32: #{tpu_custom_call.1} parent=11 // pred_fallthru
          _
        // Predicated region
        $region33: #{tpu_custom_call.1} parent=11 // pred_check
          %p290 = pneg %p171
        $region34: #{tpu_custom_call.1} parent=11 // pred_check_branch
          %292 = sbr.rel (%p290) target = $region36
        $region35: #{tpu_custom_call.1} parent=11 // pred_region
          _
        $region36: #{tpu_custom_call.1} parent=11 // pred_fallthru
          _
        // Predicated region
        $region37: #{tpu_custom_call.1} parent=11 // pred_check
          %p293 = pneg %p192
        $region38: #{tpu_custom_call.1} parent=11 // pred_check_branch
          %295 = sbr.rel (%p293) target = $region40
        $region39: #{tpu_custom_call.1} parent=11 // pred_region
          _
        $region40: #{tpu_custom_call.1} parent=11 // pred_fallthru
          _
        // Predicated region
        $region41: #{tpu_custom_call.1} parent=11 // pred_check
          %p296 = pneg %p213
        $region42: #{tpu_custom_call.1} parent=11 // pred_check_branch
          %298 = sbr.rel (%p296) target = $region44
        $region43: #{tpu_custom_call.1} parent=11 // pred_region
          _
        $region44: #{tpu_custom_call.1} parent=11 // pred_fallthru
          _
        // Predicated region
        $region45: #{tpu_custom_call.1} parent=11 // pred_check
          %p299 = pneg %p234
        $region46: #{tpu_custom_call.1} parent=11 // pred_check_branch
          %301 = sbr.rel (%p299) target = $region48
        $region47: #{tpu_custom_call.1} parent=11 // pred_region
          _
        $region48: #{tpu_custom_call.1} parent=11 // pred_fallthru
          _
      $region12: #{tpu_custom_call.1} parent=5 // pred_fallthru
        _
      %p302 = scmp.lt.s32.totalorder %s19, 2
      // Predicated region
      $region49: #{tpu_custom_call.1} parent=5 // pred_check
        %p303 = pneg %p302
      $region50: #{tpu_custom_call.1} parent=5 // pred_check_branch
        %305 = sbr.rel (%p303) target = $region52
      $region51: #{tpu_custom_call.1} parent=5 // pred_region
        // Predicated region
        $region53: #{tpu_custom_call.1} parent=51 // pred_check
          %p306 = pneg %p39
        $region54: #{tpu_custom_call.1} parent=51 // pred_check_branch
          %308 = sbr.rel (%p306) target = $region56
        $region55: #{tpu_custom_call.1} parent=51 // pred_region
          %s309 = smul.u32 2, %s19
          %p310 = scmp.lt.s32.totalorder %s309, 3
          %s311 = scalar_select %p310, %s309, 3
          %s312 = smul.addr %s311, 4
          %s313 = smul.addr %s312, 8
          %s314 = scalar_lea.vmem %s0, %s313
          %s315 = smul.u32 2, %s19
        $region56: #{tpu_custom_call.1} parent=51 // pred_fallthru
          _
      $region52: #{tpu_custom_call.1} parent=5 // pred_fallthru
        _
      %p316 = scmp.le.s32.totalorder 1, %s19
      %p317 = scmp.lt.s32.totalorder %s19, 3
      %p318 = pnand %p316, %p317
      %p319 = pneg %p318
      // Predicated region
      $region57: #{tpu_custom_call.1} parent=5 // pred_check
        _
      $region58: #{tpu_custom_call.1} parent=5 // pred_check_branch
        %321 = sbr.rel (%p318) target = $region60
      $region59: #{tpu_custom_call.1} parent=5 // pred_region
        %s322 = ssub.s32 %s19, 1
        %s323 = smul.u32 2, %s24
        %p324 = scmp.lt.s32.totalorder %s323, 3
        %s325 = scalar_select %p324, %s323, 3
        %s326 = smul.addr %s325, 4
        %s327 = smul.addr %s326, 8
        %s328 = scalar_lea.vmem %s0, %s327
        %p329 = pneg %p45
        %p330 = pneg %p42
        %p331 = pneg %p66
        %p332 = pneg %p63
        %p333 = pneg %p87
        %p334 = pneg %p84
        %p335 = pneg %p108
        %p336 = pneg %p105
        %p337 = pneg %p129
        %p338 = pneg %p126
        %p339 = pneg %p150
        %p340 = pneg %p147
        %p341 = pneg %p171
        %p342 = pneg %p168
        %p343 = pneg %p192
        %p344 = pneg %p189
        %p345 = pneg %p213
        %p346 = pneg %p210
        %p347 = pneg %p234
        %p348 = pneg %p231
        %p349 = pneg %p260
        %p350 = pneg %p257
        %s351 = sand.u32 %s247, 1
        %s352 = scalar_lea.sflag [#allocation5], %s351
        %s353 = sand.u32 %s247, 1
        %s354 = smul.addr %s353, 32
        %s355 = scalar_lea.vmem [#allocation4], %s354
        %s356 = smul.u32 2, %s24
        %p357 = scmp.lt.s32.totalorder %s356, 3
        %s358 = scalar_select %p357, %s356, 3
        %s359 = smul.addr %s358, 4
        %s360 = smul.addr %s359, 8
        %s361 = scalar_lea.vmem %s0, %s360
        %s362 = smul.u32 2, %s24
        %s363 = smul.u32 2, %s24
        %364 = vst [vmem:[#allocation2] sm:$0xff] 0.0
        %vm365 = vcmask 130048
        %366 = vst.msk [vmem:[#allocation2 + $0x8] sm:$0xff] %vm365, 0.0
        %367 = vst [vmem:[#allocation2 + $0x30] sm:$0xff] 0.0
        %368 = vst.msk [vmem:[#allocation2 + $0x38] sm:$0xff] %vm365, 0.0
        %369 = vst [vmem:[#allocation2 + $0x60] sm:$0xff] 0.0
        %370 = vst.msk [vmem:[#allocation2 + $0x68] sm:$0xff] %vm365, 0.0
        %371 = vst [vmem:[#allocation3] sm:$0xff] 0.0
        %372 = vst.msk [vmem:[#allocation3 + $0x8] sm:$0xff] %vm365, 0.0
        %373 = vst [vmem:[#allocation3 + $0x30] sm:$0xff] 0.0
        %374 = vst.msk [vmem:[#allocation3 + $0x38] sm:$0xff] %vm365, 0.0
        %375 = vst [vmem:[#allocation3 + $0x60] sm:$0xff] 0.0
        %376 = vst.msk [vmem:[#allocation3 + $0x68] sm:$0xff] %vm365, 0.0
        %v377 = vld [vmem:[%s361] sm:$0xff]
        %v378 = vld [vmem:[%s361 + $0x8] sm:$0xff]
        %v379 = vld [vmem:[%s361 + $0x10] sm:$0xff]
        %v380 = vld [vmem:[%s361 + $0x18] sm:$0xff]
        %381 = vst [vmem:[#allocation2 + $0x10] sm:$0xff] %v377
        %382 = vst.msk [vmem:[#allocation2 + $0x18] sm:$0xff] %vm365, %v378
        %383 = vst [vmem:[#allocation2 + $0x20] sm:$0xff] %v379
        %384 = vst.msk [vmem:[#allocation2 + $0x28] sm:$0xff] %vm365, %v380
        %s385 = scalar_lea.vmem %s361, 32
        %v386 = vld [vmem:[%s385] sm:$0xff]
        %v387 = vld [vmem:[%s385 + $0x8] sm:$0xff]
        %v388 = vld [vmem:[%s385 + $0x10] sm:$0xff]
        %v389 = vld [vmem:[%s385 + $0x18] sm:$0xff]
        %390 = vst [vmem:[#allocation2 + $0x40] sm:$0xff] %v386
        %391 = vst.msk [vmem:[#allocation2 + $0x48] sm:$0xff] %vm365, %v387
        %392 = vst [vmem:[#allocation2 + $0x50] sm:$0xff] %v388
        %393 = vst.msk [vmem:[#allocation2 + $0x58] sm:$0xff] %vm365, %v389
        %v394 = vld [vmem:[%s1] sm:$0x1]
        %v395 = vld [vmem:[%s1 + $0x1] sm:$0x1]
        %v396 = vld [vmem:[%s1 + $0x2] sm:$0x1]
        %v397 = vld [vmem:[%s1 + $0x3] sm:$0x1]
        %v398 = vld [vmem:[%s1 + $0x4] sm:$0x1]
        %v399 = vld [vmem:[%s1 + $0x5] sm:$0x1]
        %v400 = vld [vmem:[%s1 + $0x6] sm:$0x1]
        %v401 = vld [vmem:[%s1 + $0x7] sm:$0x1]
        %v402 = vld [vmem:[%s1 + $0x8] sm:$0x1]
        %v403 = vld [vmem:[#allocation2] sm:$0xff]
        %v404 = vld [vmem:[#allocation2 + $0x10] sm:$0xff]
        %v405 = vld [vmem:[#allocation2 + $0x20] sm:$0xff]
        %v406 = vld [vmem:[#allocation2 + $0x30] sm:$0xff]
        %v407 = vld [vmem:[#allocation2 + $0x40] sm:$0xff]
        %v408 = vld [vmem:[#allocation2 + $0x50] sm:$0xff]
        %v409 = vld [vmem:[#allocation2 + $0x60] sm:$0xff]
        %v410 = vlaneseq
        %v411 = vshrl.u32 %v410, 7
        %v412 = vsub.s32 0, %v411
        %v413 = vrot.slane %v394, %v412
        %v414 = vmul.f32 %v403, %v413
        %v415 = vmul.f32 %v404, %v413
        %v416 = vmul.f32 %v405, %v413
        %v417 = vadd.f32 %v414, 0.0
        %v418 = vadd.f32 %v415, 0.0
        %v419 = vadd.f32 %v416, 0.0
        %v420 = vlaneseq
        %v421 = vshrl.u32 %v420, 7
        %v422 = vsub.s32 0, %v421
        %v423 = vrot.slane %v397, %v422
        %v424 = vmul.f32 %v404, %v423
        %v425 = vmul.f32 %v405, %v423
        %vm428 = vcmask 1046528
        %v429 = vrot.slane %v424, 1
        %v430 = vrot.slane %v425, 1
        %v431 = vsel %vm428, %v429, %v430
        %v435 = vadd.f32 %v417, %v429
        %v436 = vadd.f32 %v418, %v431
        %v437 = vadd.f32 %v419, %v430
        %v438 = vlaneseq
        %v439 = vshrl.u32 %v438, 7
        %v440 = vsub.s32 0, %v439
        %v441 = vrot.slane %v400, %v440
        %v442 = vmul.f32 %v404, %v441
        %v443 = vmul.f32 %v405, %v441
        %v444 = vmul.f32 %v406, %v441
        %vm448 = vcmask 1045504
        %v449 = vrot.slane %v442, 2
        %v450 = vrot.slane %v443, 2
        %v451 = vsel %vm448, %v449, %v450
        %v452 = vrot.slane %v444, 2
        %v453 = vsel %vm448, %v450, %v452
        %v457 = vadd.f32 %v435, %v449
        %v458 = vadd.f32 %v436, %v451
        %v459 = vadd.f32 %v437, %v453
        %v460 = vmul.f32 %v406, %v413
        %v461 = vmul.f32 %v407, %v413
        %v462 = vmul.f32 %v408, %v413
        %v463 = vadd.f32 %v460, 0.0
        %v464 = vadd.f32 %v461, 0.0
        %v465 = vadd.f32 %v462, 0.0
        %v466 = vmul.f32 %v407, %v423
        %v467 = vmul.f32 %v408, %v423
        %v470 = vrot.slane %v466, 1
        %v471 = vrot.slane %v467, 1
        %v472 = vsel %vm428, %v470, %v471
        %v476 = vadd.f32 %v463, %v470
        %v477 = vadd.f32 %v464, %v472
        %v478 = vadd.f32 %v465, %v471
        %v479 = vmul.f32 %v407, %v441
        %v480 = vmul.f32 %v408, %v441
        %v481 = vmul.f32 %v409, %v441
        %v485 = vrot.slane %v479, 2
        %v486 = vrot.slane %v480, 2
        %v487 = vsel %vm448, %v485, %v486
        %v488 = vrot.slane %v481, 2
        %v489 = vsel %vm448, %v486, %v488
        %v493 = vadd.f32 %v476, %v485
        %v494 = vadd.f32 %v477, %v487
        %v495 = vadd.f32 %v478, %v489
        %v496 = vld [vmem:[#allocation2 + $0x8] sm:$0xff]
        %v497 = vld [vmem:[#allocation2 + $0x18] sm:$0xff]
        %v498 = vld [vmem:[#allocation2 + $0x28] sm:$0xff]
        %v499 = vld [vmem:[#allocation2 + $0x38] sm:$0xff]
        %v500 = vld [vmem:[#allocation2 + $0x48] sm:$0xff]
        %v501 = vld [vmem:[#allocation2 + $0x58] sm:$0xff]
        %v502 = vld [vmem:[#allocation2 + $0x68] sm:$0xff]
        %v503 = vlaneseq
        %v504 = vshrl.u32 %v503, 7
        %v505 = vsub.s32 0, %v504
        %v506 = vrot.slane %v395, %v505
        %508 = vrot.lane.b32.xlu0 %v506, 8
        %v509 = vpop.permute.xlu0 %508
        %v511 = vmul.f32 %v403, %v509
        %v512 = vmul.f32 %v496, %v509
        %v513 = vmul.f32 %v404, %v509
        %v514 = vmul.f32 %v497, %v509
        %v515 = vmul.f32 %v405, %v509
        %v516 = vmul.f32 %v498, %v509
        %523 = vrot.lane.b32.xlu0 %v511, 120
        %v524 = vpop.permute.xlu0 %523
        %525 = vrot.lane.b32.xlu0 %v512, 120
        %v526 = vpop.permute.xlu0 %525
        %527 = vrot.lane.b32.xlu0 %v513, 120
        %v528 = vpop.permute.xlu0 %527
        %529 = vrot.lane.b32.xlu0 %v514, 120
        %v530 = vpop.permute.xlu0 %529
        %531 = vrot.lane.b32.xlu0 %v515, 120
        %v532 = vpop.permute.xlu0 %531
        %533 = vrot.lane.b32.xlu0 %v516, 120
        %v534 = vpop.permute.xlu0 %533
        %vm535 = vcmask 982016
        %v536 = vsel %vm535, %v524, %v526
        %v537 = vsel %vm535, %v528, %v530
        %v538 = vsel %vm535, %v532, %v534
        %v542 = vadd.f32 %v457, %v536
        %v543 = vadd.f32 %v458, %v537
        %v544 = vadd.f32 %v459, %v538
        %v545 = vlaneseq
        %v546 = vshrl.u32 %v545, 7
        %v547 = vsub.s32 0, %v546
        %v548 = vrot.slane %v398, %v547
        %550 = vrot.lane.b32.xlu0 %v548, 8
        %v551 = vpop.permute.xlu0 %550
        %v553 = vmul.f32 %v404, %v551
        %v554 = vmul.f32 %v497, %v551
        %v555 = vmul.f32 %v405, %v551
        %v556 = vmul.f32 %v498, %v551
        %v561 = vrot.slane %v553, 1
        %v562 = vrot.slane %v554, 1
        %v563 = vrot.slane %v555, 1
        %v564 = vsel %vm428, %v561, %v563
        %v565 = vrot.slane %v556, 1
        %v566 = vsel %vm428, %v562, %v565
        %567 = vrot.lane.b32.xlu0 %v561, 120
        %v568 = vpop.permute.xlu0 %567
        %569 = vrot.lane.b32.xlu0 %v562, 120
        %v570 = vpop.permute.xlu0 %569
        %571 = vrot.lane.b32.xlu0 %v564, 120
        %v572 = vpop.permute.xlu0 %571
        %573 = vrot.lane.b32.xlu0 %v566, 120
        %v574 = vpop.permute.xlu0 %573
        %575 = vrot.lane.b32.xlu0 %v563, 120
        %v576 = vpop.permute.xlu0 %575
        %577 = vrot.lane.b32.xlu0 %v565, 120
        %v578 = vpop.permute.xlu0 %577
        %v579 = vsel %vm535, %v568, %v570
        %v580 = vsel %vm535, %v572, %v574
        %v581 = vsel %vm535, %v576, %v578
        %v585 = vadd.f32 %v542, %v579
        %v586 = vadd.f32 %v543, %v580
        %v587 = vadd.f32 %v544, %v581
        %v588 = vlaneseq
        %v589 = vshrl.u32 %v588, 7
        %v590 = vsub.s32 0, %v589
        %v591 = vrot.slane %v401, %v590
        %593 = vrot.lane.b32.xlu0 %v591, 8
        %v594 = vpop.permute.xlu0 %593
        %v596 = vmul.f32 %v404, %v594
        %v597 = vmul.f32 %v497, %v594
        %v598 = vmul.f32 %v405, %v594
        %v599 = vmul.f32 %v498, %v594
        %v600 = vmul.f32 %v406, %v594
        %v601 = vmul.f32 %v499, %v594
        %v608 = vrot.slane %v596, 2
        %v609 = vrot.slane %v597, 2
        %v610 = vrot.slane %v598, 2
        %v611 = vsel %vm448, %v608, %v610
        %v612 = vrot.slane %v599, 2
        %v613 = vsel %vm448, %v609, %v612
        %v614 = vrot.slane %v600, 2
        %v615 = vsel %vm448, %v610, %v614
        %v616 = vrot.slane %v601, 2
        %v617 = vsel %vm448, %v612, %v616
        %618 = vrot.lane.b32.xlu0 %v608, 120
        %v619 = vpop.permute.xlu0 %618
        %620 = vrot.lane.b32.xlu0 %v609, 120
        %v621 = vpop.permute.xlu0 %620
        %622 = vrot.lane.b32.xlu0 %v611, 120
        %v623 = vpop.permute.xlu0 %622
        %624 = vrot.lane.b32.xlu0 %v613, 120
        %v625 = vpop.permute.xlu0 %624
        %626 = vrot.lane.b32.xlu0 %v615, 120
        %v627 = vpop.permute.xlu0 %626
        %628 = vrot.lane.b32.xlu0 %v617, 120
        %v629 = vpop.permute.xlu0 %628
        %v630 = vsel %vm535, %v619, %v621
        %v631 = vsel %vm535, %v623, %v625
        %v632 = vsel %vm535, %v627, %v629
        %v636 = vadd.f32 %v585, %v630
        %v637 = vadd.f32 %v586, %v631
        %v638 = vadd.f32 %v587, %v632
        %v639 = vmul.f32 %v406, %v509
        %v640 = vmul.f32 %v499, %v509
        %v641 = vmul.f32 %v407, %v509
        %v642 = vmul.f32 %v500, %v509
        %v643 = vmul.f32 %v408, %v509
        %v644 = vmul.f32 %v501, %v509
        %651 = vrot.lane.b32.xlu0 %v639, 120
        %v652 = vpop.permute.xlu0 %651
        %653 = vrot.lane.b32.xlu0 %v640, 120
        %v654 = vpop.permute.xlu0 %653
        %655 = vrot.lane.b32.xlu0 %v641, 120
        %v656 = vpop.permute.xlu0 %655
        %657 = vrot.lane.b32.xlu0 %v642, 120
        %v658 = vpop.permute.xlu0 %657
        %659 = vrot.lane.b32.xlu0 %v643, 120
        %v660 = vpop.permute.xlu0 %659
        %661 = vrot.lane.b32.xlu0 %v644, 120
        %v662 = vpop.permute.xlu0 %661
        %v663 = vsel %vm535, %v652, %v654
        %v664 = vsel %vm535, %v656, %v658
        %v665 = vsel %vm535, %v660, %v662
        %v669 = vadd.f32 %v493, %v663
        %v670 = vadd.f32 %v494, %v664
        %v671 = vadd.f32 %v495, %v665
        %v672 = vmul.f32 %v407, %v551
        %v673 = vmul.f32 %v500, %v551
        %v674 = vmul.f32 %v408, %v551
        %v675 = vmul.f32 %v501, %v551
        %v680 = vrot.slane %v672, 1
        %v681 = vrot.slane %v673, 1
        %v682 = vrot.slane %v674, 1
        %v683 = vsel %vm428, %v680, %v682
        %v684 = vrot.slane %v675, 1
        %v685 = vsel %vm428, %v681, %v684
        %686 = vrot.lane.b32.xlu0 %v680, 120
        %v687 = vpop.permute.xlu0 %686
        %688 = vrot.lane.b32.xlu0 %v681, 120
        %v689 = vpop.permute.xlu0 %688
        %690 = vrot.lane.b32.xlu0 %v683, 120
        %v691 = vpop.permute.xlu0 %690
        %692 = vrot.lane.b32.xlu0 %v685, 120
        %v693 = vpop.permute.xlu0 %692
        %694 = vrot.lane.b32.xlu0 %v682, 120
        %v695 = vpop.permute.xlu0 %694
        %696 = vrot.lane.b32.xlu0 %v684, 120
        %v697 = vpop.permute.xlu0 %696
        %v698 = vsel %vm535, %v687, %v689
        %v699 = vsel %vm535, %v691, %v693
        %v700 = vsel %vm535, %v695, %v697
        %v704 = vadd.f32 %v669, %v698
        %v705 = vadd.f32 %v670, %v699
        %v706 = vadd.f32 %v671, %v700
        %v707 = vmul.f32 %v407, %v594
        %v708 = vmul.f32 %v500, %v594
        %v709 = vmul.f32 %v408, %v594
        %v710 = vmul.f32 %v501, %v594
        %v711 = vmul.f32 %v409, %v594
        %v712 = vmul.f32 %v502, %v594
        %v719 = vrot.slane %v707, 2
        %v720 = vrot.slane %v708, 2
        %v721 = vrot.slane %v709, 2
        %v722 = vsel %vm448, %v719, %v721
        %v723 = vrot.slane %v710, 2
        %v724 = vsel %vm448, %v720, %v723
        %v725 = vrot.slane %v711, 2
        %v726 = vsel %vm448, %v721, %v725
        %v727 = vrot.slane %v712, 2
        %v728 = vsel %vm448, %v723, %v727
        %729 = vrot.lane.b32.xlu0 %v719, 120
        %v730 = vpop.permute.xlu0 %729
        %731 = vrot.lane.b32.xlu0 %v720, 120
        %v732 = vpop.permute.xlu0 %731
        %733 = vrot.lane.b32.xlu0 %v722, 120
        %v734 = vpop.permute.xlu0 %733
        %735 = vrot.lane.b32.xlu0 %v724, 120
        %v736 = vpop.permute.xlu0 %735
        %737 = vrot.lane.b32.xlu0 %v726, 120
        %v738 = vpop.permute.xlu0 %737
        %739 = vrot.lane.b32.xlu0 %v728, 120
        %v740 = vpop.permute.xlu0 %739
        %v741 = vsel %vm535, %v730, %v732
        %v742 = vsel %vm535, %v734, %v736
        %v743 = vsel %vm535, %v738, %v740
        %v747 = vadd.f32 %v704, %v741
        %v748 = vadd.f32 %v705, %v742
        %v749 = vadd.f32 %v706, %v743
        %v750 = vlaneseq
        %v751 = vshrl.u32 %v750, 7
        %v752 = vsub.s32 0, %v751
        %v753 = vrot.slane %v396, %v752
        %755 = vrot.lane.b32.xlu0 %v753, 16
        %v756 = vpop.permute.xlu0 %755
        %v758 = vmul.f32 %v403, %v756
        %v759 = vmul.f32 %v496, %v756
        %v760 = vmul.f32 %v404, %v756
        %v761 = vmul.f32 %v497, %v756
        %v762 = vmul.f32 %v405, %v756
        %v763 = vmul.f32 %v498, %v756
        %770 = vrot.lane.b32.xlu0 %v758, 112
        %v771 = vpop.permute.xlu0 %770
        %772 = vrot.lane.b32.xlu0 %v759, 112
        %v773 = vpop.permute.xlu0 %772
        %774 = vrot.lane.b32.xlu0 %v760, 112
        %v775 = vpop.permute.xlu0 %774
        %776 = vrot.lane.b32.xlu0 %v761, 112
        %v777 = vpop.permute.xlu0 %776
        %778 = vrot.lane.b32.xlu0 %v762, 112
        %v779 = vpop.permute.xlu0 %778
        %780 = vrot.lane.b32.xlu0 %v763, 112
        %v781 = vpop.permute.xlu0 %780
        %vm782 = vcmask 916480
        %v783 = vsel %vm782, %v771, %v773
        %v784 = vsel %vm782, %v775, %v777
        %v785 = vsel %vm782, %v779, %v781
        %v789 = vadd.f32 %v636, %v783
        %v790 = vadd.f32 %v637, %v784
        %v791 = vadd.f32 %v638, %v785
        %v792 = vlaneseq
        %v793 = vshrl.u32 %v792, 7
        %v794 = vsub.s32 0, %v793
        %v795 = vrot.slane %v399, %v794
        %797 = vrot.lane.b32.xlu0 %v795, 16
        %v798 = vpop.permute.xlu0 %797
        %v800 = vmul.f32 %v404, %v798
        %v801 = vmul.f32 %v497, %v798
        %v802 = vmul.f32 %v405, %v798
        %v803 = vmul.f32 %v498, %v798
        %v808 = vrot.slane %v800, 1
        %v809 = vrot.slane %v801, 1
        %v810 = vrot.slane %v802, 1
        %v811 = vsel %vm428, %v808, %v810
        %v812 = vrot.slane %v803, 1
        %v813 = vsel %vm428, %v809, %v812
        %814 = vrot.lane.b32.xlu0 %v808, 112
        %v815 = vpop.permute.xlu0 %814
        %816 = vrot.lane.b32.xlu0 %v809, 112
        %v817 = vpop.permute.xlu0 %816
        %818 = vrot.lane.b32.xlu0 %v811, 112
        %v819 = vpop.permute.xlu0 %818
        %820 = vrot.lane.b32.xlu0 %v813, 112
        %v821 = vpop.permute.xlu0 %820
        %822 = vrot.lane.b32.xlu0 %v810, 112
        %v823 = vpop.permute.xlu0 %822
        %824 = vrot.lane.b32.xlu0 %v812, 112
        %v825 = vpop.permute.xlu0 %824
        %v826 = vsel %vm782, %v815, %v817
        %v827 = vsel %vm782, %v819, %v821
        %v828 = vsel %vm782, %v823, %v825
        %v832 = vadd.f32 %v789, %v826
        %v833 = vadd.f32 %v790, %v827
        %v834 = vadd.f32 %v791, %v828
        %v835 = vlaneseq
        %v836 = vshrl.u32 %v835, 7
        %v837 = vsub.s32 0, %v836
        %v838 = vrot.slane %v402, %v837
        %840 = vrot.lane.b32.xlu0 %v838, 16
        %v841 = vpop.permute.xlu0 %840
        %v843 = vmul.f32 %v404, %v841
        %v844 = vmul.f32 %v497, %v841
        %v845 = vmul.f32 %v405, %v841
        %v846 = vmul.f32 %v498, %v841
        %v847 = vmul.f32 %v406, %v841
        %v848 = vmul.f32 %v499, %v841
        %v855 = vrot.slane %v843, 2
        %v856 = vrot.slane %v844, 2
        %v857 = vrot.slane %v845, 2
        %v858 = vsel %vm448, %v855, %v857
        %v859 = vrot.slane %v846, 2
        %v860 = vsel %vm448, %v856, %v859
        %v861 = vrot.slane %v847, 2
        %v862 = vsel %vm448, %v857, %v861
        %v863 = vrot.slane %v848, 2
        %v864 = vsel %vm448, %v859, %v863
        %865 = vrot.lane.b32.xlu0 %v855, 112
        %v866 = vpop.permute.xlu0 %865
        %867 = vrot.lane.b32.xlu0 %v856, 112
        %v868 = vpop.permute.xlu0 %867
        %869 = vrot.lane.b32.xlu0 %v858, 112
        %v870 = vpop.permute.xlu0 %869
        %871 = vrot.lane.b32.xlu0 %v860, 112
        %v872 = vpop.permute.xlu0 %871
        %873 = vrot.lane.b32.xlu0 %v862, 112
        %v874 = vpop.permute.xlu0 %873
        %875 = vrot.lane.b32.xlu0 %v864, 112
        %v876 = vpop.permute.xlu0 %875
        %v877 = vsel %vm782, %v866, %v868
        %v878 = vsel %vm782, %v870, %v872
        %v879 = vsel %vm782, %v874, %v876
        %v883 = vadd.f32 %v832, %v877
        %v884 = vadd.f32 %v833, %v878
        %v885 = vadd.f32 %v834, %v879
        %v886 = vmul.f32 %v406, %v756
        %v887 = vmul.f32 %v499, %v756
        %v888 = vmul.f32 %v407, %v756
        %v889 = vmul.f32 %v500, %v756
        %v890 = vmul.f32 %v408, %v756
        %v891 = vmul.f32 %v501, %v756
        %898 = vrot.lane.b32.xlu0 %v886, 112
        %v899 = vpop.permute.xlu0 %898
        %900 = vrot.lane.b32.xlu0 %v887, 112
        %v901 = vpop.permute.xlu0 %900
        %902 = vrot.lane.b32.xlu0 %v888, 112
        %v903 = vpop.permute.xlu0 %902
        %904 = vrot.lane.b32.xlu0 %v889, 112
        %v905 = vpop.permute.xlu0 %904
        %906 = vrot.lane.b32.xlu0 %v890, 112
        %v907 = vpop.permute.xlu0 %906
        %908 = vrot.lane.b32.xlu0 %v891, 112
        %v909 = vpop.permute.xlu0 %908
        %v910 = vsel %vm782, %v899, %v901
        %v911 = vsel %vm782, %v903, %v905
        %v912 = vsel %vm782, %v907, %v909
        %v916 = vadd.f32 %v747, %v910
        %v917 = vadd.f32 %v748, %v911
        %v918 = vadd.f32 %v749, %v912
        %v919 = vmul.f32 %v407, %v798
        %v920 = vmul.f32 %v500, %v798
        %v921 = vmul.f32 %v408, %v798
        %v922 = vmul.f32 %v501, %v798
        %v927 = vrot.slane %v919, 1
        %v928 = vrot.slane %v920, 1
        %v929 = vrot.slane %v921, 1
        %v930 = vsel %vm428, %v927, %v929
        %v931 = vrot.slane %v922, 1
        %v932 = vsel %vm428, %v928, %v931
        %933 = vrot.lane.b32.xlu0 %v927, 112
        %v934 = vpop.permute.xlu0 %933
        %935 = vrot.lane.b32.xlu0 %v928, 112
        %v936 = vpop.permute.xlu0 %935
        %937 = vrot.lane.b32.xlu0 %v930, 112
        %v938 = vpop.permute.xlu0 %937
        %939 = vrot.lane.b32.xlu0 %v932, 112
        %v940 = vpop.permute.xlu0 %939
        %941 = vrot.lane.b32.xlu0 %v929, 112
        %v942 = vpop.permute.xlu0 %941
        %943 = vrot.lane.b32.xlu0 %v931, 112
        %v944 = vpop.permute.xlu0 %943
        %v945 = vsel %vm782, %v934, %v936
        %v946 = vsel %vm782, %v938, %v940
        %v947 = vsel %vm782, %v942, %v944
        %v951 = vadd.f32 %v916, %v945
        %v952 = vadd.f32 %v917, %v946
        %v953 = vadd.f32 %v918, %v947
        %v954 = vmul.f32 %v407, %v841
        %v955 = vmul.f32 %v500, %v841
        %v956 = vmul.f32 %v408, %v841
        %v957 = vmul.f32 %v501, %v841
        %v958 = vmul.f32 %v409, %v841
        %v959 = vmul.f32 %v502, %v841
        %v966 = vrot.slane %v954, 2
        %v967 = vrot.slane %v955, 2
        %v968 = vrot.slane %v956, 2
        %v969 = vsel %vm448, %v966, %v968
        %v970 = vrot.slane %v957, 2
        %v971 = vsel %vm448, %v967, %v970
        %v972 = vrot.slane %v958, 2
        %v973 = vsel %vm448, %v968, %v972
        %v974 = vrot.slane %v959, 2
        %v975 = vsel %vm448, %v970, %v974
        %976 = vrot.lane.b32.xlu0 %v966, 112
        %v977 = vpop.permute.xlu0 %976
        %978 = vrot.lane.b32.xlu0 %v967, 112
        %v979 = vpop.permute.xlu0 %978
        %980 = vrot.lane.b32.xlu0 %v969, 112
        %v981 = vpop.permute.xlu0 %980
        %982 = vrot.lane.b32.xlu0 %v971, 112
        %v983 = vpop.permute.xlu0 %982
        %984 = vrot.lane.b32.xlu0 %v973, 112
        %v985 = vpop.permute.xlu0 %984
        %986 = vrot.lane.b32.xlu0 %v975, 112
        %v987 = vpop.permute.xlu0 %986
        %v988 = vsel %vm782, %v977, %v979
        %v989 = vsel %vm782, %v981, %v983
        %v990 = vsel %vm782, %v985, %v987
        %v994 = vadd.f32 %v951, %v988
        %v995 = vadd.f32 %v952, %v989
        %v996 = vadd.f32 %v953, %v990
        %vm1000 = vcmask 1040384
        %v1001 = vrot.slane %v883, 7
        %v1002 = vrot.slane %v884, 7
        %v1003 = vsel %vm1000, %v1001, %v1002
        %v1004 = vrot.slane %v885, 7
        %v1005 = vsel %vm1000, %v1002, %v1004
        %v1011 = vrot.slane %v994, 7
        %v1012 = vrot.slane %v995, 7
        %v1013 = vsel %vm1000, %v1011, %v1012
        %v1014 = vrot.slane %v996, 7
        %v1015 = vsel %vm1000, %v1012, %v1014
        %v1018 = vld [vmem:[%s2] sm:$0xff]
        %v1019 = vld [vmem:[%s2 + $0x8] sm:$0xff]
        %v1020 = vld [vmem:[%s2 + $0x10] sm:$0xff]
        %v1021 = vld [vmem:[%s2 + $0x18] sm:$0xff]
        %v1022 = vld [vmem:[%s2 + $0x20] sm:$0xff]
        %v1023 = vld [vmem:[%s2 + $0x28] sm:$0xff]
        %v1024 = vld [vmem:[%s2 + $0x30] sm:$0xff]
        %v1025 = vld [vmem:[%s2 + $0x38] sm:$0xff]
        %v1026 = vld [vmem:[%s2 + $0x40] sm:$0xff]
        %v1027 = vld [vmem:[%s2 + $0x48] sm:$0xff]
        %v1028 = vld [vmem:[%s2 + $0x50] sm:$0xff]
        %v1029 = vld [vmem:[%s2 + $0x58] sm:$0xff]
        %v1030 = vld [vmem:[%s2 + $0x60] sm:$0xff]
        %v1031 = vld [vmem:[%s2 + $0x68] sm:$0xff]
        %v1032 = vld [vmem:[%s2 + $0x70] sm:$0xff]
        %v1033 = vld [vmem:[%s2 + $0x78] sm:$0xff]
        %v1034 = vld [vmem:[%s2 + $0x80] sm:$0xff]
        %v1035 = vld [vmem:[%s2 + $0x88] sm:$0xff]
        %v1036 = vld [vmem:[%s2 + $0x90] sm:$0xff]
        %v1037 = vld [vmem:[%s2 + $0x98] sm:$0xff]
        %v1038 = vld [vmem:[%s2 + $0xa0] sm:$0xff]
        %v1039 = vld [vmem:[%s2 + $0xa8] sm:$0xff]
        %v1040 = vld [vmem:[%s2 + $0xb0] sm:$0xff]
        %v1041 = vld [vmem:[%s2 + $0xb8] sm:$0xff]
        %v1042 = vld [vmem:[%s2 + $0xc0] sm:$0xff]
        %v1043 = vld [vmem:[%s2 + $0xc8] sm:$0xff]
        %v1044 = vld [vmem:[%s2 + $0xd0] sm:$0xff]
        %v1045 = vld [vmem:[%s2 + $0xd8] sm:$0xff]
        %v1046 = vld [vmem:[%s2 + $0xe0] sm:$0xff]
        %v1047 = vld [vmem:[%s2 + $0xe8] sm:$0xff]
        %v1048 = vld [vmem:[%s2 + $0xf0] sm:$0xff]
        %v1049 = vld [vmem:[%s2 + $0xf8] sm:$0xff]
        %v1050 = vld [vmem:[%s3] sm:$0x3]
        %v1051 = vld [vmem:[%s4] sm:$0x3]
        %v1052 = vld [vmem:[%s5] sm:$0x3]
        %v1054 = vlaneseq
        %v1055 = vshrl.u32 %v1054, 7
        %v1056 = vsub.s32 0, %v1055
        %v1057 = vrot.slane %v1050, %v1056
        %v1058 = vlaneseq
        %v1059 = vshrl.u32 %v1058, 7
        %v1060 = vsub.s32 1, %v1059
        %v1061 = vrot.slane %v1050, %v1060
        %1064 = vmatprep.subr.mxu0 %v1019
        %1065 = vmatpush1.msra.mxu0 %v1018
        %1066 = vmatprep.subr.mxu0 %v1021
        %1067 = vmatpush1.msra.mxu0 %v1020
        %1068 = vmatprep.subr.mxu0 %v1023
        %1069 = vmatpush1.msra.mxu0 %v1022
        %1070 = vmatprep.subr.mxu0 %v1025
        %1071 = vmatpush1.msra.mxu0 %v1024
        %1072 = vmatprep.subr.mxu0 %v1027
        %1073 = vmatpush1.msra.mxu0 %v1026
        %1074 = vmatprep.subr.mxu0 %v1029
        %1075 = vmatpush1.msra.mxu0 %v1028
        %1076 = vmatprep.subr.mxu0 %v1031
        %1077 = vmatpush1.msra.mxu0 %v1030
        %1078 = vmatprep.subr.mxu0 %v1033
        %1079 = vmatpush1.msra.mxu0 %v1032
        %1080 = vmatprep.subr.mxu0 %v1035
        %1081 = vmatpush1.msra.mxu0 %v1034
        %1082 = vmatprep.subr.mxu0 %v1037
        %1083 = vmatpush1.msra.mxu0 %v1036
        %1084 = vmatprep.subr.mxu0 %v1039
        %1085 = vmatpush1.msra.mxu0 %v1038
        %1086 = vmatprep.subr.mxu0 %v1041
        %1087 = vmatpush1.msra.mxu0 %v1040
        %1088 = vmatprep.subr.mxu0 %v1043
        %1089 = vmatpush1.msra.mxu0 %v1042
        %1090 = vmatprep.subr.mxu0 %v1045
        %1091 = vmatpush1.msra.mxu0 %v1044
        %1092 = vmatprep.subr.mxu0 %v1047
        %1093 = vmatpush1.msra.mxu0 %v1046
        %1094 = vmatprep.subr.mxu0 %v1049
        %1095 = vmatpush1.msra.mxu0 %v1048
        %1096 = vmatprep.subr.mxu0 0.0
        %1097 = vmatpush1.msra.mxu0 0.0
        %1098 = vmatprep.subr.mxu0 0.0
        %1099 = vmatpush1.msra.mxu0 0.0
        %1100 = vmatprep.subr.mxu0 0.0
        %1101 = vmatpush1.msra.mxu0 0.0
        %1102 = vmatprep.subr.mxu0 0.0
        %1103 = vmatpush1.msra.mxu0 0.0
        %1104 = vmatprep.subr.mxu0 0.0
        %1105 = vmatpush1.msra.mxu0 0.0
        %1106 = vmatprep.subr.mxu0 0.0
        %1107 = vmatpush1.msra.mxu0 0.0
        %1108 = vmatprep.subr.mxu0 0.0
        %1109 = vmatpush1.msra.mxu0 0.0
        %1110 = vmatprep.subr.mxu0 0.0
        %1111 = vmatpush1.msra.mxu0 0.0
        %1112 = vmatprep.subr.mxu0 0.0
        %1113 = vmatpush1.msra.mxu0 0.0
        %1114 = vmatprep.subr.mxu0 0.0
        %1115 = vmatpush1.msra.mxu0 0.0
        %1116 = vmatprep.subr.mxu0 0.0
        %1117 = vmatpush1.msra.mxu0 0.0
        %1118 = vmatprep.subr.mxu0 0.0
        %1119 = vmatpush1.msra.mxu0 0.0
        %1120 = vmatprep.subr.mxu0 0.0
        %1121 = vmatpush1.msra.mxu0 0.0
        %1122 = vmatprep.subr.mxu0 0.0
        %1123 = vmatpush1.msra.mxu0 0.0
        %1124 = vmatprep.subr.mxu0 0.0
        %1125 = vmatpush1.msra.mxu0 0.0
        %1126 = vmatprep.subr.mxu0 0.0
        %1127 = vmatpush1.msra.mxu0 0.0
        %1128 = vmatprep.mubr.f32.mxu0 0.0
        %1129 = vmatmul.mubr.f32.gmra.mrb[0].mxu0 %v1003
        %v1130 = vpop.f32.mrb[0].mxu0
        %v1131 = vadd.f32 %v1057, %v1130
        %v1132 = vpop.f32.mrb[0].mxu0
        %v1133 = vadd.f32 %v1061, %v1132
        %1134 = vmatprep.mubr.f32.mxu0 0.0
        %1135 = vmatmul.mubr.f32.gmra.mrb[0].mxu0 %v1005
        %v1136 = vpop.f32.mrb[0].mxu0
        %v1137 = vadd.f32 %v1057, %v1136
        %v1138 = vpop.f32.mrb[0].mxu0
        %v1139 = vadd.f32 %v1061, %v1138
        %1140 = vmatprep.mubr.f32.mxu0 0.0
        %1141 = vmatmul.mubr.f32.gmra.mrb[0].mxu0 %v1013
        %v1142 = vpop.f32.mrb[0].mxu0
        %v1143 = vadd.f32 %v1057, %v1142
        %v1144 = vpop.f32.mrb[0].mxu0
        %v1145 = vadd.f32 %v1061, %v1144
        %1146 = vmatprep.mubr.f32.mxu0 0.0
        %1147 = vmatmul.mubr.f32.gmra.mrb[0].mxu0 %v1015
        %v1148 = vpop.f32.mrb[0].mxu0
        %v1149 = vadd.f32 %v1057, %v1148
        %v1150 = vpop.f32.mrb[0].mxu0
        %v1151 = vadd.f32 %v1061, %v1150
        %1152 = vdwg.mxu0
        %v1153 = vmax.f32 %v1131, 0.0
        %v1154 = vmax.f32 %v1133, 0.0
        %v1155 = vmax.f32 %v1137, 0.0
        %v1156 = vmax.f32 %v1139, 0.0
        %v1157 = vmax.f32 %v1143, 0.0
        %v1158 = vmax.f32 %v1145, 0.0
        %v1159 = vmax.f32 %v1149, 0.0
        %v1160 = vmax.f32 %v1151, 0.0
        %v1162 = vlaneseq
        %v1163 = vshrl.u32 %v1162, 7
        %v1164 = vsub.s32 0, %v1163
        %v1165 = vrot.slane %v1051, %v1164
        %v1166 = vlaneseq
        %v1167 = vshrl.u32 %v1166, 7
        %v1168 = vsub.s32 1, %v1167
        %v1169 = vrot.slane %v1051, %v1168
        %v1172 = vmul.f32 %v1153, %v1165
        %v1173 = vmul.f32 %v1154, %v1169
        %v1174 = vmul.f32 %v1155, %v1165
        %v1175 = vmul.f32 %v1156, %v1169
        %v1176 = vmul.f32 %v1157, %v1165
        %v1177 = vmul.f32 %v1158, %v1169
        %v1178 = vmul.f32 %v1159, %v1165
        %v1179 = vmul.f32 %v1160, %v1169
        %v1181 = vlaneseq
        %v1182 = vshrl.u32 %v1181, 7
        %v1183 = vsub.s32 0, %v1182
        %v1184 = vrot.slane %v1052, %v1183
        %v1185 = vlaneseq
        %v1186 = vshrl.u32 %v1185, 7
        %v1187 = vsub.s32 1, %v1186
        %v1188 = vrot.slane %v1052, %v1187
        %v1191 = vadd.f32 %v1172, %v1184
        %v1192 = vadd.f32 %v1173, %v1188
        %v1193 = vadd.f32 %v1174, %v1184
        %v1194 = vadd.f32 %v1175, %v1188
        %v1195 = vadd.f32 %v1176, %v1184
        %v1196 = vadd.f32 %v1177, %v1188
        %v1197 = vadd.f32 %v1178, %v1184
        %v1198 = vadd.f32 %v1179, %v1188
        %v1199 = vmax.f32 %v1191, 0.0
        %v1200 = vmax.f32 %v1192, 0.0
        %v1201 = vmax.f32 %v1193, 0.0
        %v1202 = vmax.f32 %v1194, 0.0
        %v1203 = vmax.f32 %v1195, 0.0
        %v1204 = vmax.f32 %v1196, 0.0
        %v1205 = vmax.f32 %v1197, 0.0
        %v1206 = vmax.f32 %v1198, 0.0
        %1207 = vst [vmem:[#allocation3 + $0x10] sm:$0xff] %v1199
        %1208 = vst.msk [vmem:[#allocation3 + $0x18] sm:$0xff] %vm365, %v1200
        %1209 = vst [vmem:[#allocation3 + $0x20] sm:$0xff] %v1201
        %1210 = vst.msk [vmem:[#allocation3 + $0x28] sm:$0xff] %vm365, %v1202
        %1211 = vst [vmem:[#allocation3 + $0x40] sm:$0xff] %v1203
        %1212 = vst.msk [vmem:[#allocation3 + $0x48] sm:$0xff] %vm365, %v1204
        %1213 = vst [vmem:[#allocation3 + $0x50] sm:$0xff] %v1205
        %1214 = vst.msk [vmem:[#allocation3 + $0x58] sm:$0xff] %vm365, %v1206
        %s1215 = scalar_lea.vmem %s1, 16
        %v1216 = vld [vmem:[%s1215] sm:$0x1]
        %v1217 = vld [vmem:[%s1215 + $0x1] sm:$0x1]
        %v1218 = vld [vmem:[%s1215 + $0x2] sm:$0x1]
        %v1219 = vld [vmem:[%s1215 + $0x3] sm:$0x1]
        %v1220 = vld [vmem:[%s1215 + $0x4] sm:$0x1]
        %v1221 = vld [vmem:[%s1215 + $0x5] sm:$0x1]
        %v1222 = vld [vmem:[%s1215 + $0x6] sm:$0x1]
        %v1223 = vld [vmem:[%s1215 + $0x7] sm:$0x1]
        %v1224 = vld [vmem:[%s1215 + $0x8] sm:$0x1]
        %s1225 = scalar_lea.vmem %s1, 32
        %v1226 = vld [vmem:[%s1225] sm:$0x1]
        %v1227 = vld [vmem:[%s1225 + $0x1] sm:$0x1]
        %v1228 = vld [vmem:[%s1225 + $0x2] sm:$0x1]
        %v1229 = vld [vmem:[%s1225 + $0x3] sm:$0x1]
        %v1230 = vld [vmem:[%s1225 + $0x4] sm:$0x1]
        %v1231 = vld [vmem:[%s1225 + $0x5] sm:$0x1]
        %v1232 = vld [vmem:[%s1225 + $0x6] sm:$0x1]
        %v1233 = vld [vmem:[%s1225 + $0x7] sm:$0x1]
        %v1234 = vld [vmem:[%s1225 + $0x8] sm:$0x1]
        %v1235 = vld [vmem:[#allocation3] sm:$0xff]
        %v1236 = vld [vmem:[#allocation3 + $0x10] sm:$0xff]
        %v1237 = vld [vmem:[#allocation3 + $0x20] sm:$0xff]
        %v1238 = vld [vmem:[#allocation3 + $0x30] sm:$0xff]
        %v1239 = vld [vmem:[#allocation3 + $0x40] sm:$0xff]
        %v1240 = vld [vmem:[#allocation3 + $0x50] sm:$0xff]
        %v1241 = vld [vmem:[#allocation3 + $0x60] sm:$0xff]
        %v1242 = vlaneseq
        %v1243 = vshrl.u32 %v1242, 7
        %v1244 = vsub.s32 0, %v1243
        %v1245 = vrot.slane %v1216, %v1244
        %v1246 = vmul.f32 %v1235, %v1245
        %v1247 = vmul.f32 %v1236, %v1245
        %v1248 = vmul.f32 %v1237, %v1245
        %v1249 = vadd.f32 %v1246, 0.0
        %v1250 = vadd.f32 %v1247, 0.0
        %v1251 = vadd.f32 %v1248, 0.0
        %v1252 = vlaneseq
        %v1253 = vshrl.u32 %v1252, 7
        %v1254 = vsub.s32 0, %v1253
        %v1255 = vrot.slane %v1226, %v1254
        %v1256 = vmul.f32 %v1235, %v1255
        %v1257 = vmul.f32 %v1236, %v1255
        %v1258 = vmul.f32 %v1237, %v1255
        %v1259 = vadd.f32 %v1256, 0.0
        %v1260 = vadd.f32 %v1257, 0.0
        %v1261 = vadd.f32 %v1258, 0.0
        %v1262 = vlaneseq
        %v1263 = vshrl.u32 %v1262, 7
        %v1264 = vsub.s32 0, %v1263
        %v1265 = vrot.slane %v1219, %v1264
        %v1266 = vmul.f32 %v1236, %v1265
        %v1267 = vmul.f32 %v1237, %v1265
        %v1270 = vrot.slane %v1266, 1
        %v1271 = vrot.slane %v1267, 1
        %v1272 = vsel %vm428, %v1270, %v1271
        %v1276 = vadd.f32 %v1249, %v1270
        %v1277 = vadd.f32 %v1250, %v1272
        %v1278 = vadd.f32 %v1251, %v1271
        %v1279 = vlaneseq
        %v1280 = vshrl.u32 %v1279, 7
        %v1281 = vsub.s32 0, %v1280
        %v1282 = vrot.slane %v1229, %v1281
        %v1283 = vmul.f32 %v1236, %v1282
        %v1284 = vmul.f32 %v1237, %v1282
        %v1287 = vrot.slane %v1283, 1
        %v1288 = vrot.slane %v1284, 1
        %v1289 = vsel %vm428, %v1287, %v1288
        %v1293 = vadd.f32 %v1259, %v1287
        %v1294 = vadd.f32 %v1260, %v1289
        %v1295 = vadd.f32 %v1261, %v1288
        %v1296 = vlaneseq
        %v1297 = vshrl.u32 %v1296, 7
        %v1298 = vsub.s32 0, %v1297
        %v1299 = vrot.slane %v1222, %v1298
        %v1300 = vmul.f32 %v1236, %v1299
        %v1301 = vmul.f32 %v1237, %v1299
        %v1302 = vmul.f32 %v1238, %v1299
        %v1306 = vrot.slane %v1300, 2
        %v1307 = vrot.slane %v1301, 2
        %v1308 = vsel %vm448, %v1306, %v1307
        %v1309 = vrot.slane %v1302, 2
        %v1310 = vsel %vm448, %v1307, %v1309
        %v1314 = vadd.f32 %v1276, %v1306
        %v1315 = vadd.f32 %v1277, %v1308
        %v1316 = vadd.f32 %v1278, %v1310
        %v1317 = vlaneseq
        %v1318 = vshrl.u32 %v1317, 7
        %v1319 = vsub.s32 0, %v1318
        %v1320 = vrot.slane %v1232, %v1319
        %v1321 = vmul.f32 %v1236, %v1320
        %v1322 = vmul.f32 %v1237, %v1320
        %v1323 = vmul.f32 %v1238, %v1320
        %v1327 = vrot.slane %v1321, 2
        %v1328 = vrot.slane %v1322, 2
        %v1329 = vsel %vm448, %v1327, %v1328
        %v1330 = vrot.slane %v1323, 2
        %v1331 = vsel %vm448, %v1328, %v1330
        %v1335 = vadd.f32 %v1293, %v1327
        %v1336 = vadd.f32 %v1294, %v1329
        %v1337 = vadd.f32 %v1295, %v1331
        %v1338 = vmul.f32 %v1238, %v1245
        %v1339 = vmul.f32 %v1239, %v1245
        %v1340 = vmul.f32 %v1240, %v1245
        %v1341 = vadd.f32 %v1338, 0.0
        %v1342 = vadd.f32 %v1339, 0.0
        %v1343 = vadd.f32 %v1340, 0.0
        %v1344 = vmul.f32 %v1238, %v1255
        %v1345 = vmul.f32 %v1239, %v1255
        %v1346 = vmul.f32 %v1240, %v1255
        %v1347 = vadd.f32 %v1344, 0.0
        %v1348 = vadd.f32 %v1345, 0.0
        %v1349 = vadd.f32 %v1346, 0.0
        %v1350 = vmul.f32 %v1239, %v1265
        %v1351 = vmul.f32 %v1240, %v1265
        %v1354 = vrot.slane %v1350, 1
        %v1355 = vrot.slane %v1351, 1
        %v1356 = vsel %vm428, %v1354, %v1355
        %v1360 = vadd.f32 %v1341, %v1354
        %v1361 = vadd.f32 %v1342, %v1356
        %v1362 = vadd.f32 %v1343, %v1355
        %v1363 = vmul.f32 %v1239, %v1282
        %v1364 = vmul.f32 %v1240, %v1282
        %v1367 = vrot.slane %v1363, 1
        %v1368 = vrot.slane %v1364, 1
        %v1369 = vsel %vm428, %v1367, %v1368
        %v1373 = vadd.f32 %v1347, %v1367
        %v1374 = vadd.f32 %v1348, %v1369
        %v1375 = vadd.f32 %v1349, %v1368
        %v1376 = vmul.f32 %v1239, %v1299
        %v1377 = vmul.f32 %v1240, %v1299
        %v1378 = vmul.f32 %v1241, %v1299
        %v1382 = vrot.slane %v1376, 2
        %v1383 = vrot.slane %v1377, 2
        %v1384 = vsel %vm448, %v1382, %v1383
        %v1385 = vrot.slane %v1378, 2
        %v1386 = vsel %vm448, %v1383, %v1385
        %v1390 = vadd.f32 %v1360, %v1382
        %v1391 = vadd.f32 %v1361, %v1384
        %v1392 = vadd.f32 %v1362, %v1386
        %v1393 = vmul.f32 %v1239, %v1320
        %v1394 = vmul.f32 %v1240, %v1320
        %v1395 = vmul.f32 %v1241, %v1320
        %v1399 = vrot.slane %v1393, 2
        %v1400 = vrot.slane %v1394, 2
        %v1401 = vsel %vm448, %v1399, %v1400
        %v1402 = vrot.slane %v1395, 2
        %v1403 = vsel %vm448, %v1400, %v1402
        %v1407 = vadd.f32 %v1373, %v1399
        %v1408 = vadd.f32 %v1374, %v1401
        %v1409 = vadd.f32 %v1375, %v1403
        %v1410 = vld [vmem:[#allocation3 + $0x8] sm:$0xff]
        %v1411 = vld [vmem:[#allocation3 + $0x18] sm:$0xff]
        %v1412 = vld [vmem:[#allocation3 + $0x28] sm:$0xff]
        %v1413 = vld [vmem:[#allocation3 + $0x38] sm:$0xff]
        %v1414 = vld [vmem:[#allocation3 + $0x48] sm:$0xff]
        %v1415 = vld [vmem:[#allocation3 + $0x58] sm:$0xff]
        %v1416 = vld [vmem:[#allocation3 + $0x68] sm:$0xff]
        %v1417 = vlaneseq
        %v1418 = vshrl.u32 %v1417, 7
        %v1419 = vsub.s32 0, %v1418
        %v1420 = vrot.slane %v1217, %v1419
        %1422 = vrot.lane.b32.xlu0 %v1420, 8
        %v1423 = vpop.permute.xlu0 %1422
        %v1425 = vmul.f32 %v1235, %v1423
        %v1426 = vmul.f32 %v1410, %v1423
        %v1427 = vmul.f32 %v1236, %v1423
        %v1428 = vmul.f32 %v1411, %v1423
        %v1429 = vmul.f32 %v1237, %v1423
        %v1430 = vmul.f32 %v1412, %v1423
        %1437 = vrot.lane.b32.xlu0 %v1425, 120
        %v1438 = vpop.permute.xlu0 %1437
        %1439 = vrot.lane.b32.xlu0 %v1426, 120
        %v1440 = vpop.permute.xlu0 %1439
        %1441 = vrot.lane.b32.xlu0 %v1427, 120
        %v1442 = vpop.permute.xlu0 %1441
        %1443 = vrot.lane.b32.xlu0 %v1428, 120
        %v1444 = vpop.permute.xlu0 %1443
        %1445 = vrot.lane.b32.xlu0 %v1429, 120
        %v1446 = vpop.permute.xlu0 %1445
        %1447 = vrot.lane.b32.xlu0 %v1430, 120
        %v1448 = vpop.permute.xlu0 %1447
        %v1449 = vsel %vm535, %v1438, %v1440
        %v1450 = vsel %vm535, %v1442, %v1444
        %v1451 = vsel %vm535, %v1446, %v1448
        %v1455 = vadd.f32 %v1314, %v1449
        %v1456 = vadd.f32 %v1315, %v1450
        %v1457 = vadd.f32 %v1316, %v1451
        %v1458 = vlaneseq
        %v1459 = vshrl.u32 %v1458, 7
        %v1460 = vsub.s32 0, %v1459
        %v1461 = vrot.slane %v1227, %v1460
        %1463 = vrot.lane.b32.xlu0 %v1461, 8
        %v1464 = vpop.permute.xlu0 %1463
        %v1466 = vmul.f32 %v1235, %v1464
        %v1467 = vmul.f32 %v1410, %v1464
        %v1468 = vmul.f32 %v1236, %v1464
        %v1469 = vmul.f32 %v1411, %v1464
        %v1470 = vmul.f32 %v1237, %v1464
        %v1471 = vmul.f32 %v1412, %v1464
        %1478 = vrot.lane.b32.xlu0 %v1466, 120
        %v1479 = vpop.permute.xlu0 %1478
        %1480 = vrot.lane.b32.xlu0 %v1467, 120
        %v1481 = vpop.permute.xlu0 %1480
        %1482 = vrot.lane.b32.xlu0 %v1468, 120
        %v1483 = vpop.permute.xlu0 %1482
        %1484 = vrot.lane.b32.xlu0 %v1469, 120
        %v1485 = vpop.permute.xlu0 %1484
        %1486 = vrot.lane.b32.xlu0 %v1470, 120
        %v1487 = vpop.permute.xlu0 %1486
        %1488 = vrot.lane.b32.xlu0 %v1471, 120
        %v1489 = vpop.permute.xlu0 %1488
        %v1490 = vsel %vm535, %v1479, %v1481
        %v1491 = vsel %vm535, %v1483, %v1485
        %v1492 = vsel %vm535, %v1487, %v1489
        %v1496 = vadd.f32 %v1335, %v1490
        %v1497 = vadd.f32 %v1336, %v1491
        %v1498 = vadd.f32 %v1337, %v1492
        %v1499 = vlaneseq
        %v1500 = vshrl.u32 %v1499, 7
        %v1501 = vsub.s32 0, %v1500
        %v1502 = vrot.slane %v1220, %v1501
        %1504 = vrot.lane.b32.xlu0 %v1502, 8
        %v1505 = vpop.permute.xlu0 %1504
        %v1507 = vmul.f32 %v1236, %v1505
        %v1508 = vmul.f32 %v1411, %v1505
        %v1509 = vmul.f32 %v1237, %v1505
        %v1510 = vmul.f32 %v1412, %v1505
        %v1515 = vrot.slane %v1507, 1
        %v1516 = vrot.slane %v1508, 1
        %v1517 = vrot.slane %v1509, 1
        %v1518 = vsel %vm428, %v1515, %v1517
        %v1519 = vrot.slane %v1510, 1
        %v1520 = vsel %vm428, %v1516, %v1519
        %1521 = vrot.lane.b32.xlu0 %v1515, 120
        %v1522 = vpop.permute.xlu0 %1521
        %1523 = vrot.lane.b32.xlu0 %v1516, 120
        %v1524 = vpop.permute.xlu0 %1523
        %1525 = vrot.lane.b32.xlu0 %v1518, 120
        %v1526 = vpop.permute.xlu0 %1525
        %1527 = vrot.lane.b32.xlu0 %v1520, 120
        %v1528 = vpop.permute.xlu0 %1527
        %1529 = vrot.lane.b32.xlu0 %v1517, 120
        %v1530 = vpop.permute.xlu0 %1529
        %1531 = vrot.lane.b32.xlu0 %v1519, 120
        %v1532 = vpop.permute.xlu0 %1531
        %v1533 = vsel %vm535, %v1522, %v1524
        %v1534 = vsel %vm535, %v1526, %v1528
        %v1535 = vsel %vm535, %v1530, %v1532
        %v1539 = vadd.f32 %v1455, %v1533
        %v1540 = vadd.f32 %v1456, %v1534
        %v1541 = vadd.f32 %v1457, %v1535
        %v1542 = vlaneseq
        %v1543 = vshrl.u32 %v1542, 7
        %v1544 = vsub.s32 0, %v1543
        %v1545 = vrot.slane %v1230, %v1544
        %1547 = vrot.lane.b32.xlu0 %v1545, 8
        %v1548 = vpop.permute.xlu0 %1547
        %v1550 = vmul.f32 %v1236, %v1548
        %v1551 = vmul.f32 %v1411, %v1548
        %v1552 = vmul.f32 %v1237, %v1548
        %v1553 = vmul.f32 %v1412, %v1548
        %v1558 = vrot.slane %v1550, 1
        %v1559 = vrot.slane %v1551, 1
        %v1560 = vrot.slane %v1552, 1
        %v1561 = vsel %vm428, %v1558, %v1560
        %v1562 = vrot.slane %v1553, 1
        %v1563 = vsel %vm428, %v1559, %v1562
        %1564 = vrot.lane.b32.xlu0 %v1558, 120
        %v1565 = vpop.permute.xlu0 %1564
        %1566 = vrot.lane.b32.xlu0 %v1559, 120
        %v1567 = vpop.permute.xlu0 %1566
        %1568 = vrot.lane.b32.xlu0 %v1561, 120
        %v1569 = vpop.permute.xlu0 %1568
        %1570 = vrot.lane.b32.xlu0 %v1563, 120
        %v1571 = vpop.permute.xlu0 %1570
        %1572 = vrot.lane.b32.xlu0 %v1560, 120
        %v1573 = vpop.permute.xlu0 %1572
        %1574 = vrot.lane.b32.xlu0 %v1562, 120
        %v1575 = vpop.permute.xlu0 %1574
        %v1576 = vsel %vm535, %v1565, %v1567
        %v1577 = vsel %vm535, %v1569, %v1571
        %v1578 = vsel %vm535, %v1573, %v1575
        %v1582 = vadd.f32 %v1496, %v1576
        %v1583 = vadd.f32 %v1497, %v1577
        %v1584 = vadd.f32 %v1498, %v1578
        %v1585 = vlaneseq
        %v1586 = vshrl.u32 %v1585, 7
        %v1587 = vsub.s32 0, %v1586
        %v1588 = vrot.slane %v1223, %v1587
        %1590 = vrot.lane.b32.xlu0 %v1588, 8
        %v1591 = vpop.permute.xlu0 %1590
        %v1593 = vmul.f32 %v1236, %v1591
        %v1594 = vmul.f32 %v1411, %v1591
        %v1595 = vmul.f32 %v1237, %v1591
        %v1596 = vmul.f32 %v1412, %v1591
        %v1597 = vmul.f32 %v1238, %v1591
        %v1598 = vmul.f32 %v1413, %v1591
        %v1605 = vrot.slane %v1593, 2
        %v1606 = vrot.slane %v1594, 2
        %v1607 = vrot.slane %v1595, 2
        %v1608 = vsel %vm448, %v1605, %v1607
        %v1609 = vrot.slane %v1596, 2
        %v1610 = vsel %vm448, %v1606, %v1609
        %v1611 = vrot.slane %v1597, 2
        %v1612 = vsel %vm448, %v1607, %v1611
        %v1613 = vrot.slane %v1598, 2
        %v1614 = vsel %vm448, %v1609, %v1613
        %1615 = vrot.lane.b32.xlu0 %v1605, 120
        %v1616 = vpop.permute.xlu0 %1615
        %1617 = vrot.lane.b32.xlu0 %v1606, 120
        %v1618 = vpop.permute.xlu0 %1617
        %1619 = vrot.lane.b32.xlu0 %v1608, 120
        %v1620 = vpop.permute.xlu0 %1619
        %1621 = vrot.lane.b32.xlu0 %v1610, 120
        %v1622 = vpop.permute.xlu0 %1621
        %1623 = vrot.lane.b32.xlu0 %v1612, 120
        %v1624 = vpop.permute.xlu0 %1623
        %1625 = vrot.lane.b32.xlu0 %v1614, 120
        %v1626 = vpop.permute.xlu0 %1625
        %v1627 = vsel %vm535, %v1616, %v1618
        %v1628 = vsel %vm535, %v1620, %v1622
        %v1629 = vsel %vm535, %v1624, %v1626
        %v1633 = vadd.f32 %v1539, %v1627
        %v1634 = vadd.f32 %v1540, %v1628
        %v1635 = vadd.f32 %v1541, %v1629
        %v1636 = vlaneseq
        %v1637 = vshrl.u32 %v1636, 7
        %v1638 = vsub.s32 0, %v1637
        %v1639 = vrot.slane %v1233, %v1638
        %1641 = vrot.lane.b32.xlu0 %v1639, 8
        %v1642 = vpop.permute.xlu0 %1641
        %v1644 = vmul.f32 %v1236, %v1642
        %v1645 = vmul.f32 %v1411, %v1642
        %v1646 = vmul.f32 %v1237, %v1642
        %v1647 = vmul.f32 %v1412, %v1642
        %v1648 = vmul.f32 %v1238, %v1642
        %v1649 = vmul.f32 %v1413, %v1642
        %v1656 = vrot.slane %v1644, 2
        %v1657 = vrot.slane %v1645, 2
        %v1658 = vrot.slane %v1646, 2
        %v1659 = vsel %vm448, %v1656, %v1658
        %v1660 = vrot.slane %v1647, 2
        %v1661 = vsel %vm448, %v1657, %v1660
        %v1662 = vrot.slane %v1648, 2
        %v1663 = vsel %vm448, %v1658, %v1662
        %v1664 = vrot.slane %v1649, 2
        %v1665 = vsel %vm448, %v1660, %v1664
        %1666 = vrot.lane.b32.xlu0 %v1656, 120
        %v1667 = vpop.permute.xlu0 %1666
        %1668 = vrot.lane.b32.xlu0 %v1657, 120
        %v1669 = vpop.permute.xlu0 %1668
        %1670 = vrot.lane.b32.xlu0 %v1659, 120
        %v1671 = vpop.permute.xlu0 %1670
        %1672 = vrot.lane.b32.xlu0 %v1661, 120
        %v1673 = vpop.permute.xlu0 %1672
        %1674 = vrot.lane.b32.xlu0 %v1663, 120
        %v1675 = vpop.permute.xlu0 %1674
        %1676 = vrot.lane.b32.xlu0 %v1665, 120
        %v1677 = vpop.permute.xlu0 %1676
        %v1678 = vsel %vm535, %v1667, %v1669
        %v1679 = vsel %vm535, %v1671, %v1673
        %v1680 = vsel %vm535, %v1675, %v1677
        %v1684 = vadd.f32 %v1582, %v1678
        %v1685 = vadd.f32 %v1583, %v1679
        %v1686 = vadd.f32 %v1584, %v1680
        %v1687 = vmul.f32 %v1238, %v1423
        %v1688 = vmul.f32 %v1413, %v1423
        %v1689 = vmul.f32 %v1239, %v1423
        %v1690 = vmul.f32 %v1414, %v1423
        %v1691 = vmul.f32 %v1240, %v1423
        %v1692 = vmul.f32 %v1415, %v1423
        %1699 = vrot.lane.b32.xlu0 %v1687, 120
        %v1700 = vpop.permute.xlu0 %1699
        %1701 = vrot.lane.b32.xlu0 %v1688, 120
        %v1702 = vpop.permute.xlu0 %1701
        %1703 = vrot.lane.b32.xlu0 %v1689, 120
        %v1704 = vpop.permute.xlu0 %1703
        %1705 = vrot.lane.b32.xlu0 %v1690, 120
        %v1706 = vpop.permute.xlu0 %1705
        %1707 = vrot.lane.b32.xlu0 %v1691, 120
        %v1708 = vpop.permute.xlu0 %1707
        %1709 = vrot.lane.b32.xlu0 %v1692, 120
        %v1710 = vpop.permute.xlu0 %1709
        %v1711 = vsel %vm535, %v1700, %v1702
        %v1712 = vsel %vm535, %v1704, %v1706
        %v1713 = vsel %vm535, %v1708, %v1710
        %v1717 = vadd.f32 %v1390, %v1711
        %v1718 = vadd.f32 %v1391, %v1712
        %v1719 = vadd.f32 %v1392, %v1713
        %v1720 = vmul.f32 %v1238, %v1464
        %v1721 = vmul.f32 %v1413, %v1464
        %v1722 = vmul.f32 %v1239, %v1464
        %v1723 = vmul.f32 %v1414, %v1464
        %v1724 = vmul.f32 %v1240, %v1464
        %v1725 = vmul.f32 %v1415, %v1464
        %1732 = vrot.lane.b32.xlu0 %v1720, 120
        %v1733 = vpop.permute.xlu0 %1732
        %1734 = vrot.lane.b32.xlu0 %v1721, 120
        %v1735 = vpop.permute.xlu0 %1734
        %1736 = vrot.lane.b32.xlu0 %v1722, 120
        %v1737 = vpop.permute.xlu0 %1736
        %1738 = vrot.lane.b32.xlu0 %v1723, 120
        %v1739 = vpop.permute.xlu0 %1738
        %1740 = vrot.lane.b32.xlu0 %v1724, 120
        %v1741 = vpop.permute.xlu0 %1740
        %1742 = vrot.lane.b32.xlu0 %v1725, 120
        %v1743 = vpop.permute.xlu0 %1742
        %v1744 = vsel %vm535, %v1733, %v1735
        %v1745 = vsel %vm535, %v1737, %v1739
        %v1746 = vsel %vm535, %v1741, %v1743
        %v1750 = vadd.f32 %v1407, %v1744
        %v1751 = vadd.f32 %v1408, %v1745
        %v1752 = vadd.f32 %v1409, %v1746
        %v1753 = vmul.f32 %v1239, %v1505
        %v1754 = vmul.f32 %v1414, %v1505
        %v1755 = vmul.f32 %v1240, %v1505
        %v1756 = vmul.f32 %v1415, %v1505
        %v1761 = vrot.slane %v1753, 1
        %v1762 = vrot.slane %v1754, 1
        %v1763 = vrot.slane %v1755, 1
        %v1764 = vsel %vm428, %v1761, %v1763
        %v1765 = vrot.slane %v1756, 1
        %v1766 = vsel %vm428, %v1762, %v1765
        %1767 = vrot.lane.b32.xlu0 %v1761, 120
        %v1768 = vpop.permute.xlu0 %1767
        %1769 = vrot.lane.b32.xlu0 %v1762, 120
        %v1770 = vpop.permute.xlu0 %1769
        %1771 = vrot.lane.b32.xlu0 %v1764, 120
        %v1772 = vpop.permute.xlu0 %1771
        %1773 = vrot.lane.b32.xlu0 %v1766, 120
        %v1774 = vpop.permute.xlu0 %1773
        %1775 = vrot.lane.b32.xlu0 %v1763, 120
        %v1776 = vpop.permute.xlu0 %1775
        %1777 = vrot.lane.b32.xlu0 %v1765, 120
        %v1778 = vpop.permute.xlu0 %1777
        %v1779 = vsel %vm535, %v1768, %v1770
        %v1780 = vsel %vm535, %v1772, %v1774
        %v1781 = vsel %vm535, %v1776, %v1778
        %v1785 = vadd.f32 %v1717, %v1779
        %v1786 = vadd.f32 %v1718, %v1780
        %v1787 = vadd.f32 %v1719, %v1781
        %v1788 = vmul.f32 %v1239, %v1548
        %v1789 = vmul.f32 %v1414, %v1548
        %v1790 = vmul.f32 %v1240, %v1548
        %v1791 = vmul.f32 %v1415, %v1548
        %v1796 = vrot.slane %v1788, 1
        %v1797 = vrot.slane %v1789, 1
        %v1798 = vrot.slane %v1790, 1
        %v1799 = vsel %vm428, %v1796, %v1798
        %v1800 = vrot.slane %v1791, 1
        %v1801 = vsel %vm428, %v1797, %v1800
        %1802 = vrot.lane.b32.xlu0 %v1796, 120
        %v1803 = vpop.permute.xlu0 %1802
        %1804 = vrot.lane.b32.xlu0 %v1797, 120
        %v1805 = vpop.permute.xlu0 %1804
        %1806 = vrot.lane.b32.xlu0 %v1799, 120
        %v1807 = vpop.permute.xlu0 %1806
        %1808 = vrot.lane.b32.xlu0 %v1801, 120
        %v1809 = vpop.permute.xlu0 %1808
        %1810 = vrot.lane.b32.xlu0 %v1798, 120
        %v1811 = vpop.permute.xlu0 %1810
        %1812 = vrot.lane.b32.xlu0 %v1800, 120
        %v1813 = vpop.permute.xlu0 %1812
        %v1814 = vsel %vm535, %v1803, %v1805
        %v1815 = vsel %vm535, %v1807, %v1809
        %v1816 = vsel %vm535, %v1811, %v1813
        %v1820 = vadd.f32 %v1750, %v1814
        %v1821 = vadd.f32 %v1751, %v1815
        %v1822 = vadd.f32 %v1752, %v1816
        %v1823 = vmul.f32 %v1239, %v1591
        %v1824 = vmul.f32 %v1414, %v1591
        %v1825 = vmul.f32 %v1240, %v1591
        %v1826 = vmul.f32 %v1415, %v1591
        %v1827 = vmul.f32 %v1241, %v1591
        %v1828 = vmul.f32 %v1416, %v1591
        %v1835 = vrot.slane %v1823, 2
        %v1836 = vrot.slane %v1824, 2
        %v1837 = vrot.slane %v1825, 2
        %v1838 = vsel %vm448, %v1835, %v1837
        %v1839 = vrot.slane %v1826, 2
        %v1840 = vsel %vm448, %v1836, %v1839
        %v1841 = vrot.slane %v1827, 2
        %v1842 = vsel %vm448, %v1837, %v1841
        %v1843 = vrot.slane %v1828, 2
        %v1844 = vsel %vm448, %v1839, %v1843
        %1845 = vrot.lane.b32.xlu0 %v1835, 120
        %v1846 = vpop.permute.xlu0 %1845
        %1847 = vrot.lane.b32.xlu0 %v1836, 120
        %v1848 = vpop.permute.xlu0 %1847
        %1849 = vrot.lane.b32.xlu0 %v1838, 120
        %v1850 = vpop.permute.xlu0 %1849
        %1851 = vrot.lane.b32.xlu0 %v1840, 120
        %v1852 = vpop.permute.xlu0 %1851
        %1853 = vrot.lane.b32.xlu0 %v1842, 120
        %v1854 = vpop.permute.xlu0 %1853
        %1855 = vrot.lane.b32.xlu0 %v1844, 120
        %v1856 = vpop.permute.xlu0 %1855
        %v1857 = vsel %vm535, %v1846, %v1848
        %v1858 = vsel %vm535, %v1850, %v1852
        %v1859 = vsel %vm535, %v1854, %v1856
        %v1863 = vadd.f32 %v1785, %v1857
        %v1864 = vadd.f32 %v1786, %v1858
        %v1865 = vadd.f32 %v1787, %v1859
        %v1866 = vmul.f32 %v1239, %v1642
        %v1867 = vmul.f32 %v1414, %v1642
        %v1868 = vmul.f32 %v1240, %v1642
        %v1869 = vmul.f32 %v1415, %v1642
        %v1870 = vmul.f32 %v1241, %v1642
        %v1871 = vmul.f32 %v1416, %v1642
        %v1878 = vrot.slane %v1866, 2
        %v1879 = vrot.slane %v1867, 2
        %v1880 = vrot.slane %v1868, 2
        %v1881 = vsel %vm448, %v1878, %v1880
        %v1882 = vrot.slane %v1869, 2
        %v1883 = vsel %vm448, %v1879, %v1882
        %v1884 = vrot.slane %v1870, 2
        %v1885 = vsel %vm448, %v1880, %v1884
        %v1886 = vrot.slane %v1871, 2
        %v1887 = vsel %vm448, %v1882, %v1886
        %1888 = vrot.lane.b32.xlu0 %v1878, 120
        %v1889 = vpop.permute.xlu0 %1888
        %1890 = vrot.lane.b32.xlu0 %v1879, 120
        %v1891 = vpop.permute.xlu0 %1890
        %1892 = vrot.lane.b32.xlu0 %v1881, 120
        %v1893 = vpop.permute.xlu0 %1892
        %1894 = vrot.lane.b32.xlu0 %v1883, 120
        %v1895 = vpop.permute.xlu0 %1894
        %1896 = vrot.lane.b32.xlu0 %v1885, 120
        %v1897 = vpop.permute.xlu0 %1896
        %1898 = vrot.lane.b32.xlu0 %v1887, 120
        %v1899 = vpop.permute.xlu0 %1898
        %v1900 = vsel %vm535, %v1889, %v1891
        %v1901 = vsel %vm535, %v1893, %v1895
        %v1902 = vsel %vm535, %v1897, %v1899
        %v1906 = vadd.f32 %v1820, %v1900
        %v1907 = vadd.f32 %v1821, %v1901
        %v1908 = vadd.f32 %v1822, %v1902
        %v1909 = vlaneseq
        %v1910 = vshrl.u32 %v1909, 7
        %v1911 = vsub.s32 0, %v1910
        %v1912 = vrot.slane %v1218, %v1911
        %1914 = vrot.lane.b32.xlu0 %v1912, 16
        %v1915 = vpop.permute.xlu0 %1914
        %v1917 = vmul.f32 %v1235, %v1915
        %v1918 = vmul.f32 %v1410, %v1915
        %v1919 = vmul.f32 %v1236, %v1915
        %v1920 = vmul.f32 %v1411, %v1915
        %v1921 = vmul.f32 %v1237, %v1915
        %v1922 = vmul.f32 %v1412, %v1915
        %1929 = vrot.lane.b32.xlu0 %v1917, 112
        %v1930 = vpop.permute.xlu0 %1929
        %1931 = vrot.lane.b32.xlu0 %v1918, 112
        %v1932 = vpop.permute.xlu0 %1931
        %1933 = vrot.lane.b32.xlu0 %v1919, 112
        %v1934 = vpop.permute.xlu0 %1933
        %1935 = vrot.lane.b32.xlu0 %v1920, 112
        %v1936 = vpop.permute.xlu0 %1935
        %1937 = vrot.lane.b32.xlu0 %v1921, 112
        %v1938 = vpop.permute.xlu0 %1937
        %1939 = vrot.lane.b32.xlu0 %v1922, 112
        %v1940 = vpop.permute.xlu0 %1939
        %v1941 = vsel %vm782, %v1930, %v1932
        %v1942 = vsel %vm782, %v1934, %v1936
        %v1943 = vsel %vm782, %v1938, %v1940
        %v1947 = vadd.f32 %v1633, %v1941
        %v1948 = vadd.f32 %v1634, %v1942
        %v1949 = vadd.f32 %v1635, %v1943
        %v1950 = vlaneseq
        %v1951 = vshrl.u32 %v1950, 7
        %v1952 = vsub.s32 0, %v1951
        %v1953 = vrot.slane %v1228, %v1952
        %1955 = vrot.lane.b32.xlu0 %v1953, 16
        %v1956 = vpop.permute.xlu0 %1955
        %v1958 = vmul.f32 %v1235, %v1956
        %v1959 = vmul.f32 %v1410, %v1956
        %v1960 = vmul.f32 %v1236, %v1956
        %v1961 = vmul.f32 %v1411, %v1956
        %v1962 = vmul.f32 %v1237, %v1956
        %v1963 = vmul.f32 %v1412, %v1956
        %1970 = vrot.lane.b32.xlu0 %v1958, 112
        %v1971 = vpop.permute.xlu0 %1970
        %1972 = vrot.lane.b32.xlu0 %v1959, 112
        %v1973 = vpop.permute.xlu0 %1972
        %1974 = vrot.lane.b32.xlu0 %v1960, 112
        %v1975 = vpop.permute.xlu0 %1974
        %1976 = vrot.lane.b32.xlu0 %v1961, 112
        %v1977 = vpop.permute.xlu0 %1976
        %1978 = vrot.lane.b32.xlu0 %v1962, 112
        %v1979 = vpop.permute.xlu0 %1978
        %1980 = vrot.lane.b32.xlu0 %v1963, 112
        %v1981 = vpop.permute.xlu0 %1980
        %v1982 = vsel %vm782, %v1971, %v1973
        %v1983 = vsel %vm782, %v1975, %v1977
        %v1984 = vsel %vm782, %v1979, %v1981
        %v1988 = vadd.f32 %v1684, %v1982
        %v1989 = vadd.f32 %v1685, %v1983
        %v1990 = vadd.f32 %v1686, %v1984
        %v1991 = vlaneseq
        %v1992 = vshrl.u32 %v1991, 7
        %v1993 = vsub.s32 0, %v1992
        %v1994 = vrot.slane %v1221, %v1993
        %1996 = vrot.lane.b32.xlu0 %v1994, 16
        %v1997 = vpop.permute.xlu0 %1996
        %v1999 = vmul.f32 %v1236, %v1997
        %v2000 = vmul.f32 %v1411, %v1997
        %v2001 = vmul.f32 %v1237, %v1997
        %v2002 = vmul.f32 %v1412, %v1997
        %v2007 = vrot.slane %v1999, 1
        %v2008 = vrot.slane %v2000, 1
        %v2009 = vrot.slane %v2001, 1
        %v2010 = vsel %vm428, %v2007, %v2009
        %v2011 = vrot.slane %v2002, 1
        %v2012 = vsel %vm428, %v2008, %v2011
        %2013 = vrot.lane.b32.xlu0 %v2007, 112
        %v2014 = vpop.permute.xlu0 %2013
        %2015 = vrot.lane.b32.xlu0 %v2008, 112
        %v2016 = vpop.permute.xlu0 %2015
        %2017 = vrot.lane.b32.xlu0 %v2010, 112
        %v2018 = vpop.permute.xlu0 %2017
        %2019 = vrot.lane.b32.xlu0 %v2012, 112
        %v2020 = vpop.permute.xlu0 %2019
        %2021 = vrot.lane.b32.xlu0 %v2009, 112
        %v2022 = vpop.permute.xlu0 %2021
        %2023 = vrot.lane.b32.xlu0 %v2011, 112
        %v2024 = vpop.permute.xlu0 %2023
        %v2025 = vsel %vm782, %v2014, %v2016
        %v2026 = vsel %vm782, %v2018, %v2020
        %v2027 = vsel %vm782, %v2022, %v2024
        %v2031 = vadd.f32 %v1947, %v2025
        %v2032 = vadd.f32 %v1948, %v2026
        %v2033 = vadd.f32 %v1949, %v2027
        %v2034 = vlaneseq
        %v2035 = vshrl.u32 %v2034, 7
        %v2036 = vsub.s32 0, %v2035
        %v2037 = vrot.slane %v1231, %v2036
        %2039 = vrot.lane.b32.xlu0 %v2037, 16
        %v2040 = vpop.permute.xlu0 %2039
        %v2042 = vmul.f32 %v1236, %v2040
        %v2043 = vmul.f32 %v1411, %v2040
        %v2044 = vmul.f32 %v1237, %v2040
        %v2045 = vmul.f32 %v1412, %v2040
        %v2050 = vrot.slane %v2042, 1
        %v2051 = vrot.slane %v2043, 1
        %v2052 = vrot.slane %v2044, 1
        %v2053 = vsel %vm428, %v2050, %v2052
        %v2054 = vrot.slane %v2045, 1
        %v2055 = vsel %vm428, %v2051, %v2054
        %2056 = vrot.lane.b32.xlu0 %v2050, 112
        %v2057 = vpop.permute.xlu0 %2056
        %2058 = vrot.lane.b32.xlu0 %v2051, 112
        %v2059 = vpop.permute.xlu0 %2058
        %2060 = vrot.lane.b32.xlu0 %v2053, 112
        %v2061 = vpop.permute.xlu0 %2060
        %2062 = vrot.lane.b32.xlu0 %v2055, 112
        %v2063 = vpop.permute.xlu0 %2062
        %2064 = vrot.lane.b32.xlu0 %v2052, 112
        %v2065 = vpop.permute.xlu0 %2064
        %2066 = vrot.lane.b32.xlu0 %v2054, 112
        %v2067 = vpop.permute.xlu0 %2066
        %v2068 = vsel %vm782, %v2057, %v2059
        %v2069 = vsel %vm782, %v2061, %v2063
        %v2070 = vsel %vm782, %v2065, %v2067
        %v2074 = vadd.f32 %v1988, %v2068
        %v2075 = vadd.f32 %v1989, %v2069
        %v2076 = vadd.f32 %v1990, %v2070
        %v2077 = vlaneseq
        %v2078 = vshrl.u32 %v2077, 7
        %v2079 = vsub.s32 0, %v2078
        %v2080 = vrot.slane %v1224, %v2079
        %2082 = vrot.lane.b32.xlu0 %v2080, 16
        %v2083 = vpop.permute.xlu0 %2082
        %v2085 = vmul.f32 %v1236, %v2083
        %v2086 = vmul.f32 %v1411, %v2083
        %v2087 = vmul.f32 %v1237, %v2083
        %v2088 = vmul.f32 %v1412, %v2083
        %v2089 = vmul.f32 %v1238, %v2083
        %v2090 = vmul.f32 %v1413, %v2083
        %v2097 = vrot.slane %v2085, 2
        %v2098 = vrot.slane %v2086, 2
        %v2099 = vrot.slane %v2087, 2
        %v2100 = vsel %vm448, %v2097, %v2099
        %v2101 = vrot.slane %v2088, 2
        %v2102 = vsel %vm448, %v2098, %v2101
        %v2103 = vrot.slane %v2089, 2
        %v2104 = vsel %vm448, %v2099, %v2103
        %v2105 = vrot.slane %v2090, 2
        %v2106 = vsel %vm448, %v2101, %v2105
        %2107 = vrot.lane.b32.xlu0 %v2097, 112
        %v2108 = vpop.permute.xlu0 %2107
        %2109 = vrot.lane.b32.xlu0 %v2098, 112
        %v2110 = vpop.permute.xlu0 %2109
        %2111 = vrot.lane.b32.xlu0 %v2100, 112
        %v2112 = vpop.permute.xlu0 %2111
        %2113 = vrot.lane.b32.xlu0 %v2102, 112
        %v2114 = vpop.permute.xlu0 %2113
        %2115 = vrot.lane.b32.xlu0 %v2104, 112
        %v2116 = vpop.permute.xlu0 %2115
        %2117 = vrot.lane.b32.xlu0 %v2106, 112
        %v2118 = vpop.permute.xlu0 %2117
        %v2119 = vsel %vm782, %v2108, %v2110
        %v2120 = vsel %vm782, %v2112, %v2114
        %v2121 = vsel %vm782, %v2116, %v2118
        %v2125 = vadd.f32 %v2031, %v2119
        %v2126 = vadd.f32 %v2032, %v2120
        %v2127 = vadd.f32 %v2033, %v2121
        %v2128 = vlaneseq
        %v2129 = vshrl.u32 %v2128, 7
        %v2130 = vsub.s32 0, %v2129
        %v2131 = vrot.slane %v1234, %v2130
        %2133 = vrot.lane.b32.xlu0 %v2131, 16
        %v2134 = vpop.permute.xlu0 %2133
        %v2136 = vmul.f32 %v1236, %v2134
        %v2137 = vmul.f32 %v1411, %v2134
        %v2138 = vmul.f32 %v1237, %v2134
        %v2139 = vmul.f32 %v1412, %v2134
        %v2140 = vmul.f32 %v1238, %v2134
        %v2141 = vmul.f32 %v1413, %v2134
        %v2148 = vrot.slane %v2136, 2
        %v2149 = vrot.slane %v2137, 2
        %v2150 = vrot.slane %v2138, 2
        %v2151 = vsel %vm448, %v2148, %v2150
        %v2152 = vrot.slane %v2139, 2
        %v2153 = vsel %vm448, %v2149, %v2152
        %v2154 = vrot.slane %v2140, 2
        %v2155 = vsel %vm448, %v2150, %v2154
        %v2156 = vrot.slane %v2141, 2
        %v2157 = vsel %vm448, %v2152, %v2156
        %2158 = vrot.lane.b32.xlu0 %v2148, 112
        %v2159 = vpop.permute.xlu0 %2158
        %2160 = vrot.lane.b32.xlu0 %v2149, 112
        %v2161 = vpop.permute.xlu0 %2160
        %2162 = vrot.lane.b32.xlu0 %v2151, 112
        %v2163 = vpop.permute.xlu0 %2162
        %2164 = vrot.lane.b32.xlu0 %v2153, 112
        %v2165 = vpop.permute.xlu0 %2164
        %2166 = vrot.lane.b32.xlu0 %v2155, 112
        %v2167 = vpop.permute.xlu0 %2166
        %2168 = vrot.lane.b32.xlu0 %v2157, 112
        %v2169 = vpop.permute.xlu0 %2168
        %v2170 = vsel %vm782, %v2159, %v2161
        %v2171 = vsel %vm782, %v2163, %v2165
        %v2172 = vsel %vm782, %v2167, %v2169
        %v2176 = vadd.f32 %v2074, %v2170
        %v2177 = vadd.f32 %v2075, %v2171
        %v2178 = vadd.f32 %v2076, %v2172
        %v2179 = vmul.f32 %v1238, %v1915
        %v2180 = vmul.f32 %v1413, %v1915
        %v2181 = vmul.f32 %v1239, %v1915
        %v2182 = vmul.f32 %v1414, %v1915
        %v2183 = vmul.f32 %v1240, %v1915
        %v2184 = vmul.f32 %v1415, %v1915
        %2191 = vrot.lane.b32.xlu0 %v2179, 112
        %v2192 = vpop.permute.xlu0 %2191
        %2193 = vrot.lane.b32.xlu0 %v2180, 112
        %v2194 = vpop.permute.xlu0 %2193
        %2195 = vrot.lane.b32.xlu0 %v2181, 112
        %v2196 = vpop.permute.xlu0 %2195
        %2197 = vrot.lane.b32.xlu0 %v2182, 112
        %v2198 = vpop.permute.xlu0 %2197
        %2199 = vrot.lane.b32.xlu0 %v2183, 112
        %v2200 = vpop.permute.xlu0 %2199
        %2201 = vrot.lane.b32.xlu0 %v2184, 112
        %v2202 = vpop.permute.xlu0 %2201
        %v2203 = vsel %vm782, %v2192, %v2194
        %v2204 = vsel %vm782, %v2196, %v2198
        %v2205 = vsel %vm782, %v2200, %v2202
        %v2209 = vadd.f32 %v1863, %v2203
        %v2210 = vadd.f32 %v1864, %v2204
        %v2211 = vadd.f32 %v1865, %v2205
        %v2212 = vmul.f32 %v1238, %v1956
        %v2213 = vmul.f32 %v1413, %v1956
        %v2214 = vmul.f32 %v1239, %v1956
        %v2215 = vmul.f32 %v1414, %v1956
        %v2216 = vmul.f32 %v1240, %v1956
        %v2217 = vmul.f32 %v1415, %v1956
        %2224 = vrot.lane.b32.xlu0 %v2212, 112
        %v2225 = vpop.permute.xlu0 %2224
        %2226 = vrot.lane.b32.xlu0 %v2213, 112
        %v2227 = vpop.permute.xlu0 %2226
        %2228 = vrot.lane.b32.xlu0 %v2214, 112
        %v2229 = vpop.permute.xlu0 %2228
        %2230 = vrot.lane.b32.xlu0 %v2215, 112
        %v2231 = vpop.permute.xlu0 %2230
        %2232 = vrot.lane.b32.xlu0 %v2216, 112
        %v2233 = vpop.permute.xlu0 %2232
        %2234 = vrot.lane.b32.xlu0 %v2217, 112
        %v2235 = vpop.permute.xlu0 %2234
        %v2236 = vsel %vm782, %v2225, %v2227
        %v2237 = vsel %vm782, %v2229, %v2231
        %v2238 = vsel %vm782, %v2233, %v2235
        %v2242 = vadd.f32 %v1906, %v2236
        %v2243 = vadd.f32 %v1907, %v2237
        %v2244 = vadd.f32 %v1908, %v2238
        %v2245 = vmul.f32 %v1239, %v1997
        %v2246 = vmul.f32 %v1414, %v1997
        %v2247 = vmul.f32 %v1240, %v1997
        %v2248 = vmul.f32 %v1415, %v1997
        %v2253 = vrot.slane %v2245, 1
        %v2254 = vrot.slane %v2246, 1
        %v2255 = vrot.slane %v2247, 1
        %v2256 = vsel %vm428, %v2253, %v2255
        %v2257 = vrot.slane %v2248, 1
        %v2258 = vsel %vm428, %v2254, %v2257
        %2259 = vrot.lane.b32.xlu0 %v2253, 112
        %v2260 = vpop.permute.xlu0 %2259
        %2261 = vrot.lane.b32.xlu0 %v2254, 112
        %v2262 = vpop.permute.xlu0 %2261
        %2263 = vrot.lane.b32.xlu0 %v2256, 112
        %v2264 = vpop.permute.xlu0 %2263
        %2265 = vrot.lane.b32.xlu0 %v2258, 112
        %v2266 = vpop.permute.xlu0 %2265
        %2267 = vrot.lane.b32.xlu0 %v2255, 112
        %v2268 = vpop.permute.xlu0 %2267
        %2269 = vrot.lane.b32.xlu0 %v2257, 112
        %v2270 = vpop.permute.xlu0 %2269
        %v2271 = vsel %vm782, %v2260, %v2262
        %v2272 = vsel %vm782, %v2264, %v2266
        %v2273 = vsel %vm782, %v2268, %v2270
        %v2277 = vadd.f32 %v2209, %v2271
        %v2278 = vadd.f32 %v2210, %v2272
        %v2279 = vadd.f32 %v2211, %v2273
        %v2280 = vmul.f32 %v1239, %v2040
        %v2281 = vmul.f32 %v1414, %v2040
        %v2282 = vmul.f32 %v1240, %v2040
        %v2283 = vmul.f32 %v1415, %v2040
        %v2288 = vrot.slane %v2280, 1
        %v2289 = vrot.slane %v2281, 1
        %v2290 = vrot.slane %v2282, 1
        %v2291 = vsel %vm428, %v2288, %v2290
        %v2292 = vrot.slane %v2283, 1
        %v2293 = vsel %vm428, %v2289, %v2292
        %2294 = vrot.lane.b32.xlu0 %v2288, 112
        %v2295 = vpop.permute.xlu0 %2294
        %2296 = vrot.lane.b32.xlu0 %v2289, 112
        %v2297 = vpop.permute.xlu0 %2296
        %2298 = vrot.lane.b32.xlu0 %v2291, 112
        %v2299 = vpop.permute.xlu0 %2298
        %2300 = vrot.lane.b32.xlu0 %v2293, 112
        %v2301 = vpop.permute.xlu0 %2300
        %2302 = vrot.lane.b32.xlu0 %v2290, 112
        %v2303 = vpop.permute.xlu0 %2302
        %2304 = vrot.lane.b32.xlu0 %v2292, 112
        %v2305 = vpop.permute.xlu0 %2304
        %v2306 = vsel %vm782, %v2295, %v2297
        %v2307 = vsel %vm782, %v2299, %v2301
        %v2308 = vsel %vm782, %v2303, %v2305
        %v2312 = vadd.f32 %v2242, %v2306
        %v2313 = vadd.f32 %v2243, %v2307
        %v2314 = vadd.f32 %v2244, %v2308
        %v2315 = vmul.f32 %v1239, %v2083
        %v2316 = vmul.f32 %v1414, %v2083
        %v2317 = vmul.f32 %v1240, %v2083
        %v2318 = vmul.f32 %v1415, %v2083
        %v2319 = vmul.f32 %v1241, %v2083
        %v2320 = vmul.f32 %v1416, %v2083
        %v2327 = vrot.slane %v2315, 2
        %v2328 = vrot.slane %v2316, 2
        %v2329 = vrot.slane %v2317, 2
        %v2330 = vsel %vm448, %v2327, %v2329
        %v2331 = vrot.slane %v2318, 2
        %v2332 = vsel %vm448, %v2328, %v2331
        %v2333 = vrot.slane %v2319, 2
        %v2334 = vsel %vm448, %v2329, %v2333
        %v2335 = vrot.slane %v2320, 2
        %v2336 = vsel %vm448, %v2331, %v2335
        %2337 = vrot.lane.b32.xlu0 %v2327, 112
        %v2338 = vpop.permute.xlu0 %2337
        %2339 = vrot.lane.b32.xlu0 %v2328, 112
        %v2340 = vpop.permute.xlu0 %2339
        %2341 = vrot.lane.b32.xlu0 %v2330, 112
        %v2342 = vpop.permute.xlu0 %2341
        %2343 = vrot.lane.b32.xlu0 %v2332, 112
        %v2344 = vpop.permute.xlu0 %2343
        %2345 = vrot.lane.b32.xlu0 %v2334, 112
        %v2346 = vpop.permute.xlu0 %2345
        %2347 = vrot.lane.b32.xlu0 %v2336, 112
        %v2348 = vpop.permute.xlu0 %2347
        %v2349 = vsel %vm782, %v2338, %v2340
        %v2350 = vsel %vm782, %v2342, %v2344
        %v2351 = vsel %vm782, %v2346, %v2348
        %v2355 = vadd.f32 %v2277, %v2349
        %v2356 = vadd.f32 %v2278, %v2350
        %v2357 = vadd.f32 %v2279, %v2351
        %v2358 = vmul.f32 %v1239, %v2134
        %v2359 = vmul.f32 %v1414, %v2134
        %v2360 = vmul.f32 %v1240, %v2134
        %v2361 = vmul.f32 %v1415, %v2134
        %v2362 = vmul.f32 %v1241, %v2134
        %v2363 = vmul.f32 %v1416, %v2134
        %v2370 = vrot.slane %v2358, 2
        %v2371 = vrot.slane %v2359, 2
        %v2372 = vrot.slane %v2360, 2
        %v2373 = vsel %vm448, %v2370, %v2372
        %v2374 = vrot.slane %v2361, 2
        %v2375 = vsel %vm448, %v2371, %v2374
        %v2376 = vrot.slane %v2362, 2
        %v2377 = vsel %vm448, %v2372, %v2376
        %v2378 = vrot.slane %v2363, 2
        %v2379 = vsel %vm448, %v2374, %v2378
        %2380 = vrot.lane.b32.xlu0 %v2370, 112
        %v2381 = vpop.permute.xlu0 %2380
        %2382 = vrot.lane.b32.xlu0 %v2371, 112
        %v2383 = vpop.permute.xlu0 %2382
        %2384 = vrot.lane.b32.xlu0 %v2373, 112
        %v2385 = vpop.permute.xlu0 %2384
        %2386 = vrot.lane.b32.xlu0 %v2375, 112
        %v2387 = vpop.permute.xlu0 %2386
        %2388 = vrot.lane.b32.xlu0 %v2377, 112
        %v2389 = vpop.permute.xlu0 %2388
        %2390 = vrot.lane.b32.xlu0 %v2379, 112
        %v2391 = vpop.permute.xlu0 %2390
        %v2392 = vsel %vm782, %v2381, %v2383
        %v2393 = vsel %vm782, %v2385, %v2387
        %v2394 = vsel %vm782, %v2389, %v2391
        %v2398 = vadd.f32 %v2312, %v2392
        %v2399 = vadd.f32 %v2313, %v2393
        %v2400 = vadd.f32 %v2314, %v2394
        %v2404 = vrot.slane %v2125, 7
        %v2405 = vrot.slane %v2126, 7
        %v2406 = vsel %vm1000, %v2404, %v2405
        %v2407 = vrot.slane %v2127, 7
        %v2408 = vsel %vm1000, %v2405, %v2407
        %v2414 = vrot.slane %v2355, 7
        %v2415 = vrot.slane %v2356, 7
        %v2416 = vsel %vm1000, %v2414, %v2415
        %v2417 = vrot.slane %v2357, 7
        %v2418 = vsel %vm1000, %v2415, %v2417
        %v2424 = vrot.slane %v2176, 7
        %v2425 = vrot.slane %v2177, 7
        %v2426 = vsel %vm1000, %v2424, %v2425
        %v2427 = vrot.slane %v2178, 7
        %v2428 = vsel %vm1000, %v2425, %v2427
        %v2434 = vrot.slane %v2398, 7
        %v2435 = vrot.slane %v2399, 7
        %v2436 = vsel %vm1000, %v2434, %v2435
        %v2437 = vrot.slane %v2400, 7
        %v2438 = vsel %vm1000, %v2435, %v2437
        %v2441 = vld [vmem:[%s6] sm:$0xff]
        %v2442 = vld [vmem:[%s6 + $0x8] sm:$0xff]
        %v2443 = vld [vmem:[%s6 + $0x10] sm:$0xff]
        %v2444 = vld [vmem:[%s6 + $0x18] sm:$0xff]
        %v2445 = vld [vmem:[%s6 + $0x20] sm:$0xff]
        %v2446 = vld [vmem:[%s6 + $0x28] sm:$0xff]
        %v2447 = vld [vmem:[%s6 + $0x30] sm:$0xff]
        %v2448 = vld [vmem:[%s6 + $0x38] sm:$0xff]
        %v2449 = vld [vmem:[%s6 + $0x40] sm:$0xff]
        %v2450 = vld [vmem:[%s6 + $0x48] sm:$0xff]
        %v2451 = vld [vmem:[%s6 + $0x50] sm:$0xff]
        %v2452 = vld [vmem:[%s6 + $0x58] sm:$0xff]
        %v2453 = vld [vmem:[%s6 + $0x60] sm:$0xff]
        %v2454 = vld [vmem:[%s6 + $0x68] sm:$0xff]
        %v2455 = vld [vmem:[%s6 + $0x70] sm:$0xff]
        %v2456 = vld [vmem:[%s6 + $0x78] sm:$0xff]
        %v2457 = vld [vmem:[%s7] sm:$0x1]
        %v2458 = vld [vmem:[%s8] sm:$0x1]
        %v2459 = vld [vmem:[%s9] sm:$0x1]
        %v2461 = vlaneseq
        %v2462 = vshrl.u32 %v2461, 7
        %v2463 = vsub.s32 0, %v2462
        %v2464 = vrot.slane %v2457, %v2463
        %2466 = vmatprep.subr.mxu0 0.0
        %2467 = vmatpush1.msra.mxu0 %v2441
        %2468 = vmatprep.subr.mxu0 0.0
        %2469 = vmatpush1.msra.mxu0 %v2442
        %2470 = vmatprep.subr.mxu0 0.0
        %2471 = vmatpush1.msra.mxu0 %v2443
        %2472 = vmatprep.subr.mxu0 0.0
        %2473 = vmatpush1.msra.mxu0 %v2444
        %2474 = vmatprep.subr.mxu0 0.0
        %2475 = vmatpush1.msra.mxu0 %v2445
        %2476 = vmatprep.subr.mxu0 0.0
        %2477 = vmatpush1.msra.mxu0 %v2446
        %2478 = vmatprep.subr.mxu0 0.0
        %2479 = vmatpush1.msra.mxu0 %v2447
        %2480 = vmatprep.subr.mxu0 0.0
        %2481 = vmatpush1.msra.mxu0 %v2448
        %2482 = vmatprep.subr.mxu0 0.0
        %2483 = vmatpush1.msra.mxu0 %v2449
        %2484 = vmatprep.subr.mxu0 0.0
        %2485 = vmatpush1.msra.mxu0 %v2450
        %2486 = vmatprep.subr.mxu0 0.0
        %2487 = vmatpush1.msra.mxu0 %v2451
        %2488 = vmatprep.subr.mxu0 0.0
        %2489 = vmatpush1.msra.mxu0 %v2452
        %2490 = vmatprep.subr.mxu0 0.0
        %2491 = vmatpush1.msra.mxu0 %v2453
        %2492 = vmatprep.subr.mxu0 0.0
        %2493 = vmatpush1.msra.mxu0 %v2454
        %2494 = vmatprep.subr.mxu0 0.0
        %2495 = vmatpush1.msra.mxu0 %v2455
        %2496 = vmatprep.subr.mxu0 0.0
        %2497 = vmatpush1.msra.mxu0 %v2456
        %2498 = vmatprep.subr.mxu0 0.0
        %2499 = vmatpush1.msra.mxu0 0.0
        %2500 = vmatprep.subr.mxu0 0.0
        %2501 = vmatpush1.msra.mxu0 0.0
        %2502 = vmatprep.subr.mxu0 0.0
        %2503 = vmatpush1.msra.mxu0 0.0
        %2504 = vmatprep.subr.mxu0 0.0
        %2505 = vmatpush1.msra.mxu0 0.0
        %2506 = vmatprep.subr.mxu0 0.0
        %2507 = vmatpush1.msra.mxu0 0.0
        %2508 = vmatprep.subr.mxu0 0.0
        %2509 = vmatpush1.msra.mxu0 0.0
        %2510 = vmatprep.subr.mxu0 0.0
        %2511 = vmatpush1.msra.mxu0 0.0
        %2512 = vmatprep.subr.mxu0 0.0
        %2513 = vmatpush1.msra.mxu0 0.0
        %2514 = vmatprep.subr.mxu0 0.0
        %2515 = vmatpush1.msra.mxu0 0.0
        %2516 = vmatprep.subr.mxu0 0.0
        %2517 = vmatpush1.msra.mxu0 0.0
        %2518 = vmatprep.subr.mxu0 0.0
        %2519 = vmatpush1.msra.mxu0 0.0
        %2520 = vmatprep.subr.mxu0 0.0
        %2521 = vmatpush1.msra.mxu0 0.0
        %2522 = vmatprep.subr.mxu0 0.0
        %2523 = vmatpush1.msra.mxu0 0.0
        %2524 = vmatprep.subr.mxu0 0.0
        %2525 = vmatpush1.msra.mxu0 0.0
        %2526 = vmatprep.subr.mxu0 0.0
        %2527 = vmatpush1.msra.mxu0 0.0
        %2528 = vmatprep.subr.mxu0 0.0
        %2529 = vmatpush1.msra.mxu0 0.0
        %2530 = vmatprep.mubr.f32.mxu0 0.0
        %2531 = vmatmul.mubr.f32.gmra.mrb[0].mxu0 %v2406
        %v2532 = vpop.f32.mrb[0].mxu0
        %v2533 = vadd.f32 %v2464, %v2532
        %v2534 = vpop.f32.mrb[0].mxu0
        %2535 = vmatprep.mubr.f32.mxu0 0.0
        %2536 = vmatmul.mubr.f32.gmra.mrb[0].mxu0 %v2408
        %v2537 = vpop.f32.mrb[0].mxu0
        %v2538 = vadd.f32 %v2464, %v2537
        %v2539 = vpop.f32.mrb[0].mxu0
        %2540 = vmatprep.mubr.f32.mxu0 0.0
        %2541 = vmatmul.mubr.f32.gmra.mrb[0].mxu0 %v2416
        %v2542 = vpop.f32.mrb[0].mxu0
        %v2543 = vadd.f32 %v2464, %v2542
        %v2544 = vpop.f32.mrb[0].mxu0
        %2545 = vmatprep.mubr.f32.mxu0 0.0
        %2546 = vmatmul.mubr.f32.gmra.mrb[0].mxu0 %v2418
        %v2547 = vpop.f32.mrb[0].mxu0
        %v2548 = vadd.f32 %v2464, %v2547
        %v2549 = vpop.f32.mrb[0].mxu0
        %2550 = vdwg.mxu0
        %v2551 = vmax.f32 %v2533, 0.0
        %v2552 = vmax.f32 %v2538, 0.0
        %v2553 = vmax.f32 %v2543, 0.0
        %v2554 = vmax.f32 %v2548, 0.0
        %v2556 = vlaneseq
        %v2557 = vshrl.u32 %v2556, 7
        %v2558 = vsub.s32 0, %v2557
        %v2559 = vrot.slane %v2458, %v2558
        %v2561 = vmul.f32 %v2551, %v2559
        %v2562 = vmul.f32 %v2552, %v2559
        %v2563 = vmul.f32 %v2553, %v2559
        %v2564 = vmul.f32 %v2554, %v2559
        %v2566 = vlaneseq
        %v2567 = vshrl.u32 %v2566, 7
        %v2568 = vsub.s32 0, %v2567
        %v2569 = vrot.slane %v2459, %v2568
        %v2571 = vadd.f32 %v2561, %v2569
        %v2572 = vadd.f32 %v2562, %v2569
        %v2573 = vadd.f32 %v2563, %v2569
        %v2574 = vadd.f32 %v2564, %v2569
        %v2575 = vmax.f32 %v2571, 0.0
        %v2576 = vmax.f32 %v2572, 0.0
        %v2577 = vmax.f32 %v2573, 0.0
        %v2578 = vmax.f32 %v2574, 0.0
        %s2579 = scalar_lea.vmem %s2, 256
        %v2580 = vld [vmem:[%s2579] sm:$0xff]
        %v2581 = vld [vmem:[%s2579 + $0x8] sm:$0xff]
        %v2582 = vld [vmem:[%s2579 + $0x10] sm:$0xff]
        %v2583 = vld [vmem:[%s2579 + $0x18] sm:$0xff]
        %v2584 = vld [vmem:[%s2579 + $0x20] sm:$0xff]
        %v2585 = vld [vmem:[%s2579 + $0x28] sm:$0xff]
        %v2586 = vld [vmem:[%s2579 + $0x30] sm:$0xff]
        %v2587 = vld [vmem:[%s2579 + $0x38] sm:$0xff]
        %v2588 = vld [vmem:[%s2579 + $0x40] sm:$0xff]
        %v2589 = vld [vmem:[%s2579 + $0x48] sm:$0xff]
        %v2590 = vld [vmem:[%s2579 + $0x50] sm:$0xff]
        %v2591 = vld [vmem:[%s2579 + $0x58] sm:$0xff]
        %v2592 = vld [vmem:[%s2579 + $0x60] sm:$0xff]
        %v2593 = vld [vmem:[%s2579 + $0x68] sm:$0xff]
        %v2594 = vld [vmem:[%s2579 + $0x70] sm:$0xff]
        %v2595 = vld [vmem:[%s2579 + $0x78] sm:$0xff]
        %v2596 = vld [vmem:[%s2579 + $0x80] sm:$0xff]
        %v2597 = vld [vmem:[%s2579 + $0x88] sm:$0xff]
        %v2598 = vld [vmem:[%s2579 + $0x90] sm:$0xff]
        %v2599 = vld [vmem:[%s2579 + $0x98] sm:$0xff]
        %v2600 = vld [vmem:[%s2579 + $0xa0] sm:$0xff]
        %v2601 = vld [vmem:[%s2579 + $0xa8] sm:$0xff]
        %v2602 = vld [vmem:[%s2579 + $0xb0] sm:$0xff]
        %v2603 = vld [vmem:[%s2579 + $0xb8] sm:$0xff]
        %v2604 = vld [vmem:[%s2579 + $0xc0] sm:$0xff]
        %v2605 = vld [vmem:[%s2579 + $0xc8] sm:$0xff]
        %v2606 = vld [vmem:[%s2579 + $0xd0] sm:$0xff]
        %v2607 = vld [vmem:[%s2579 + $0xd8] sm:$0xff]
        %v2608 = vld [vmem:[%s2579 + $0xe0] sm:$0xff]
        %v2609 = vld [vmem:[%s2579 + $0xe8] sm:$0xff]
        %v2610 = vld [vmem:[%s2579 + $0xf0] sm:$0xff]
        %v2611 = vld [vmem:[%s2579 + $0xf8] sm:$0xff]
        %s2612 = scalar_lea.vmem %s3, 2
        %v2613 = vld [vmem:[%s2612] sm:$0x3]
        %s2614 = scalar_lea.vmem %s4, 2
        %v2615 = vld [vmem:[%s2614] sm:$0x3]
        %s2616 = scalar_lea.vmem %s5, 2
        %v2617 = vld [vmem:[%s2616] sm:$0x3]
        %v2619 = vlaneseq
        %v2620 = vshrl.u32 %v2619, 7
        %v2621 = vsub.s32 0, %v2620
        %v2622 = vrot.slane %v2613, %v2621
        %v2623 = vlaneseq
        %v2624 = vshrl.u32 %v2623, 7
        %v2625 = vsub.s32 1, %v2624
        %v2626 = vrot.slane %v2613, %v2625
        %2629 = vmatprep.subr.mxu0 %v2581
        %2630 = vmatpush1.msra.mxu0 %v2580
        %2631 = vmatprep.subr.mxu0 %v2583
        %2632 = vmatpush1.msra.mxu0 %v2582
        %2633 = vmatprep.subr.mxu0 %v2585
        %2634 = vmatpush1.msra.mxu0 %v2584
        %2635 = vmatprep.subr.mxu0 %v2587
        %2636 = vmatpush1.msra.mxu0 %v2586
        %2637 = vmatprep.subr.mxu0 %v2589
        %2638 = vmatpush1.msra.mxu0 %v2588
        %2639 = vmatprep.subr.mxu0 %v2591
        %2640 = vmatpush1.msra.mxu0 %v2590
        %2641 = vmatprep.subr.mxu0 %v2593
        %2642 = vmatpush1.msra.mxu0 %v2592
        %2643 = vmatprep.subr.mxu0 %v2595
        %2644 = vmatpush1.msra.mxu0 %v2594
        %2645 = vmatprep.subr.mxu0 %v2597
        %2646 = vmatpush1.msra.mxu0 %v2596
        %2647 = vmatprep.subr.mxu0 %v2599
        %2648 = vmatpush1.msra.mxu0 %v2598
        %2649 = vmatprep.subr.mxu0 %v2601
        %2650 = vmatpush1.msra.mxu0 %v2600
        %2651 = vmatprep.subr.mxu0 %v2603
        %2652 = vmatpush1.msra.mxu0 %v2602
        %2653 = vmatprep.subr.mxu0 %v2605
        %2654 = vmatpush1.msra.mxu0 %v2604
        %2655 = vmatprep.subr.mxu0 %v2607
        %2656 = vmatpush1.msra.mxu0 %v2606
        %2657 = vmatprep.subr.mxu0 %v2609
        %2658 = vmatpush1.msra.mxu0 %v2608
        %2659 = vmatprep.subr.mxu0 %v2611
        %2660 = vmatpush1.msra.mxu0 %v2610
        %2661 = vmatprep.subr.mxu0 0.0
        %2662 = vmatpush1.msra.mxu0 0.0
        %2663 = vmatprep.subr.mxu0 0.0
        %2664 = vmatpush1.msra.mxu0 0.0
        %2665 = vmatprep.subr.mxu0 0.0
        %2666 = vmatpush1.msra.mxu0 0.0
        %2667 = vmatprep.subr.mxu0 0.0
        %2668 = vmatpush1.msra.mxu0 0.0
        %2669 = vmatprep.subr.mxu0 0.0
        %2670 = vmatpush1.msra.mxu0 0.0
        %2671 = vmatprep.subr.mxu0 0.0
        %2672 = vmatpush1.msra.mxu0 0.0
        %2673 = vmatprep.subr.mxu0 0.0
        %2674 = vmatpush1.msra.mxu0 0.0
        %2675 = vmatprep.subr.mxu0 0.0
        %2676 = vmatpush1.msra.mxu0 0.0
        %2677 = vmatprep.subr.mxu0 0.0
        %2678 = vmatpush1.msra.mxu0 0.0
        %2679 = vmatprep.subr.mxu0 0.0
        %2680 = vmatpush1.msra.mxu0 0.0
        %2681 = vmatprep.subr.mxu0 0.0
        %2682 = vmatpush1.msra.mxu0 0.0
        %2683 = vmatprep.subr.mxu0 0.0
        %2684 = vmatpush1.msra.mxu0 0.0
        %2685 = vmatprep.subr.mxu0 0.0
        %2686 = vmatpush1.msra.mxu0 0.0
        %2687 = vmatprep.subr.mxu0 0.0
        %2688 = vmatpush1.msra.mxu0 0.0
        %2689 = vmatprep.subr.mxu0 0.0
        %2690 = vmatpush1.msra.mxu0 0.0
        %2691 = vmatprep.subr.mxu0 0.0
        %2692 = vmatpush1.msra.mxu0 0.0
        %2693 = vmatprep.mubr.f32.mxu0 0.0
        %2694 = vmatmul.mubr.f32.gmra.mrb[0].mxu0 %v2426
        %v2695 = vpop.f32.mrb[0].mxu0
        %v2696 = vadd.f32 %v2622, %v2695
        %v2697 = vpop.f32.mrb[0].mxu0
        %v2698 = vadd.f32 %v2626, %v2697
        %2699 = vmatprep.mubr.f32.mxu0 0.0
        %2700 = vmatmul.mubr.f32.gmra.mrb[0].mxu0 %v2428
        %v2701 = vpop.f32.mrb[0].mxu0
        %v2702 = vadd.f32 %v2622, %v2701
        %v2703 = vpop.f32.mrb[0].mxu0
        %v2704 = vadd.f32 %v2626, %v2703
        %2705 = vmatprep.mubr.f32.mxu0 0.0
        %2706 = vmatmul.mubr.f32.gmra.mrb[0].mxu0 %v2436
        %v2707 = vpop.f32.mrb[0].mxu0
        %v2708 = vadd.f32 %v2622, %v2707
        %v2709 = vpop.f32.mrb[0].mxu0
        %v2710 = vadd.f32 %v2626, %v2709
        %2711 = vmatprep.mubr.f32.mxu0 0.0
        %2712 = vmatmul.mubr.f32.gmra.mrb[0].mxu0 %v2438
        %v2713 = vpop.f32.mrb[0].mxu0
        %v2714 = vadd.f32 %v2622, %v2713
        %v2715 = vpop.f32.mrb[0].mxu0
        %v2716 = vadd.f32 %v2626, %v2715
        %2717 = vdwg.mxu0
        %v2718 = vmax.f32 %v2696, 0.0
        %v2719 = vmax.f32 %v2698, 0.0
        %v2720 = vmax.f32 %v2702, 0.0
        %v2721 = vmax.f32 %v2704, 0.0
        %v2722 = vmax.f32 %v2708, 0.0
        %v2723 = vmax.f32 %v2710, 0.0
        %v2724 = vmax.f32 %v2714, 0.0
        %v2725 = vmax.f32 %v2716, 0.0
        %v2727 = vlaneseq
        %v2728 = vshrl.u32 %v2727, 7
        %v2729 = vsub.s32 0, %v2728
        %v2730 = vrot.slane %v2615, %v2729
        %v2731 = vlaneseq
        %v2732 = vshrl.u32 %v2731, 7
        %v2733 = vsub.s32 1, %v2732
        %v2734 = vrot.slane %v2615, %v2733
        %v2737 = vmul.f32 %v2718, %v2730
        %v2738 = vmul.f32 %v2719, %v2734
        %v2739 = vmul.f32 %v2720, %v2730
        %v2740 = vmul.f32 %v2721, %v2734
        %v2741 = vmul.f32 %v2722, %v2730
        %v2742 = vmul.f32 %v2723, %v2734
        %v2743 = vmul.f32 %v2724, %v2730
        %v2744 = vmul.f32 %v2725, %v2734
        %v2746 = vlaneseq
        %v2747 = vshrl.u32 %v2746, 7
        %v2748 = vsub.s32 0, %v2747
        %v2749 = vrot.slane %v2617, %v2748
        %v2750 = vlaneseq
        %v2751 = vshrl.u32 %v2750, 7
        %v2752 = vsub.s32 1, %v2751
        %v2753 = vrot.slane %v2617, %v2752
        %v2756 = vadd.f32 %v2737, %v2749
        %v2757 = vadd.f32 %v2738, %v2753
        %v2758 = vadd.f32 %v2739, %v2749
        %v2759 = vadd.f32 %v2740, %v2753
        %v2760 = vadd.f32 %v2741, %v2749
        %v2761 = vadd.f32 %v2742, %v2753
        %v2762 = vadd.f32 %v2743, %v2749
        %v2763 = vadd.f32 %v2744, %v2753
        %v2764 = vmax.f32 %v2756, 0.0
        %v2765 = vmax.f32 %v2757, 0.0
        %v2766 = vmax.f32 %v2758, 0.0
        %v2767 = vmax.f32 %v2759, 0.0
        %v2768 = vmax.f32 %v2760, 0.0
        %v2769 = vmax.f32 %v2761, 0.0
        %v2770 = vmax.f32 %v2762, 0.0
        %v2771 = vmax.f32 %v2763, 0.0
        %2772 = vst [vmem:[#allocation2 + $0x10] sm:$0xff] %v2764
        %2773 = vst.msk [vmem:[#allocation2 + $0x18] sm:$0xff] %vm365, %v2765
        %2774 = vst [vmem:[#allocation2 + $0x20] sm:$0xff] %v2766
        %2775 = vst.msk [vmem:[#allocation2 + $0x28] sm:$0xff] %vm365, %v2767
        %2776 = vst [vmem:[#allocation2 + $0x40] sm:$0xff] %v2768
        %2777 = vst.msk [vmem:[#allocation2 + $0x48] sm:$0xff] %vm365, %v2769
        %2778 = vst [vmem:[#allocation2 + $0x50] sm:$0xff] %v2770
        %2779 = vst.msk [vmem:[#allocation2 + $0x58] sm:$0xff] %vm365, %v2771
        %s2780 = scalar_lea.vmem %s1, 48
        %v2781 = vld [vmem:[%s2780] sm:$0x1]
        %v2782 = vld [vmem:[%s2780 + $0x1] sm:$0x1]
        %v2783 = vld [vmem:[%s2780 + $0x2] sm:$0x1]
        %v2784 = vld [vmem:[%s2780 + $0x3] sm:$0x1]
        %v2785 = vld [vmem:[%s2780 + $0x4] sm:$0x1]
        %v2786 = vld [vmem:[%s2780 + $0x5] sm:$0x1]
        %v2787 = vld [vmem:[%s2780 + $0x6] sm:$0x1]
        %v2788 = vld [vmem:[%s2780 + $0x7] sm:$0x1]
        %v2789 = vld [vmem:[%s2780 + $0x8] sm:$0x1]
        %v2790 = vld [vmem:[#allocation2] sm:$0xff]
        %v2791 = vld [vmem:[#allocation2 + $0x10] sm:$0xff]
        %v2792 = vld [vmem:[#allocation2 + $0x20] sm:$0xff]
        %v2793 = vld [vmem:[#allocation2 + $0x30] sm:$0xff]
        %v2794 = vld [vmem:[#allocation2 + $0x40] sm:$0xff]
        %v2795 = vld [vmem:[#allocation2 + $0x50] sm:$0xff]
        %v2796 = vld [vmem:[#allocation2 + $0x60] sm:$0xff]
        %v2797 = vlaneseq
        %v2798 = vshrl.u32 %v2797, 7
        %v2799 = vsub.s32 0, %v2798
        %v2800 = vrot.slane %v2781, %v2799
        %v2801 = vmul.f32 %v2790, %v2800
        %v2802 = vmul.f32 %v2791, %v2800
        %v2803 = vmul.f32 %v2792, %v2800
        %v2804 = vadd.f32 %v2801, 0.0
        %v2805 = vadd.f32 %v2802, 0.0
        %v2806 = vadd.f32 %v2803, 0.0
        %v2807 = vlaneseq
        %v2808 = vshrl.u32 %v2807, 7
        %v2809 = vsub.s32 0, %v2808
        %v2810 = vrot.slane %v2784, %v2809
        %v2811 = vmul.f32 %v2791, %v2810
        %v2812 = vmul.f32 %v2792, %v2810
        %v2815 = vrot.slane %v2811, 1
        %v2816 = vrot.slane %v2812, 1
        %v2817 = vsel %vm428, %v2815, %v2816
        %v2821 = vadd.f32 %v2804, %v2815
        %v2822 = vadd.f32 %v2805, %v2817
        %v2823 = vadd.f32 %v2806, %v2816
        %v2824 = vlaneseq
        %v2825 = vshrl.u32 %v2824, 7
        %v2826 = vsub.s32 0, %v2825
        %v2827 = vrot.slane %v2787, %v2826
        %v2828 = vmul.f32 %v2791, %v2827
        %v2829 = vmul.f32 %v2792, %v2827
        %v2830 = vmul.f32 %v2793, %v2827
        %v2834 = vrot.slane %v2828, 2
        %v2835 = vrot.slane %v2829, 2
        %v2836 = vsel %vm448, %v2834, %v2835
        %v2837 = vrot.slane %v2830, 2
        %v2838 = vsel %vm448, %v2835, %v2837
        %v2842 = vadd.f32 %v2821, %v2834
        %v2843 = vadd.f32 %v2822, %v2836
        %v2844 = vadd.f32 %v2823, %v2838
        %v2845 = vmul.f32 %v2793, %v2800
        %v2846 = vmul.f32 %v2794, %v2800
        %v2847 = vmul.f32 %v2795, %v2800
        %v2848 = vadd.f32 %v2845, 0.0
        %v2849 = vadd.f32 %v2846, 0.0
        %v2850 = vadd.f32 %v2847, 0.0
        %v2851 = vmul.f32 %v2794, %v2810
        %v2852 = vmul.f32 %v2795, %v2810
        %v2855 = vrot.slane %v2851, 1
        %v2856 = vrot.slane %v2852, 1
        %v2857 = vsel %vm428, %v2855, %v2856
        %v2861 = vadd.f32 %v2848, %v2855
        %v2862 = vadd.f32 %v2849, %v2857
        %v2863 = vadd.f32 %v2850, %v2856
        %v2864 = vmul.f32 %v2794, %v2827
        %v2865 = vmul.f32 %v2795, %v2827
        %v2866 = vmul.f32 %v2796, %v2827
        %v2870 = vrot.slane %v2864, 2
        %v2871 = vrot.slane %v2865, 2
        %v2872 = vsel %vm448, %v2870, %v2871
        %v2873 = vrot.slane %v2866, 2
        %v2874 = vsel %vm448, %v2871, %v2873
        %v2878 = vadd.f32 %v2861, %v2870
        %v2879 = vadd.f32 %v2862, %v2872
        %v2880 = vadd.f32 %v2863, %v2874
        %v2881 = vld [vmem:[#allocation2 + $0x8] sm:$0xff]
        %v2882 = vld [vmem:[#allocation2 + $0x18] sm:$0xff]
        %v2883 = vld [vmem:[#allocation2 + $0x28] sm:$0xff]
        %v2884 = vld [vmem:[#allocation2 + $0x38] sm:$0xff]
        %v2885 = vld [vmem:[#allocation2 + $0x48] sm:$0xff]
        %v2886 = vld [vmem:[#allocation2 + $0x58] sm:$0xff]
        %v2887 = vld [vmem:[#allocation2 + $0x68] sm:$0xff]
        %v2888 = vlaneseq
        %v2889 = vshrl.u32 %v2888, 7
        %v2890 = vsub.s32 0, %v2889
        %v2891 = vrot.slane %v2782, %v2890
        %2893 = vrot.lane.b32.xlu0 %v2891, 8
        %v2894 = vpop.permute.xlu0 %2893
        %v2896 = vmul.f32 %v2790, %v2894
        %v2897 = vmul.f32 %v2881, %v2894
        %v2898 = vmul.f32 %v2791, %v2894
        %v2899 = vmul.f32 %v2882, %v2894
        %v2900 = vmul.f32 %v2792, %v2894
        %v2901 = vmul.f32 %v2883, %v2894
        %2908 = vrot.lane.b32.xlu0 %v2896, 120
        %v2909 = vpop.permute.xlu0 %2908
        %2910 = vrot.lane.b32.xlu0 %v2897, 120
        %v2911 = vpop.permute.xlu0 %2910
        %2912 = vrot.lane.b32.xlu0 %v2898, 120
        %v2913 = vpop.permute.xlu0 %2912
        %2914 = vrot.lane.b32.xlu0 %v2899, 120
        %v2915 = vpop.permute.xlu0 %2914
        %2916 = vrot.lane.b32.xlu0 %v2900, 120
        %v2917 = vpop.permute.xlu0 %2916
        %2918 = vrot.lane.b32.xlu0 %v2901, 120
        %v2919 = vpop.permute.xlu0 %2918
        %v2920 = vsel %vm535, %v2909, %v2911
        %v2921 = vsel %vm535, %v2913, %v2915
        %v2922 = vsel %vm535, %v2917, %v2919
        %v2926 = vadd.f32 %v2842, %v2920
        %v2927 = vadd.f32 %v2843, %v2921
        %v2928 = vadd.f32 %v2844, %v2922
        %v2929 = vlaneseq
        %v2930 = vshrl.u32 %v2929, 7
        %v2931 = vsub.s32 0, %v2930
        %v2932 = vrot.slane %v2785, %v2931
        %2934 = vrot.lane.b32.xlu0 %v2932, 8
        %v2935 = vpop.permute.xlu0 %2934
        %v2937 = vmul.f32 %v2791, %v2935
        %v2938 = vmul.f32 %v2882, %v2935
        %v2939 = vmul.f32 %v2792, %v2935
        %v2940 = vmul.f32 %v2883, %v2935
        %v2945 = vrot.slane %v2937, 1
        %v2946 = vrot.slane %v2938, 1
        %v2947 = vrot.slane %v2939, 1
        %v2948 = vsel %vm428, %v2945, %v2947
        %v2949 = vrot.slane %v2940, 1
        %v2950 = vsel %vm428, %v2946, %v2949
        %2951 = vrot.lane.b32.xlu0 %v2945, 120
        %v2952 = vpop.permute.xlu0 %2951
        %2953 = vrot.lane.b32.xlu0 %v2946, 120
        %v2954 = vpop.permute.xlu0 %2953
        %2955 = vrot.lane.b32.xlu0 %v2948, 120
        %v2956 = vpop.permute.xlu0 %2955
        %2957 = vrot.lane.b32.xlu0 %v2950, 120
        %v2958 = vpop.permute.xlu0 %2957
        %2959 = vrot.lane.b32.xlu0 %v2947, 120
        %v2960 = vpop.permute.xlu0 %2959
        %2961 = vrot.lane.b32.xlu0 %v2949, 120
        %v2962 = vpop.permute.xlu0 %2961
        %v2963 = vsel %vm535, %v2952, %v2954
        %v2964 = vsel %vm535, %v2956, %v2958
        %v2965 = vsel %vm535, %v2960, %v2962
        %v2969 = vadd.f32 %v2926, %v2963
        %v2970 = vadd.f32 %v2927, %v2964
        %v2971 = vadd.f32 %v2928, %v2965
        %v2972 = vlaneseq
        %v2973 = vshrl.u32 %v2972, 7
        %v2974 = vsub.s32 0, %v2973
        %v2975 = vrot.slane %v2788, %v2974
        %2977 = vrot.lane.b32.xlu0 %v2975, 8
        %v2978 = vpop.permute.xlu0 %2977
        %v2980 = vmul.f32 %v2791, %v2978
        %v2981 = vmul.f32 %v2882, %v2978
        %v2982 = vmul.f32 %v2792, %v2978
        %v2983 = vmul.f32 %v2883, %v2978
        %v2984 = vmul.f32 %v2793, %v2978
        %v2985 = vmul.f32 %v2884, %v2978
        %v2992 = vrot.slane %v2980, 2
        %v2993 = vrot.slane %v2981, 2
        %v2994 = vrot.slane %v2982, 2
        %v2995 = vsel %vm448, %v2992, %v2994
        %v2996 = vrot.slane %v2983, 2
        %v2997 = vsel %vm448, %v2993, %v2996
        %v2998 = vrot.slane %v2984, 2
        %v2999 = vsel %vm448, %v2994, %v2998
        %v3000 = vrot.slane %v2985, 2
        %v3001 = vsel %vm448, %v2996, %v3000
        %3002 = vrot.lane.b32.xlu0 %v2992, 120
        %v3003 = vpop.permute.xlu0 %3002
        %3004 = vrot.lane.b32.xlu0 %v2993, 120
        %v3005 = vpop.permute.xlu0 %3004
        %3006 = vrot.lane.b32.xlu0 %v2995, 120
        %v3007 = vpop.permute.xlu0 %3006
        %3008 = vrot.lane.b32.xlu0 %v2997, 120
        %v3009 = vpop.permute.xlu0 %3008
        %3010 = vrot.lane.b32.xlu0 %v2999, 120
        %v3011 = vpop.permute.xlu0 %3010
        %3012 = vrot.lane.b32.xlu0 %v3001, 120
        %v3013 = vpop.permute.xlu0 %3012
        %v3014 = vsel %vm535, %v3003, %v3005
        %v3015 = vsel %vm535, %v3007, %v3009
        %v3016 = vsel %vm535, %v3011, %v3013
        %v3020 = vadd.f32 %v2969, %v3014
        %v3021 = vadd.f32 %v2970, %v3015
        %v3022 = vadd.f32 %v2971, %v3016
        %v3023 = vmul.f32 %v2793, %v2894
        %v3024 = vmul.f32 %v2884, %v2894
        %v3025 = vmul.f32 %v2794, %v2894
        %v3026 = vmul.f32 %v2885, %v2894
        %v3027 = vmul.f32 %v2795, %v2894
        %v3028 = vmul.f32 %v2886, %v2894
        %3035 = vrot.lane.b32.xlu0 %v3023, 120
        %v3036 = vpop.permute.xlu0 %3035
        %3037 = vrot.lane.b32.xlu0 %v3024, 120
        %v3038 = vpop.permute.xlu0 %3037
        %3039 = vrot.lane.b32.xlu0 %v3025, 120
        %v3040 = vpop.permute.xlu0 %3039
        %3041 = vrot.lane.b32.xlu0 %v3026, 120
        %v3042 = vpop.permute.xlu0 %3041
        %3043 = vrot.lane.b32.xlu0 %v3027, 120
        %v3044 = vpop.permute.xlu0 %3043
        %3045 = vrot.lane.b32.xlu0 %v3028, 120
        %v3046 = vpop.permute.xlu0 %3045
        %v3047 = vsel %vm535, %v3036, %v3038
        %v3048 = vsel %vm535, %v3040, %v3042
        %v3049 = vsel %vm535, %v3044, %v3046
        %v3053 = vadd.f32 %v2878, %v3047
        %v3054 = vadd.f32 %v2879, %v3048
        %v3055 = vadd.f32 %v2880, %v3049
        %v3056 = vmul.f32 %v2794, %v2935
        %v3057 = vmul.f32 %v2885, %v2935
        %v3058 = vmul.f32 %v2795, %v2935
        %v3059 = vmul.f32 %v2886, %v2935
        %v3064 = vrot.slane %v3056, 1
        %v3065 = vrot.slane %v3057, 1
        %v3066 = vrot.slane %v3058, 1
        %v3067 = vsel %vm428, %v3064, %v3066
        %v3068 = vrot.slane %v3059, 1
        %v3069 = vsel %vm428, %v3065, %v3068
        %3070 = vrot.lane.b32.xlu0 %v3064, 120
        %v3071 = vpop.permute.xlu0 %3070
        %3072 = vrot.lane.b32.xlu0 %v3065, 120
        %v3073 = vpop.permute.xlu0 %3072
        %3074 = vrot.lane.b32.xlu0 %v3067, 120
        %v3075 = vpop.permute.xlu0 %3074
        %3076 = vrot.lane.b32.xlu0 %v3069, 120
        %v3077 = vpop.permute.xlu0 %3076
        %3078 = vrot.lane.b32.xlu0 %v3066, 120
        %v3079 = vpop.permute.xlu0 %3078
        %3080 = vrot.lane.b32.xlu0 %v3068, 120
        %v3081 = vpop.permute.xlu0 %3080
        %v3082 = vsel %vm535, %v3071, %v3073
        %v3083 = vsel %vm535, %v3075, %v3077
        %v3084 = vsel %vm535, %v3079, %v3081
        %v3088 = vadd.f32 %v3053, %v3082
        %v3089 = vadd.f32 %v3054, %v3083
        %v3090 = vadd.f32 %v3055, %v3084
        %v3091 = vmul.f32 %v2794, %v2978
        %v3092 = vmul.f32 %v2885, %v2978
        %v3093 = vmul.f32 %v2795, %v2978
        %v3094 = vmul.f32 %v2886, %v2978
        %v3095 = vmul.f32 %v2796, %v2978
        %v3096 = vmul.f32 %v2887, %v2978
        %v3103 = vrot.slane %v3091, 2
        %v3104 = vrot.slane %v3092, 2
        %v3105 = vrot.slane %v3093, 2
        %v3106 = vsel %vm448, %v3103, %v3105
        %v3107 = vrot.slane %v3094, 2
        %v3108 = vsel %vm448, %v3104, %v3107
        %v3109 = vrot.slane %v3095, 2
        %v3110 = vsel %vm448, %v3105, %v3109
        %v3111 = vrot.slane %v3096, 2
        %v3112 = vsel %vm448, %v3107, %v3111
        %3113 = vrot.lane.b32.xlu0 %v3103, 120
        %v3114 = vpop.permute.xlu0 %3113
        %3115 = vrot.lane.b32.xlu0 %v3104, 120
        %v3116 = vpop.permute.xlu0 %3115
        %3117 = vrot.lane.b32.xlu0 %v3106, 120
        %v3118 = vpop.permute.xlu0 %3117
        %3119 = vrot.lane.b32.xlu0 %v3108, 120
        %v3120 = vpop.permute.xlu0 %3119
        %3121 = vrot.lane.b32.xlu0 %v3110, 120
        %v3122 = vpop.permute.xlu0 %3121
        %3123 = vrot.lane.b32.xlu0 %v3112, 120
        %v3124 = vpop.permute.xlu0 %3123
        %v3125 = vsel %vm535, %v3114, %v3116
        %v3126 = vsel %vm535, %v3118, %v3120
        %v3127 = vsel %vm535, %v3122, %v3124
        %v3131 = vadd.f32 %v3088, %v3125
        %v3132 = vadd.f32 %v3089, %v3126
        %v3133 = vadd.f32 %v3090, %v3127
        %v3134 = vlaneseq
        %v3135 = vshrl.u32 %v3134, 7
        %v3136 = vsub.s32 0, %v3135
        %v3137 = vrot.slane %v2783, %v3136
        %3139 = vrot.lane.b32.xlu0 %v3137, 16
        %v3140 = vpop.permute.xlu0 %3139
        %v3142 = vmul.f32 %v2790, %v3140
        %v3143 = vmul.f32 %v2881, %v3140
        %v3144 = vmul.f32 %v2791, %v3140
        %v3145 = vmul.f32 %v2882, %v3140
        %v3146 = vmul.f32 %v2792, %v3140
        %v3147 = vmul.f32 %v2883, %v3140
        %3154 = vrot.lane.b32.xlu0 %v3142, 112
        %v3155 = vpop.permute.xlu0 %3154
        %3156 = vrot.lane.b32.xlu0 %v3143, 112
        %v3157 = vpop.permute.xlu0 %3156
        %3158 = vrot.lane.b32.xlu0 %v3144, 112
        %v3159 = vpop.permute.xlu0 %3158
        %3160 = vrot.lane.b32.xlu0 %v3145, 112
        %v3161 = vpop.permute.xlu0 %3160
        %3162 = vrot.lane.b32.xlu0 %v3146, 112
        %v3163 = vpop.permute.xlu0 %3162
        %3164 = vrot.lane.b32.xlu0 %v3147, 112
        %v3165 = vpop.permute.xlu0 %3164
        %v3166 = vsel %vm782, %v3155, %v3157
        %v3167 = vsel %vm782, %v3159, %v3161
        %v3168 = vsel %vm782, %v3163, %v3165
        %v3172 = vadd.f32 %v3020, %v3166
        %v3173 = vadd.f32 %v3021, %v3167
        %v3174 = vadd.f32 %v3022, %v3168
        %v3175 = vlaneseq
        %v3176 = vshrl.u32 %v3175, 7
        %v3177 = vsub.s32 0, %v3176
        %v3178 = vrot.slane %v2786, %v3177
        %3180 = vrot.lane.b32.xlu0 %v3178, 16
        %v3181 = vpop.permute.xlu0 %3180
        %v3183 = vmul.f32 %v2791, %v3181
        %v3184 = vmul.f32 %v2882, %v3181
        %v3185 = vmul.f32 %v2792, %v3181
        %v3186 = vmul.f32 %v2883, %v3181
        %v3191 = vrot.slane %v3183, 1
        %v3192 = vrot.slane %v3184, 1
        %v3193 = vrot.slane %v3185, 1
        %v3194 = vsel %vm428, %v3191, %v3193
        %v3195 = vrot.slane %v3186, 1
        %v3196 = vsel %vm428, %v3192, %v3195
        %3197 = vrot.lane.b32.xlu0 %v3191, 112
        %v3198 = vpop.permute.xlu0 %3197
        %3199 = vrot.lane.b32.xlu0 %v3192, 112
        %v3200 = vpop.permute.xlu0 %3199
        %3201 = vrot.lane.b32.xlu0 %v3194, 112
        %v3202 = vpop.permute.xlu0 %3201
        %3203 = vrot.lane.b32.xlu0 %v3196, 112
        %v3204 = vpop.permute.xlu0 %3203
        %3205 = vrot.lane.b32.xlu0 %v3193, 112
        %v3206 = vpop.permute.xlu0 %3205
        %3207 = vrot.lane.b32.xlu0 %v3195, 112
        %v3208 = vpop.permute.xlu0 %3207
        %v3209 = vsel %vm782, %v3198, %v3200
        %v3210 = vsel %vm782, %v3202, %v3204
        %v3211 = vsel %vm782, %v3206, %v3208
        %v3215 = vadd.f32 %v3172, %v3209
        %v3216 = vadd.f32 %v3173, %v3210
        %v3217 = vadd.f32 %v3174, %v3211
        %v3218 = vlaneseq
        %v3219 = vshrl.u32 %v3218, 7
        %v3220 = vsub.s32 0, %v3219
        %v3221 = vrot.slane %v2789, %v3220
        %3223 = vrot.lane.b32.xlu0 %v3221, 16
        %v3224 = vpop.permute.xlu0 %3223
        %v3226 = vmul.f32 %v2791, %v3224
        %v3227 = vmul.f32 %v2882, %v3224
        %v3228 = vmul.f32 %v2792, %v3224
        %v3229 = vmul.f32 %v2883, %v3224
        %v3230 = vmul.f32 %v2793, %v3224
        %v3231 = vmul.f32 %v2884, %v3224
        %v3238 = vrot.slane %v3226, 2
        %v3239 = vrot.slane %v3227, 2
        %v3240 = vrot.slane %v3228, 2
        %v3241 = vsel %vm448, %v3238, %v3240
        %v3242 = vrot.slane %v3229, 2
        %v3243 = vsel %vm448, %v3239, %v3242
        %v3244 = vrot.slane %v3230, 2
        %v3245 = vsel %vm448, %v3240, %v3244
        %v3246 = vrot.slane %v3231, 2
        %v3247 = vsel %vm448, %v3242, %v3246
        %3248 = vrot.lane.b32.xlu0 %v3238, 112
        %v3249 = vpop.permute.xlu0 %3248
        %3250 = vrot.lane.b32.xlu0 %v3239, 112
        %v3251 = vpop.permute.xlu0 %3250
        %3252 = vrot.lane.b32.xlu0 %v3241, 112
        %v3253 = vpop.permute.xlu0 %3252
        %3254 = vrot.lane.b32.xlu0 %v3243, 112
        %v3255 = vpop.permute.xlu0 %3254
        %3256 = vrot.lane.b32.xlu0 %v3245, 112
        %v3257 = vpop.permute.xlu0 %3256
        %3258 = vrot.lane.b32.xlu0 %v3247, 112
        %v3259 = vpop.permute.xlu0 %3258
        %v3260 = vsel %vm782, %v3249, %v3251
        %v3261 = vsel %vm782, %v3253, %v3255
        %v3262 = vsel %vm782, %v3257, %v3259
        %v3266 = vadd.f32 %v3215, %v3260
        %v3267 = vadd.f32 %v3216, %v3261
        %v3268 = vadd.f32 %v3217, %v3262
        %v3269 = vmul.f32 %v2793, %v3140
        %v3270 = vmul.f32 %v2884, %v3140
        %v3271 = vmul.f32 %v2794, %v3140
        %v3272 = vmul.f32 %v2885, %v3140
        %v3273 = vmul.f32 %v2795, %v3140
        %v3274 = vmul.f32 %v2886, %v3140
        %3281 = vrot.lane.b32.xlu0 %v3269, 112
        %v3282 = vpop.permute.xlu0 %3281
        %3283 = vrot.lane.b32.xlu0 %v3270, 112
        %v3284 = vpop.permute.xlu0 %3283
        %3285 = vrot.lane.b32.xlu0 %v3271, 112
        %v3286 = vpop.permute.xlu0 %3285
        %3287 = vrot.lane.b32.xlu0 %v3272, 112
        %v3288 = vpop.permute.xlu0 %3287
        %3289 = vrot.lane.b32.xlu0 %v3273, 112
        %v3290 = vpop.permute.xlu0 %3289
        %3291 = vrot.lane.b32.xlu0 %v3274, 112
        %v3292 = vpop.permute.xlu0 %3291
        %v3293 = vsel %vm782, %v3282, %v3284
        %v3294 = vsel %vm782, %v3286, %v3288
        %v3295 = vsel %vm782, %v3290, %v3292
        %v3299 = vadd.f32 %v3131, %v3293
        %v3300 = vadd.f32 %v3132, %v3294
        %v3301 = vadd.f32 %v3133, %v3295
        %v3302 = vmul.f32 %v2794, %v3181
        %v3303 = vmul.f32 %v2885, %v3181
        %v3304 = vmul.f32 %v2795, %v3181
        %v3305 = vmul.f32 %v2886, %v3181
        %v3310 = vrot.slane %v3302, 1
        %v3311 = vrot.slane %v3303, 1
        %v3312 = vrot.slane %v3304, 1
        %v3313 = vsel %vm428, %v3310, %v3312
        %v3314 = vrot.slane %v3305, 1
        %v3315 = vsel %vm428, %v3311, %v3314
        %3316 = vrot.lane.b32.xlu0 %v3310, 112
        %v3317 = vpop.permute.xlu0 %3316
        %3318 = vrot.lane.b32.xlu0 %v3311, 112
        %v3319 = vpop.permute.xlu0 %3318
        %3320 = vrot.lane.b32.xlu0 %v3313, 112
        %v3321 = vpop.permute.xlu0 %3320
        %3322 = vrot.lane.b32.xlu0 %v3315, 112
        %v3323 = vpop.permute.xlu0 %3322
        %3324 = vrot.lane.b32.xlu0 %v3312, 112
        %v3325 = vpop.permute.xlu0 %3324
        %3326 = vrot.lane.b32.xlu0 %v3314, 112
        %v3327 = vpop.permute.xlu0 %3326
        %v3328 = vsel %vm782, %v3317, %v3319
        %v3329 = vsel %vm782, %v3321, %v3323
        %v3330 = vsel %vm782, %v3325, %v3327
        %v3334 = vadd.f32 %v3299, %v3328
        %v3335 = vadd.f32 %v3300, %v3329
        %v3336 = vadd.f32 %v3301, %v3330
        %v3337 = vmul.f32 %v2794, %v3224
        %v3338 = vmul.f32 %v2885, %v3224
        %v3339 = vmul.f32 %v2795, %v3224
        %v3340 = vmul.f32 %v2886, %v3224
        %v3341 = vmul.f32 %v2796, %v3224
        %v3342 = vmul.f32 %v2887, %v3224
        %v3349 = vrot.slane %v3337, 2
        %v3350 = vrot.slane %v3338, 2
        %v3351 = vrot.slane %v3339, 2
        %v3352 = vsel %vm448, %v3349, %v3351
        %v3353 = vrot.slane %v3340, 2
        %v3354 = vsel %vm448, %v3350, %v3353
        %v3355 = vrot.slane %v3341, 2
        %v3356 = vsel %vm448, %v3351, %v3355
        %v3357 = vrot.slane %v3342, 2
        %v3358 = vsel %vm448, %v3353, %v3357
        %3359 = vrot.lane.b32.xlu0 %v3349, 112
        %v3360 = vpop.permute.xlu0 %3359
        %3361 = vrot.lane.b32.xlu0 %v3350, 112
        %v3362 = vpop.permute.xlu0 %3361
        %3363 = vrot.lane.b32.xlu0 %v3352, 112
        %v3364 = vpop.permute.xlu0 %3363
        %3365 = vrot.lane.b32.xlu0 %v3354, 112
        %v3366 = vpop.permute.xlu0 %3365
        %3367 = vrot.lane.b32.xlu0 %v3356, 112
        %v3368 = vpop.permute.xlu0 %3367
        %3369 = vrot.lane.b32.xlu0 %v3358, 112
        %v3370 = vpop.permute.xlu0 %3369
        %v3371 = vsel %vm782, %v3360, %v3362
        %v3372 = vsel %vm782, %v3364, %v3366
        %v3373 = vsel %vm782, %v3368, %v3370
        %v3377 = vadd.f32 %v3334, %v3371
        %v3378 = vadd.f32 %v3335, %v3372
        %v3379 = vadd.f32 %v3336, %v3373
        %v3383 = vrot.slane %v3266, 7
        %v3384 = vrot.slane %v3267, 7
        %v3385 = vsel %vm1000, %v3383, %v3384
        %v3386 = vrot.slane %v3268, 7
        %v3387 = vsel %vm1000, %v3384, %v3386
        %v3393 = vrot.slane %v3377, 7
        %v3394 = vrot.slane %v3378, 7
        %v3395 = vsel %vm1000, %v3393, %v3394
        %v3396 = vrot.slane %v3379, 7
        %v3397 = vsel %vm1000, %v3394, %v3396
        %s3400 = scalar_lea.vmem %s6, 128
        %v3401 = vld [vmem:[%s3400] sm:$0xff]
        %v3402 = vld [vmem:[%s3400 + $0x8] sm:$0xff]
        %v3403 = vld [vmem:[%s3400 + $0x10] sm:$0xff]
        %v3404 = vld [vmem:[%s3400 + $0x18] sm:$0xff]
        %v3405 = vld [vmem:[%s3400 + $0x20] sm:$0xff]
        %v3406 = vld [vmem:[%s3400 + $0x28] sm:$0xff]
        %v3407 = vld [vmem:[%s3400 + $0x30] sm:$0xff]
        %v3408 = vld [vmem:[%s3400 + $0x38] sm:$0xff]
        %v3409 = vld [vmem:[%s3400 + $0x40] sm:$0xff]
        %v3410 = vld [vmem:[%s3400 + $0x48] sm:$0xff]
        %v3411 = vld [vmem:[%s3400 + $0x50] sm:$0xff]
        %v3412 = vld [vmem:[%s3400 + $0x58] sm:$0xff]
        %v3413 = vld [vmem:[%s3400 + $0x60] sm:$0xff]
        %v3414 = vld [vmem:[%s3400 + $0x68] sm:$0xff]
        %v3415 = vld [vmem:[%s3400 + $0x70] sm:$0xff]
        %v3416 = vld [vmem:[%s3400 + $0x78] sm:$0xff]
        %s3417 = scalar_lea.vmem %s7, 1
        %v3418 = vld [vmem:[%s3417] sm:$0x1]
        %s3419 = scalar_lea.vmem %s8, 1
        %v3420 = vld [vmem:[%s3419] sm:$0x1]
        %s3421 = scalar_lea.vmem %s9, 1
        %v3422 = vld [vmem:[%s3421] sm:$0x1]
        %v3424 = vlaneseq
        %v3425 = vshrl.u32 %v3424, 7
        %v3426 = vsub.s32 0, %v3425
        %v3427 = vrot.slane %v3418, %v3426
        %3429 = vmatprep.subr.mxu0 0.0
        %3430 = vmatpush1.msra.mxu0 %v3401
        %3431 = vmatprep.subr.mxu0 0.0
        %3432 = vmatpush1.msra.mxu0 %v3402
        %3433 = vmatprep.subr.mxu0 0.0
        %3434 = vmatpush1.msra.mxu0 %v3403
        %3435 = vmatprep.subr.mxu0 0.0
        %3436 = vmatpush1.msra.mxu0 %v3404
        %3437 = vmatprep.subr.mxu0 0.0
        %3438 = vmatpush1.msra.mxu0 %v3405
        %3439 = vmatprep.subr.mxu0 0.0
        %3440 = vmatpush1.msra.mxu0 %v3406
        %3441 = vmatprep.subr.mxu0 0.0
        %3442 = vmatpush1.msra.mxu0 %v3407
        %3443 = vmatprep.subr.mxu0 0.0
        %3444 = vmatpush1.msra.mxu0 %v3408
        %3445 = vmatprep.subr.mxu0 0.0
        %3446 = vmatpush1.msra.mxu0 %v3409
        %3447 = vmatprep.subr.mxu0 0.0
        %3448 = vmatpush1.msra.mxu0 %v3410
        %3449 = vmatprep.subr.mxu0 0.0
        %3450 = vmatpush1.msra.mxu0 %v3411
        %3451 = vmatprep.subr.mxu0 0.0
        %3452 = vmatpush1.msra.mxu0 %v3412
        %3453 = vmatprep.subr.mxu0 0.0
        %3454 = vmatpush1.msra.mxu0 %v3413
        %3455 = vmatprep.subr.mxu0 0.0
        %3456 = vmatpush1.msra.mxu0 %v3414
        %3457 = vmatprep.subr.mxu0 0.0
        %3458 = vmatpush1.msra.mxu0 %v3415
        %3459 = vmatprep.subr.mxu0 0.0
        %3460 = vmatpush1.msra.mxu0 %v3416
        %3461 = vmatprep.subr.mxu0 0.0
        %3462 = vmatpush1.msra.mxu0 0.0
        %3463 = vmatprep.subr.mxu0 0.0
        %3464 = vmatpush1.msra.mxu0 0.0
        %3465 = vmatprep.subr.mxu0 0.0
        %3466 = vmatpush1.msra.mxu0 0.0
        %3467 = vmatprep.subr.mxu0 0.0
        %3468 = vmatpush1.msra.mxu0 0.0
        %3469 = vmatprep.subr.mxu0 0.0
        %3470 = vmatpush1.msra.mxu0 0.0
        %3471 = vmatprep.subr.mxu0 0.0
        %3472 = vmatpush1.msra.mxu0 0.0
        %3473 = vmatprep.subr.mxu0 0.0
        %3474 = vmatpush1.msra.mxu0 0.0
        %3475 = vmatprep.subr.mxu0 0.0
        %3476 = vmatpush1.msra.mxu0 0.0
        %3477 = vmatprep.subr.mxu0 0.0
        %3478 = vmatpush1.msra.mxu0 0.0
        %3479 = vmatprep.subr.mxu0 0.0
        %3480 = vmatpush1.msra.mxu0 0.0
        %3481 = vmatprep.subr.mxu0 0.0
        %3482 = vmatpush1.msra.mxu0 0.0
        %3483 = vmatprep.subr.mxu0 0.0
        %3484 = vmatpush1.msra.mxu0 0.0
        %3485 = vmatprep.subr.mxu0 0.0
        %3486 = vmatpush1.msra.mxu0 0.0
        %3487 = vmatprep.subr.mxu0 0.0
        %3488 = vmatpush1.msra.mxu0 0.0
        %3489 = vmatprep.subr.mxu0 0.0
        %3490 = vmatpush1.msra.mxu0 0.0
        %3491 = vmatprep.subr.mxu0 0.0
        %3492 = vmatpush1.msra.mxu0 0.0
        %3493 = vmatprep.mubr.f32.mxu0 0.0
        %3494 = vmatmul.mubr.f32.gmra.mrb[0].mxu0 %v3385
        %v3495 = vpop.f32.mrb[0].mxu0
        %v3496 = vadd.f32 %v3427, %v3495
        %v3497 = vpop.f32.mrb[0].mxu0
        %3498 = vmatprep.mubr.f32.mxu0 0.0
        %3499 = vmatmul.mubr.f32.gmra.mrb[0].mxu0 %v3387
        %v3500 = vpop.f32.mrb[0].mxu0
        %v3501 = vadd.f32 %v3427, %v3500
        %v3502 = vpop.f32.mrb[0].mxu0
        %3503 = vmatprep.mubr.f32.mxu0 0.0
        %3504 = vmatmul.mubr.f32.gmra.mrb[0].mxu0 %v3395
        %v3505 = vpop.f32.mrb[0].mxu0
        %v3506 = vadd.f32 %v3427, %v3505
        %v3507 = vpop.f32.mrb[0].mxu0
        %3508 = vmatprep.mubr.f32.mxu0 0.0
        %3509 = vmatmul.mubr.f32.gmra.mrb[0].mxu0 %v3397
        %v3510 = vpop.f32.mrb[0].mxu0
        %v3511 = vadd.f32 %v3427, %v3510
        %v3512 = vpop.f32.mrb[0].mxu0
        %3513 = vdwg.mxu0
        %v3514 = vmax.f32 %v3496, 0.0
        %v3515 = vmax.f32 %v3501, 0.0
        %v3516 = vmax.f32 %v3506, 0.0
        %v3517 = vmax.f32 %v3511, 0.0
        %v3519 = vlaneseq
        %v3520 = vshrl.u32 %v3519, 7
        %v3521 = vsub.s32 0, %v3520
        %v3522 = vrot.slane %v3420, %v3521
        %v3524 = vmul.f32 %v3514, %v3522
        %v3525 = vmul.f32 %v3515, %v3522
        %v3526 = vmul.f32 %v3516, %v3522
        %v3527 = vmul.f32 %v3517, %v3522
        %v3529 = vlaneseq
        %v3530 = vshrl.u32 %v3529, 7
        %v3531 = vsub.s32 0, %v3530
        %v3532 = vrot.slane %v3422, %v3531
        %v3534 = vadd.f32 %v3524, %v3532
        %v3535 = vadd.f32 %v3525, %v3532
        %v3536 = vadd.f32 %v3526, %v3532
        %v3537 = vadd.f32 %v3527, %v3532
        %v3538 = vmax.f32 %v3534, 0.0
        %v3539 = vmax.f32 %v3535, 0.0
        %v3540 = vmax.f32 %v3536, 0.0
        %v3541 = vmax.f32 %v3537, 0.0
        %v3542 = vadd.f32 %v2575, %v3538
        %v3543 = vadd.f32 %v2576, %v3539
        %v3544 = vadd.f32 %v2577, %v3540
        %v3545 = vadd.f32 %v2578, %v3541
        %3546 = vst [vmem:[%s355] sm:$0xff] %v3542
        %3547 = vst [vmem:[%s355 + $0x8] sm:$0xff] %v3543
        %s3548 = scalar_lea.vmem %s355, 16 [#allocation4]
        %3549 = vst [vmem:[%s3548] sm:$0xff] %v3544
        %3550 = vst [vmem:[%s3548 + $0x8] sm:$0xff] %v3545
        %s3551 = sand.u32 %s247, 1
        %s3552 = scalar_lea.sflag [#allocation5], %s3551
        %s3553 = sand.u32 %s247, 1
        %s3554 = smul.addr %s3553, 32
        %s3555 = scalar_lea.vmem [#allocation4], %s3554
        // Predicated region
        $region61: #{tpu_custom_call.1} parent=59 // pred_check
          %p3556 = pneg %p257
        $region62: #{tpu_custom_call.1} parent=59 // pred_check_branch
          %3558 = sbr.rel (%p3556) target = $region64
        $region63: #{tpu_custom_call.1} parent=59 // pred_region
          %s3559 = smul.u32 2, %s24
          %s3561 = ssub.s32 512, 512
          %3562 = vsyncadd %s3552, %s3561
          %s3563 = smul.addr %s3559, 2
          %s3564 = smul.addr %s3563, 128
          %s3565 = scalar_lea.hbm %s10, %s3564
          %s3566 = sshll.u32 %s3555, 4
          %s3567 = int_to_ptr.vmem [resolvable:$true] %s3566
          %3572 = dma.vmem_to_hbm [thread:$0]  %s3567, 512, %s3565, %s3552, 128, 128, 8
        $region64: #{tpu_custom_call.1} parent=59 // pred_fallthru
          _
      $region60: #{tpu_custom_call.1} parent=5 // pred_fallthru
        _
      %p3573 = scmp.le.s32.totalorder 2, %s19
      // Predicated region
      $region65: #{tpu_custom_call.1} parent=5 // pred_check
        %p3574 = pneg %p3573
      $region66: #{tpu_custom_call.1} parent=5 // pred_check_branch
        %3576 = sbr.rel (%p3574) target = $region68
      $region67: #{tpu_custom_call.1} parent=5 // pred_region
        %s3577 = ssub.s32 %s19, 2
        // Predicated region
        $region69: #{tpu_custom_call.1} parent=67 // pred_check
          %p3578 = pneg %p263
        $region70: #{tpu_custom_call.1} parent=67 // pred_check_branch
          %3580 = sbr.rel (%p3578) target = $region72
        $region71: #{tpu_custom_call.1} parent=67 // pred_region
          %s3581 = sand.u32 %s248, 1
          %s3582 = scalar_lea.sflag [#allocation5], %s3581
          %s3583 = sand.u32 %s248, 1
          %s3584 = smul.addr %s3583, 32
          %s3585 = scalar_lea.vmem [#allocation4], %s3584
          %3586 = dma.done %s3582, 512
        $region72: #{tpu_custom_call.1} parent=67 // pred_fallthru
          _
      $region68: #{tpu_custom_call.1} parent=5 // pred_fallthru
        _
    $region6: #{tpu_custom_call.1} parent=1 // loop_footer
      %s23 = sadd.s32 1, %s19
    $region7: #{tpu_custom_call.1} parent=1 // loop_footer_branch
      %18 = sbr.rel target = $region3
    $region8: #{tpu_custom_call.1} parent=1 // loop_exit
      _
    %3587 = vsyncpa [#allocation5], 1
    %s3588 = scalar_lea.sflag [#allocation5], 1
    %3589 = vsyncpa %s3588, 1

</llo_original>
